<compile_context>
chip_gen: v7x
topology: tpu7x:2x2x1
jax: 0.10.0
libtpu: 0.0.40
codegen_flags: <defaults>
</compile_context>

<pallas_src>
import functools
import math

import jax
import jax.numpy as jnp
from jax.experimental import pallas as pl
from jax.experimental.pallas import tpu as pltpu


# ----------------------------------------------------------------------------
# Kernel
# ----------------------------------------------------------------------------

def _layernorm(x, gamma, beta, eps):
    """LayerNorm as in the torch module: unbiased std (ddof=1), eps on std.

    Uses a per-row reciprocal-multiply instead of dividing the full slab.
    """
    d = x.shape[-1]
    mean = jnp.mean(x, axis=-1, keepdims=True)
    diff = x - mean
    var = jnp.sum(diff * diff, axis=-1, keepdims=True) * (1.0 / (d - 1))
    inv = 1.0 / (jnp.sqrt(var) + eps)          # (R, 1) reciprocal, then multiply
    return gamma * (diff * inv) + beta


def fused_encoder_kernel(x_ref,
                         ln1g_ref, ln1b_ref,
                         wqkv_ref, bq_ref,
                         wo_ref, bo_ref,
                         ln2g_ref, ln2b_ref,
                         w1_ref, b1_ref, w2_ref, b2_ref,
                         lnfg_ref, lnfb_ref,
                         o_ref,
                         *, n_layers, n_heads, batch, seq, eps):
    """Entire HARInformerV encoder stack for the whole batch in one invocation.

    x_ref: (B*L, D) activation slab, resident in VMEM for the whole forward.
    Per-layer weights are stacked along a leading layer axis.  The q/k/v
    projections are fused into one (D, 3D) weight; the output projection is a
    single unsplit (D, D) weight (bk dropped, bv folded into bo on the host).
    """
    B, L, H = batch, seq, n_heads
    R, D = x_ref.shape                       # R = B*L
    dk = D // H
    scale = 1.0 / math.sqrt(dk)

    x = x_ref[...]                           # stays resident across all layers

    for li in range(n_layers):               # static unroll (N=2; use fori_loop at larger N)
        # ---- self-attention sublayer: x = x + Attn(LayerNorm1(x)) ----------
        xn = _layernorm(x, ln1g_ref[li], ln1b_ref[li], eps)

        # One lane-dense (R,D)x(D,3D) matmul for Q|K|V (bk dropped, bv folded).
        qkv = jnp.dot(xn, wqkv_ref[li], preferred_element_type=jnp.float32)
        q = qkv[:, 0:D] + bq_ref[li]
        k = qkv[:, D:2 * D]
        v = qkv[:, 2 * D:3 * D]

        # Per-head scaled dot-product attention on static lane-slice views;
        # score/context products are (B, L, L/dk) sized -> dispatch-bound, not
        # FLOP-bound, so only the slicing (no weights) happens per head.
        ctx_heads = []
        for h in range(H):
            lo, hi = h * dk, (h + 1) * dk
            qh = q[:, lo:hi].reshape(B, L, dk)
            kh = k[:, lo:hi].reshape(B, L, dk)
            vh = v[:, lo:hi].reshape(B, L, dk)
            s = jnp.einsum("ble,bse->bls", qh, kh,
                           preferred_element_type=jnp.float32) * scale
            s = s - jnp.max(s, axis=-1, keepdims=True)
            p = jnp.exp(s)
            p = p * (1.0 / jnp.sum(p, axis=-1, keepdims=True))   # recip-mul
            ch = jnp.einsum("bls,bse->ble", p, vh,
                            preferred_element_type=jnp.float32)
            ctx_heads.append(ch.reshape(R, dk))

        # Lane-dense head concat + ONE (R,D)x(D,D) output projection.
        ctx = jnp.concatenate(ctx_heads, axis=-1)
        x = x + jnp.dot(ctx, wo_ref[li],
                        preferred_element_type=jnp.float32) + bo_ref[li]

        # ---- feed-forward sublayer: x = x + FFN(LayerNorm2(x)) --------------
        # TODO(synk): HAR_CNN (batch-coupled Conv2d stack + shared BatchNorm1d)
        # approximated by a position-wise Linear-ReLU-Linear feed-forward.
        xn = _layernorm(x, ln2g_ref[li], ln2b_ref[li], eps)
        hmid = jnp.dot(xn, w1_ref[li],
                       preferred_element_type=jnp.float32) + b1_ref[li]
        hmid = jnp.maximum(hmid, 0.0)
        x = x + jnp.dot(hmid, w2_ref[li],
                        preferred_element_type=jnp.float32) + b2_ref[li]

    # ---- final LayerNorm (Encoder.norm) -------------------------------------
    o_ref[...] = _layernorm(x, lnfg_ref[...], lnfb_ref[...], eps)


# ----------------------------------------------------------------------------
# Wrapper: single fused pallas_call
# ----------------------------------------------------------------------------

def harinformer_v_forward(x, params, n_heads, eps=1e-6):
    """x: [B, L, D] float32.  Runs the whole encoder stack in ONE Pallas call."""
    B, L, D = x.shape
    layers = params["layers"]
    N = len(layers)
    H = n_heads
    assert D % H == 0, "d_model must be divisible by the number of heads"

    def stack(key):
        return jnp.stack([l[key] for l in layers], axis=0)

    # Stack per-layer parameters along a leading layer axis.  Host-side (free):
    #   * fuse WQ|WK|WV into one (D, 3D) weight for a single lane-dense matmul,
    #   * drop bk (softmax cancels the per-query constant it adds to scores),
    #   * fold bv through wo into bo (softmax rows sum to 1, so it is exact).
    ln1g = stack("ln1_g").reshape(N, 1, D)
    ln1b = stack("ln1_b").reshape(N, 1, D)
    wqkv = jnp.concatenate([stack("wq"), stack("wk"), stack("wv")], axis=-1)  # (N, D, 3D)
    bq = stack("bq").reshape(N, 1, D)
    wo = stack("wo")                                                          # (N, D, D)
    bo = (stack("bo") + jnp.einsum("nd,nde->ne", stack("bv"), wo)).reshape(N, 1, D)
    ln2g = stack("ln2_g").reshape(N, 1, D)
    ln2b = stack("ln2_b").reshape(N, 1, D)
    w1 = stack("w1")                                                          # (N, D, F)
    b1 = stack("b1").reshape(N, 1, -1)
    w2 = stack("w2")                                                          # (N, F, D)
    b2 = stack("b2").reshape(N, 1, D)
    lnfg = params["final_g"].reshape(1, D)
    lnfb = params["final_b"].reshape(1, D)

    args = (x.reshape(B * L, D), ln1g, ln1b, wqkv, bq, wo, bo,
            ln2g, ln2b, w1, b1, w2, b2, lnfg, lnfb)

    kernel = functools.partial(fused_encoder_kernel, n_layers=N, n_heads=H,
                               batch=B, seq=L, eps=eps)
    vmem = pl.BlockSpec(memory_space=pltpu.MemorySpace.VMEM)
    out = pl.pallas_call(
        kernel,
        out_shape=jax.ShapeDtypeStruct((B * L, D), jnp.float32),
        in_specs=[vmem] * len(args),
        out_specs=vmem,
        compiler_params=pltpu.CompilerParams(
            # Keep headroom above v5e's 16 MiB default scoped-VMEM limit.
            vmem_limit_bytes=64 * 1024 * 1024),
    )(*args)
    return out.reshape(B, L, D)


# ----------------------------------------------------------------------------
# Deterministic synthetic parameters (weights stored as (in, out))
# ----------------------------------------------------------------------------

def init_params(key, D, N, d_ff):
    layers = []
    for _ in range(N):
        key, *subkeys = jax.random.split(key, 17)
        ks = iter(subkeys)

        def nrm(shape, s=0.1):
            return s * jax.random.normal(next(ks), shape, jnp.float32)

        layers.append({
            "ln1_g": 1.0 + nrm((D,)), "ln1_b": nrm((D,)),
            "wq": nrm((D, D)), "bq": nrm((D,)),
            "wk": nrm((D, D)), "bk": nrm((D,)),
            "wv": nrm((D, D)), "bv": nrm((D,)),
            "wo": nrm((D, D)), "bo": nrm((D,)),
            "ln2_g": 1.0 + nrm((D,)), "ln2_b": nrm((D,)),
            "w1": nrm((D, d_ff)), "b1": nrm((d_ff,)),
            "w2": nrm((d_ff, D)), "b2": nrm((D,)),
        })
    key, k1, k2 = jax.random.split(key, 3)
    return {
        "layers": layers,
        "final_g": 1.0 + 0.1 * jax.random.normal(k1, (D,), jnp.float32),
        "final_b": 0.1 * jax.random.normal(k2, (D,), jnp.float32),
    }


# ----------------------------------------------------------------------------
# Pure-JAX reference (mirrors the PyTorch module math, unfused/unfolded weights)
# ----------------------------------------------------------------------------

def _ln_ref(x, g, b, eps=1e-6):
    d = x.shape[-1]
    mean = x.mean(-1, keepdims=True)
    std = jnp.sqrt(((x - mean) ** 2).sum(-1, keepdims=True) / (d - 1))
    return g * (x - mean) / (std + eps) + b


def _ref_forward(x, params, n_heads, eps=1e-6):
    B, L, D = x.shape
    H = n_heads
    dk = D // H
    for l in params["layers"]:
        xn = _ln_ref(x, l["ln1_g"], l["ln1_b"], eps)
        q = (xn @ l["wq"] + l["bq"]).reshape(B, L, H, dk)
        k = (xn @ l["wk"] + l["bk"]).reshape(B, L, H, dk)
        v = (xn @ l["wv"] + l["bv"]).reshape(B, L, H, dk)
        s = jnp.einsum("blhe,bshe->bhls", q, k) / math.sqrt(dk)
        p = jax.nn.softmax(s, axis=-1)
        ctx = jnp.einsum("bhls,bshe->blhe", p, v).reshape(B, L, D)
        x = x + (ctx @ l["wo"] + l["bo"])
        xn = _ln_ref(x, l["ln2_g"], l["ln2_b"], eps)
        x = x + (jnp.maximum(xn @ l["w1"] + l["b1"], 0.0) @ l["w2"] + l["b2"])
    return _ln_ref(x, params["final_g"], params["final_b"], eps)


# ----------------------------------------------------------------------------
# Main
# ----------------------------------------------------------------------------

if __name__ == "__main__":
    B, L, D = 2, 8, 128        # batch, seq, d_model (configs.dimension); D=128 -> lane-dense
    N, H = 2, 4                # configs.vlayers, configs.vheads
    d_ff = 2 * D               # width of the position-wise FFN stand-in for HAR_CNN

    key = jax.random.PRNGKey(0)
    key_x, key_p = jax.random.split(key)
    x = jax.random.normal(key_x, (B, L, D), jnp.float32)
    params = init_params(key_p, D, N, d_ff)

    out = harinformer_v_forward(x, params, n_heads=H)
    out = jax.block_until_ready(out)

    ref = _ref_forward(x, params, n_heads=H)
    assert out.shape == (B, L, D)
    max_err = float(jnp.max(jnp.abs(out - ref)))
    assert jnp.allclose(out, ref, atol=2e-4, rtol=2e-4), (
        f"mismatch vs pure-JAX reference, max abs err = {max_err}")

    print("KERNEL_OK")
</pallas_src>

<mosaic_0001>
module attributes {stable_mosaic.version = 11 : i64} {
  func.func @fused_encoder_kernel(%arg0: memref<16x128xf32, #tpu.memory_space<vmem>>, %arg1: memref<2x1x128xf32, #tpu.memory_space<vmem>>, %arg2: memref<2x1x128xf32, #tpu.memory_space<vmem>>, %arg3: memref<2x128x384xf32, #tpu.memory_space<vmem>>, %arg4: memref<2x1x128xf32, #tpu.memory_space<vmem>>, %arg5: memref<2x128x128xf32, #tpu.memory_space<vmem>>, %arg6: memref<2x1x128xf32, #tpu.memory_space<vmem>>, %arg7: memref<2x1x128xf32, #tpu.memory_space<vmem>>, %arg8: memref<2x1x128xf32, #tpu.memory_space<vmem>>, %arg9: memref<2x128x256xf32, #tpu.memory_space<vmem>>, %arg10: memref<2x1x256xf32, #tpu.memory_space<vmem>>, %arg11: memref<2x256x128xf32, #tpu.memory_space<vmem>>, %arg12: memref<2x1x128xf32, #tpu.memory_space<vmem>>, %arg13: memref<1x128xf32, #tpu.memory_space<vmem>>, %arg14: memref<1x128xf32, #tpu.memory_space<vmem>>, %arg15: memref<16x128xf32, #tpu.memory_space<vmem>>) attributes {dimension_semantics = [], scalar_prefetch = 0 : i64, scratch_operands = 0 : i64, tpu.core_type = #tpu.core_type<tc>} {
    %c0 = arith.constant 0 : index
    %c0_0 = arith.constant 0 : index
    %0 = vector.load %arg0[%c0, %c0_0] : memref<16x128xf32, #tpu.memory_space<vmem>>, vector<16x128xf32>
    %c0_1 = arith.constant 0 : index
    %c0_2 = arith.constant 0 : index
    %c0_3 = arith.constant 0 : index
    %1 = vector.load %arg1[%c0_1, %c0_2, %c0_3] : memref<2x1x128xf32, #tpu.memory_space<vmem>>, vector<1x1x128xf32>
    %2 = vector.shape_cast %1 : vector<1x1x128xf32> to vector<1x128xf32>
    %c0_4 = arith.constant 0 : index
    %c0_5 = arith.constant 0 : index
    %c0_6 = arith.constant 0 : index
    %3 = vector.load %arg2[%c0_4, %c0_5, %c0_6] : memref<2x1x128xf32, #tpu.memory_space<vmem>>, vector<1x1x128xf32>
    %4 = vector.shape_cast %3 : vector<1x1x128xf32> to vector<1x128xf32>
    %cst = arith.constant dense<0.000000e+00> : vector<16xf32>
    %5 = vector.multi_reduction <add>, %0, %cst [1] : vector<16x128xf32> to vector<16xf32>
    %6 = vector.shape_cast %5 : vector<16xf32> to vector<16x1xf32>
    %cst_7 = arith.constant 1.280000e+02 : f32
    %7 = vector.broadcast %cst_7 : f32 to vector<16x1xf32>
    %8 = arith.divf %6, %7 : vector<16x1xf32>
    %9 = vector.broadcast %8 : vector<16x1xf32> to vector<16x128xf32>
    %10 = arith.subf %0, %9 : vector<16x128xf32>
    %11 = arith.mulf %10, %10 : vector<16x128xf32>
    %cst_8 = arith.constant dense<0.000000e+00> : vector<16xf32>
    %12 = vector.multi_reduction <add>, %11, %cst_8 [1] : vector<16x128xf32> to vector<16xf32>
    %13 = vector.shape_cast %12 : vector<16xf32> to vector<16x1xf32>
    %cst_9 = arith.constant 0.00787401571 : f32
    %14 = vector.broadcast %cst_9 : f32 to vector<16x1xf32>
    %15 = arith.mulf %13, %14 : vector<16x1xf32>
    %16 = math.sqrt %15 : vector<16x1xf32>
    %cst_10 = arith.constant 9.99999997E-7 : f32
    %17 = vector.broadcast %cst_10 : f32 to vector<16x1xf32>
    %18 = arith.addf %16, %17 : vector<16x1xf32>
    %cst_11 = arith.constant 1.000000e+00 : f32
    %19 = vector.broadcast %cst_11 : f32 to vector<16x1xf32>
    %20 = arith.divf %19, %18 : vector<16x1xf32>
    %21 = vector.broadcast %20 : vector<16x1xf32> to vector<16x128xf32>
    %22 = arith.mulf %10, %21 : vector<16x128xf32>
    %23 = vector.broadcast %2 : vector<1x128xf32> to vector<16x128xf32>
    %24 = arith.mulf %23, %22 : vector<16x128xf32>
    %25 = vector.broadcast %4 : vector<1x128xf32> to vector<16x128xf32>
    %26 = arith.addf %24, %25 : vector<16x128xf32>
    %c0_12 = arith.constant 0 : index
    %c0_13 = arith.constant 0 : index
    %c0_14 = arith.constant 0 : index
    %27 = vector.load %arg3[%c0_12, %c0_13, %c0_14] : memref<2x128x384xf32, #tpu.memory_space<vmem>>, vector<1x128x384xf32>
    %28 = vector.shape_cast %27 : vector<1x128x384xf32> to vector<128x384xf32>
    %cst_15 = arith.constant dense<0.000000e+00> : vector<16x384xf32>
    %29 = tpu.matmul %26, %28, %cst_15 {dimension_numbers = #tpu.dot_dimension_numbers<[1], [0], [0], [1], [0, 0, 1, 1], [], []>} : vector<16x128xf32>, vector<128x384xf32>, vector<16x384xf32> -> vector<16x384xf32>
    %30 = vector.extract_strided_slice %29 {offsets = [0, 0], sizes = [16, 128], strides = [1, 1]} : vector<16x384xf32> to vector<16x128xf32>
    %c0_16 = arith.constant 0 : index
    %c0_17 = arith.constant 0 : index
    %c0_18 = arith.constant 0 : index
    %31 = vector.load %arg4[%c0_16, %c0_17, %c0_18] : memref<2x1x128xf32, #tpu.memory_space<vmem>>, vector<1x1x128xf32>
    %32 = vector.shape_cast %31 : vector<1x1x128xf32> to vector<1x128xf32>
    %33 = vector.broadcast %32 : vector<1x128xf32> to vector<16x128xf32>
    %34 = arith.addf %30, %33 : vector<16x128xf32>
    %35 = vector.extract_strided_slice %29 {offsets = [0, 128], sizes = [16, 128], strides = [1, 1]} : vector<16x384xf32> to vector<16x128xf32>
    %36 = vector.extract_strided_slice %29 {offsets = [0, 256], sizes = [16, 128], strides = [1, 1]} : vector<16x384xf32> to vector<16x128xf32>
    %37 = vector.extract_strided_slice %34 {offsets = [0, 0], sizes = [16, 32], strides = [1, 1]} : vector<16x128xf32> to vector<16x32xf32>
    %38 = vector.shape_cast %37 : vector<16x32xf32> to vector<2x8x32xf32>
    %39 = vector.extract_strided_slice %35 {offsets = [0, 0], sizes = [16, 32], strides = [1, 1]} : vector<16x128xf32> to vector<16x32xf32>
    %40 = vector.shape_cast %39 : vector<16x32xf32> to vector<2x8x32xf32>
    %41 = vector.extract_strided_slice %36 {offsets = [0, 0], sizes = [16, 32], strides = [1, 1]} : vector<16x128xf32> to vector<16x32xf32>
    %42 = vector.shape_cast %41 : vector<16x32xf32> to vector<2x8x32xf32>
    "tpu.trace_start"() <{level = 10 : i32, message = "ble,bse->bls"}> : () -> ()
    %cst_19 = arith.constant dense<0.000000e+00> : vector<2x8x8xf32>
    %43 = tpu.matmul %38, %40, %cst_19 {dimension_numbers = #tpu.dot_dimension_numbers<[2], [2], [1], [1], [0, 0, 0, 1, 1, 1], [0], [0]>} : vector<2x8x32xf32>, vector<2x8x32xf32>, vector<2x8x8xf32> -> vector<2x8x8xf32>
    "tpu.trace_stop"() : () -> ()
    %cst_20 = arith.constant 0.176776692 : f32
    %44 = vector.broadcast %cst_20 : f32 to vector<2x8x8xf32>
    %45 = arith.mulf %43, %44 : vector<2x8x8xf32>
    %cst_21 = arith.constant dense<0xFF800000> : vector<2x8xf32>
    %46 = vector.multi_reduction <maximumf>, %45, %cst_21 [2] : vector<2x8x8xf32> to vector<2x8xf32>
    %47 = vector.shape_cast %46 : vector<2x8xf32> to vector<2x8x1xf32>
    %48 = vector.broadcast %47 : vector<2x8x1xf32> to vector<2x8x8xf32>
    %49 = arith.subf %45, %48 : vector<2x8x8xf32>
    %50 = math.exp %49 : vector<2x8x8xf32>
    %cst_22 = arith.constant dense<0.000000e+00> : vector<2x8xf32>
    %51 = vector.multi_reduction <add>, %50, %cst_22 [2] : vector<2x8x8xf32> to vector<2x8xf32>
    %52 = vector.shape_cast %51 : vector<2x8xf32> to vector<2x8x1xf32>
    %cst_23 = arith.constant 1.000000e+00 : f32
    %53 = vector.broadcast %cst_23 : f32 to vector<2x8x1xf32>
    %54 = arith.divf %53, %52 : vector<2x8x1xf32>
    %55 = vector.broadcast %54 : vector<2x8x1xf32> to vector<2x8x8xf32>
    %56 = arith.mulf %50, %55 : vector<2x8x8xf32>
    "tpu.trace_start"() <{level = 10 : i32, message = "bls,bse->ble"}> : () -> ()
    %cst_24 = arith.constant dense<0.000000e+00> : vector<2x8x32xf32>
    %57 = tpu.matmul %56, %42, %cst_24 {dimension_numbers = #tpu.dot_dimension_numbers<[2], [1], [1], [2], [0, 0, 0, 1, 1, 2], [0], [0]>} : vector<2x8x8xf32>, vector<2x8x32xf32>, vector<2x8x32xf32> -> vector<2x8x32xf32>
    "tpu.trace_stop"() : () -> ()
    %58 = vector.shape_cast %57 : vector<2x8x32xf32> to vector<16x32xf32>
    %59 = vector.extract_strided_slice %34 {offsets = [0, 32], sizes = [16, 32], strides = [1, 1]} : vector<16x128xf32> to vector<16x32xf32>
    %60 = vector.shape_cast %59 : vector<16x32xf32> to vector<2x8x32xf32>
    %61 = vector.extract_strided_slice %35 {offsets = [0, 32], sizes = [16, 32], strides = [1, 1]} : vector<16x128xf32> to vector<16x32xf32>
    %62 = vector.shape_cast %61 : vector<16x32xf32> to vector<2x8x32xf32>
    %63 = vector.extract_strided_slice %36 {offsets = [0, 32], sizes = [16, 32], strides = [1, 1]} : vector<16x128xf32> to vector<16x32xf32>
    %64 = vector.shape_cast %63 : vector<16x32xf32> to vector<2x8x32xf32>
    "tpu.trace_start"() <{level = 10 : i32, message = "ble,bse->bls"}> : () -> ()
    %cst_25 = arith.constant dense<0.000000e+00> : vector<2x8x8xf32>
    %65 = tpu.matmul %60, %62, %cst_25 {dimension_numbers = #tpu.dot_dimension_numbers<[2], [2], [1], [1], [0, 0, 0, 1, 1, 1], [0], [0]>} : vector<2x8x32xf32>, vector<2x8x32xf32>, vector<2x8x8xf32> -> vector<2x8x8xf32>
    "tpu.trace_stop"() : () -> ()
    %cst_26 = arith.constant 0.176776692 : f32
    %66 = vector.broadcast %cst_26 : f32 to vector<2x8x8xf32>
    %67 = arith.mulf %65, %66 : vector<2x8x8xf32>
    %cst_27 = arith.constant dense<0xFF800000> : vector<2x8xf32>
    %68 = vector.multi_reduction <maximumf>, %67, %cst_27 [2] : vector<2x8x8xf32> to vector<2x8xf32>
    %69 = vector.shape_cast %68 : vector<2x8xf32> to vector<2x8x1xf32>
    %70 = vector.broadcast %69 : vector<2x8x1xf32> to vector<2x8x8xf32>
    %71 = arith.subf %67, %70 : vector<2x8x8xf32>
    %72 = math.exp %71 : vector<2x8x8xf32>
    %cst_28 = arith.constant dense<0.000000e+00> : vector<2x8xf32>
    %73 = vector.multi_reduction <add>, %72, %cst_28 [2] : vector<2x8x8xf32> to vector<2x8xf32>
    %74 = vector.shape_cast %73 : vector<2x8xf32> to vector<2x8x1xf32>
    %cst_29 = arith.constant 1.000000e+00 : f32
    %75 = vector.broadcast %cst_29 : f32 to vector<2x8x1xf32>
    %76 = arith.divf %75, %74 : vector<2x8x1xf32>
    %77 = vector.broadcast %76 : vector<2x8x1xf32> to vector<2x8x8xf32>
    %78 = arith.mulf %72, %77 : vector<2x8x8xf32>
    "tpu.trace_start"() <{level = 10 : i32, message = "bls,bse->ble"}> : () -> ()
    %cst_30 = arith.constant dense<0.000000e+00> : vector<2x8x32xf32>
    %79 = tpu.matmul %78, %64, %cst_30 {dimension_numbers = #tpu.dot_dimension_numbers<[2], [1], [1], [2], [0, 0, 0, 1, 1, 2], [0], [0]>} : vector<2x8x8xf32>, vector<2x8x32xf32>, vector<2x8x32xf32> -> vector<2x8x32xf32>
    "tpu.trace_stop"() : () -> ()
    %80 = vector.shape_cast %79 : vector<2x8x32xf32> to vector<16x32xf32>
    %81 = vector.extract_strided_slice %34 {offsets = [0, 64], sizes = [16, 32], strides = [1, 1]} : vector<16x128xf32> to vector<16x32xf32>
    %82 = vector.shape_cast %81 : vector<16x32xf32> to vector<2x8x32xf32>
    %83 = vector.extract_strided_slice %35 {offsets = [0, 64], sizes = [16, 32], strides = [1, 1]} : vector<16x128xf32> to vector<16x32xf32>
    %84 = vector.shape_cast %83 : vector<16x32xf32> to vector<2x8x32xf32>
    %85 = vector.extract_strided_slice %36 {offsets = [0, 64], sizes = [16, 32], strides = [1, 1]} : vector<16x128xf32> to vector<16x32xf32>
    %86 = vector.shape_cast %85 : vector<16x32xf32> to vector<2x8x32xf32>
    "tpu.trace_start"() <{level = 10 : i32, message = "ble,bse->bls"}> : () -> ()
    %cst_31 = arith.constant dense<0.000000e+00> : vector<2x8x8xf32>
    %87 = tpu.matmul %82, %84, %cst_31 {dimension_numbers = #tpu.dot_dimension_numbers<[2], [2], [1], [1], [0, 0, 0, 1, 1, 1], [0], [0]>} : vector<2x8x32xf32>, vector<2x8x32xf32>, vector<2x8x8xf32> -> vector<2x8x8xf32>
    "tpu.trace_stop"() : () -> ()
    %cst_32 = arith.constant 0.176776692 : f32
    %88 = vector.broadcast %cst_32 : f32 to vector<2x8x8xf32>
    %89 = arith.mulf %87, %88 : vector<2x8x8xf32>
    %cst_33 = arith.constant dense<0xFF800000> : vector<2x8xf32>
    %90 = vector.multi_reduction <maximumf>, %89, %cst_33 [2] : vector<2x8x8xf32> to vector<2x8xf32>
    %91 = vector.shape_cast %90 : vector<2x8xf32> to vector<2x8x1xf32>
    %92 = vector.broadcast %91 : vector<2x8x1xf32> to vector<2x8x8xf32>
    %93 = arith.subf %89, %92 : vector<2x8x8xf32>
    %94 = math.exp %93 : vector<2x8x8xf32>
    %cst_34 = arith.constant dense<0.000000e+00> : vector<2x8xf32>
    %95 = vector.multi_reduction <add>, %94, %cst_34 [2] : vector<2x8x8xf32> to vector<2x8xf32>
    %96 = vector.shape_cast %95 : vector<2x8xf32> to vector<2x8x1xf32>
    %cst_35 = arith.constant 1.000000e+00 : f32
    %97 = vector.broadcast %cst_35 : f32 to vector<2x8x1xf32>
    %98 = arith.divf %97, %96 : vector<2x8x1xf32>
    %99 = vector.broadcast %98 : vector<2x8x1xf32> to vector<2x8x8xf32>
    %100 = arith.mulf %94, %99 : vector<2x8x8xf32>
    "tpu.trace_start"() <{level = 10 : i32, message = "bls,bse->ble"}> : () -> ()
    %cst_36 = arith.constant dense<0.000000e+00> : vector<2x8x32xf32>
    %101 = tpu.matmul %100, %86, %cst_36 {dimension_numbers = #tpu.dot_dimension_numbers<[2], [1], [1], [2], [0, 0, 0, 1, 1, 2], [0], [0]>} : vector<2x8x8xf32>, vector<2x8x32xf32>, vector<2x8x32xf32> -> vector<2x8x32xf32>
    "tpu.trace_stop"() : () -> ()
    %102 = vector.shape_cast %101 : vector<2x8x32xf32> to vector<16x32xf32>
    %103 = vector.extract_strided_slice %34 {offsets = [0, 96], sizes = [16, 32], strides = [1, 1]} : vector<16x128xf32> to vector<16x32xf32>
    %104 = vector.shape_cast %103 : vector<16x32xf32> to vector<2x8x32xf32>
    %105 = vector.extract_strided_slice %35 {offsets = [0, 96], sizes = [16, 32], strides = [1, 1]} : vector<16x128xf32> to vector<16x32xf32>
    %106 = vector.shape_cast %105 : vector<16x32xf32> to vector<2x8x32xf32>
    %107 = vector.extract_strided_slice %36 {offsets = [0, 96], sizes = [16, 32], strides = [1, 1]} : vector<16x128xf32> to vector<16x32xf32>
    %108 = vector.shape_cast %107 : vector<16x32xf32> to vector<2x8x32xf32>
    "tpu.trace_start"() <{level = 10 : i32, message = "ble,bse->bls"}> : () -> ()
    %cst_37 = arith.constant dense<0.000000e+00> : vector<2x8x8xf32>
    %109 = tpu.matmul %104, %106, %cst_37 {dimension_numbers = #tpu.dot_dimension_numbers<[2], [2], [1], [1], [0, 0, 0, 1, 1, 1], [0], [0]>} : vector<2x8x32xf32>, vector<2x8x32xf32>, vector<2x8x8xf32> -> vector<2x8x8xf32>
    "tpu.trace_stop"() : () -> ()
    %cst_38 = arith.constant 0.176776692 : f32
    %110 = vector.broadcast %cst_38 : f32 to vector<2x8x8xf32>
    %111 = arith.mulf %109, %110 : vector<2x8x8xf32>
    %cst_39 = arith.constant dense<0xFF800000> : vector<2x8xf32>
    %112 = vector.multi_reduction <maximumf>, %111, %cst_39 [2] : vector<2x8x8xf32> to vector<2x8xf32>
    %113 = vector.shape_cast %112 : vector<2x8xf32> to vector<2x8x1xf32>
    %114 = vector.broadcast %113 : vector<2x8x1xf32> to vector<2x8x8xf32>
    %115 = arith.subf %111, %114 : vector<2x8x8xf32>
    %116 = math.exp %115 : vector<2x8x8xf32>
    %cst_40 = arith.constant dense<0.000000e+00> : vector<2x8xf32>
    %117 = vector.multi_reduction <add>, %116, %cst_40 [2] : vector<2x8x8xf32> to vector<2x8xf32>
    %118 = vector.shape_cast %117 : vector<2x8xf32> to vector<2x8x1xf32>
    %cst_41 = arith.constant 1.000000e+00 : f32
    %119 = vector.broadcast %cst_41 : f32 to vector<2x8x1xf32>
    %120 = arith.divf %119, %118 : vector<2x8x1xf32>
    %121 = vector.broadcast %120 : vector<2x8x1xf32> to vector<2x8x8xf32>
    %122 = arith.mulf %116, %121 : vector<2x8x8xf32>
    "tpu.trace_start"() <{level = 10 : i32, message = "bls,bse->ble"}> : () -> ()
    %cst_42 = arith.constant dense<0.000000e+00> : vector<2x8x32xf32>
    %123 = tpu.matmul %122, %108, %cst_42 {dimension_numbers = #tpu.dot_dimension_numbers<[2], [1], [1], [2], [0, 0, 0, 1, 1, 2], [0], [0]>} : vector<2x8x8xf32>, vector<2x8x32xf32>, vector<2x8x32xf32> -> vector<2x8x32xf32>
    "tpu.trace_stop"() : () -> ()
    %124 = vector.shape_cast %123 : vector<2x8x32xf32> to vector<16x32xf32>
    %125 = tpu.concatenate %58, %80, %102, %124 in 1 : vector<16x32xf32>, vector<16x32xf32>, vector<16x32xf32>, vector<16x32xf32> -> vector<16x128xf32>
    %c0_43 = arith.constant 0 : index
    %c0_44 = arith.constant 0 : index
    %c0_45 = arith.constant 0 : index
    %126 = vector.load %arg5[%c0_43, %c0_44, %c0_45] : memref<2x128x128xf32, #tpu.memory_space<vmem>>, vector<1x128x128xf32>
    %127 = vector.shape_cast %126 : vector<1x128x128xf32> to vector<128x128xf32>
    %cst_46 = arith.constant dense<0.000000e+00> : vector<16x128xf32>
    %128 = tpu.matmul %125, %127, %cst_46 {dimension_numbers = #tpu.dot_dimension_numbers<[1], [0], [0], [1], [0, 0, 1, 1], [], []>} : vector<16x128xf32>, vector<128x128xf32>, vector<16x128xf32> -> vector<16x128xf32>
    %129 = arith.addf %0, %128 : vector<16x128xf32>
    %c0_47 = arith.constant 0 : index
    %c0_48 = arith.constant 0 : index
    %c0_49 = arith.constant 0 : index
    %130 = vector.load %arg6[%c0_47, %c0_48, %c0_49] : memref<2x1x128xf32, #tpu.memory_space<vmem>>, vector<1x1x128xf32>
    %131 = vector.shape_cast %130 : vector<1x1x128xf32> to vector<1x128xf32>
    %132 = vector.broadcast %131 : vector<1x128xf32> to vector<16x128xf32>
    %133 = arith.addf %129, %132 : vector<16x128xf32>
    %c0_50 = arith.constant 0 : index
    %c0_51 = arith.constant 0 : index
    %c0_52 = arith.constant 0 : index
    %134 = vector.load %arg7[%c0_50, %c0_51, %c0_52] : memref<2x1x128xf32, #tpu.memory_space<vmem>>, vector<1x1x128xf32>
    %135 = vector.shape_cast %134 : vector<1x1x128xf32> to vector<1x128xf32>
    %c0_53 = arith.constant 0 : index
    %c0_54 = arith.constant 0 : index
    %c0_55 = arith.constant 0 : index
    %136 = vector.load %arg8[%c0_53, %c0_54, %c0_55] : memref<2x1x128xf32, #tpu.memory_space<vmem>>, vector<1x1x128xf32>
    %137 = vector.shape_cast %136 : vector<1x1x128xf32> to vector<1x128xf32>
    %cst_56 = arith.constant dense<0.000000e+00> : vector<16xf32>
    %138 = vector.multi_reduction <add>, %133, %cst_56 [1] : vector<16x128xf32> to vector<16xf32>
    %139 = vector.shape_cast %138 : vector<16xf32> to vector<16x1xf32>
    %cst_57 = arith.constant 1.280000e+02 : f32
    %140 = vector.broadcast %cst_57 : f32 to vector<16x1xf32>
    %141 = arith.divf %139, %140 : vector<16x1xf32>
    %142 = vector.broadcast %141 : vector<16x1xf32> to vector<16x128xf32>
    %143 = arith.subf %133, %142 : vector<16x128xf32>
    %144 = arith.mulf %143, %143 : vector<16x128xf32>
    %cst_58 = arith.constant dense<0.000000e+00> : vector<16xf32>
    %145 = vector.multi_reduction <add>, %144, %cst_58 [1] : vector<16x128xf32> to vector<16xf32>
    %146 = vector.shape_cast %145 : vector<16xf32> to vector<16x1xf32>
    %cst_59 = arith.constant 0.00787401571 : f32
    %147 = vector.broadcast %cst_59 : f32 to vector<16x1xf32>
    %148 = arith.mulf %146, %147 : vector<16x1xf32>
    %149 = math.sqrt %148 : vector<16x1xf32>
    %cst_60 = arith.constant 9.99999997E-7 : f32
    %150 = vector.broadcast %cst_60 : f32 to vector<16x1xf32>
    %151 = arith.addf %149, %150 : vector<16x1xf32>
    %cst_61 = arith.constant 1.000000e+00 : f32
    %152 = vector.broadcast %cst_61 : f32 to vector<16x1xf32>
    %153 = arith.divf %152, %151 : vector<16x1xf32>
    %154 = vector.broadcast %153 : vector<16x1xf32> to vector<16x128xf32>
    %155 = arith.mulf %143, %154 : vector<16x128xf32>
    %156 = vector.broadcast %135 : vector<1x128xf32> to vector<16x128xf32>
    %157 = arith.mulf %156, %155 : vector<16x128xf32>
    %158 = vector.broadcast %137 : vector<1x128xf32> to vector<16x128xf32>
    %159 = arith.addf %157, %158 : vector<16x128xf32>
    %c0_62 = arith.constant 0 : index
    %c0_63 = arith.constant 0 : index
    %c0_64 = arith.constant 0 : index
    %160 = vector.load %arg9[%c0_62, %c0_63, %c0_64] : memref<2x128x256xf32, #tpu.memory_space<vmem>>, vector<1x128x256xf32>
    %161 = vector.shape_cast %160 : vector<1x128x256xf32> to vector<128x256xf32>
    %cst_65 = arith.constant dense<0.000000e+00> : vector<16x256xf32>
    %162 = tpu.matmul %159, %161, %cst_65 {dimension_numbers = #tpu.dot_dimension_numbers<[1], [0], [0], [1], [0, 0, 1, 1], [], []>} : vector<16x128xf32>, vector<128x256xf32>, vector<16x256xf32> -> vector<16x256xf32>
    %c0_66 = arith.constant 0 : index
    %c0_67 = arith.constant 0 : index
    %c0_68 = arith.constant 0 : index
    %163 = vector.load %arg10[%c0_66, %c0_67, %c0_68] : memref<2x1x256xf32, #tpu.memory_space<vmem>>, vector<1x1x256xf32>
    %164 = vector.shape_cast %163 : vector<1x1x256xf32> to vector<1x256xf32>
    %165 = vector.broadcast %164 : vector<1x256xf32> to vector<16x256xf32>
    %166 = arith.addf %162, %165 : vector<16x256xf32>
    %cst_69 = arith.constant 0.000000e+00 : f32
    %167 = vector.broadcast %cst_69 : f32 to vector<16x256xf32>
    %168 = arith.maximumf %166, %167 : vector<16x256xf32>
    %c0_70 = arith.constant 0 : index
    %c0_71 = arith.constant 0 : index
    %c0_72 = arith.constant 0 : index
    %169 = vector.load %arg11[%c0_70, %c0_71, %c0_72] : memref<2x256x128xf32, #tpu.memory_space<vmem>>, vector<1x256x128xf32>
    %170 = vector.shape_cast %169 : vector<1x256x128xf32> to vector<256x128xf32>
    %cst_73 = arith.constant dense<0.000000e+00> : vector<16x128xf32>
    %171 = tpu.matmul %168, %170, %cst_73 {dimension_numbers = #tpu.dot_dimension_numbers<[1], [0], [0], [1], [0, 0, 1, 1], [], []>} : vector<16x256xf32>, vector<256x128xf32>, vector<16x128xf32> -> vector<16x128xf32>
    %172 = arith.addf %133, %171 : vector<16x128xf32>
    %c0_74 = arith.constant 0 : index
    %c0_75 = arith.constant 0 : index
    %c0_76 = arith.constant 0 : index
    %173 = vector.load %arg12[%c0_74, %c0_75, %c0_76] : memref<2x1x128xf32, #tpu.memory_space<vmem>>, vector<1x1x128xf32>
    %174 = vector.shape_cast %173 : vector<1x1x128xf32> to vector<1x128xf32>
    %175 = vector.broadcast %174 : vector<1x128xf32> to vector<16x128xf32>
    %176 = arith.addf %172, %175 : vector<16x128xf32>
    %c1 = arith.constant 1 : index
    %c0_77 = arith.constant 0 : index
    %c0_78 = arith.constant 0 : index
    %177 = vector.load %arg1[%c1, %c0_77, %c0_78] : memref<2x1x128xf32, #tpu.memory_space<vmem>>, vector<1x1x128xf32>
    %178 = vector.shape_cast %177 : vector<1x1x128xf32> to vector<1x128xf32>
    %c1_79 = arith.constant 1 : index
    %c0_80 = arith.constant 0 : index
    %c0_81 = arith.constant 0 : index
    %179 = vector.load %arg2[%c1_79, %c0_80, %c0_81] : memref<2x1x128xf32, #tpu.memory_space<vmem>>, vector<1x1x128xf32>
    %180 = vector.shape_cast %179 : vector<1x1x128xf32> to vector<1x128xf32>
    %cst_82 = arith.constant dense<0.000000e+00> : vector<16xf32>
    %181 = vector.multi_reduction <add>, %176, %cst_82 [1] : vector<16x128xf32> to vector<16xf32>
    %182 = vector.shape_cast %181 : vector<16xf32> to vector<16x1xf32>
    %cst_83 = arith.constant 1.280000e+02 : f32
    %183 = vector.broadcast %cst_83 : f32 to vector<16x1xf32>
    %184 = arith.divf %182, %183 : vector<16x1xf32>
    %185 = vector.broadcast %184 : vector<16x1xf32> to vector<16x128xf32>
    %186 = arith.subf %176, %185 : vector<16x128xf32>
    %187 = arith.mulf %186, %186 : vector<16x128xf32>
    %cst_84 = arith.constant dense<0.000000e+00> : vector<16xf32>
    %188 = vector.multi_reduction <add>, %187, %cst_84 [1] : vector<16x128xf32> to vector<16xf32>
    %189 = vector.shape_cast %188 : vector<16xf32> to vector<16x1xf32>
    %cst_85 = arith.constant 0.00787401571 : f32
    %190 = vector.broadcast %cst_85 : f32 to vector<16x1xf32>
    %191 = arith.mulf %189, %190 : vector<16x1xf32>
    %192 = math.sqrt %191 : vector<16x1xf32>
    %cst_86 = arith.constant 9.99999997E-7 : f32
    %193 = vector.broadcast %cst_86 : f32 to vector<16x1xf32>
    %194 = arith.addf %192, %193 : vector<16x1xf32>
    %cst_87 = arith.constant 1.000000e+00 : f32
    %195 = vector.broadcast %cst_87 : f32 to vector<16x1xf32>
    %196 = arith.divf %195, %194 : vector<16x1xf32>
    %197 = vector.broadcast %196 : vector<16x1xf32> to vector<16x128xf32>
    %198 = arith.mulf %186, %197 : vector<16x128xf32>
    %199 = vector.broadcast %178 : vector<1x128xf32> to vector<16x128xf32>
    %200 = arith.mulf %199, %198 : vector<16x128xf32>
    %201 = vector.broadcast %180 : vector<1x128xf32> to vector<16x128xf32>
    %202 = arith.addf %200, %201 : vector<16x128xf32>
    %c1_88 = arith.constant 1 : index
    %c0_89 = arith.constant 0 : index
    %c0_90 = arith.constant 0 : index
    %203 = vector.load %arg3[%c1_88, %c0_89, %c0_90] : memref<2x128x384xf32, #tpu.memory_space<vmem>>, vector<1x128x384xf32>
    %204 = vector.shape_cast %203 : vector<1x128x384xf32> to vector<128x384xf32>
    %cst_91 = arith.constant dense<0.000000e+00> : vector<16x384xf32>
    %205 = tpu.matmul %202, %204, %cst_91 {dimension_numbers = #tpu.dot_dimension_numbers<[1], [0], [0], [1], [0, 0, 1, 1], [], []>} : vector<16x128xf32>, vector<128x384xf32>, vector<16x384xf32> -> vector<16x384xf32>
    %206 = vector.extract_strided_slice %205 {offsets = [0, 0], sizes = [16, 128], strides = [1, 1]} : vector<16x384xf32> to vector<16x128xf32>
    %c1_92 = arith.constant 1 : index
    %c0_93 = arith.constant 0 : index
    %c0_94 = arith.constant 0 : index
    %207 = vector.load %arg4[%c1_92, %c0_93, %c0_94] : memref<2x1x128xf32, #tpu.memory_space<vmem>>, vector<1x1x128xf32>
    %208 = vector.shape_cast %207 : vector<1x1x128xf32> to vector<1x128xf32>
    %209 = vector.broadcast %208 : vector<1x128xf32> to vector<16x128xf32>
    %210 = arith.addf %206, %209 : vector<16x128xf32>
    %211 = vector.extract_strided_slice %205 {offsets = [0, 128], sizes = [16, 128], strides = [1, 1]} : vector<16x384xf32> to vector<16x128xf32>
    %212 = vector.extract_strided_slice %205 {offsets = [0, 256], sizes = [16, 128], strides = [1, 1]} : vector<16x384xf32> to vector<16x128xf32>
    %213 = vector.extract_strided_slice %210 {offsets = [0, 0], sizes = [16, 32], strides = [1, 1]} : vector<16x128xf32> to vector<16x32xf32>
    %214 = vector.shape_cast %213 : vector<16x32xf32> to vector<2x8x32xf32>
    %215 = vector.extract_strided_slice %211 {offsets = [0, 0], sizes = [16, 32], strides = [1, 1]} : vector<16x128xf32> to vector<16x32xf32>
    %216 = vector.shape_cast %215 : vector<16x32xf32> to vector<2x8x32xf32>
    %217 = vector.extract_strided_slice %212 {offsets = [0, 0], sizes = [16, 32], strides = [1, 1]} : vector<16x128xf32> to vector<16x32xf32>
    %218 = vector.shape_cast %217 : vector<16x32xf32> to vector<2x8x32xf32>
    "tpu.trace_start"() <{level = 10 : i32, message = "ble,bse->bls"}> : () -> ()
    %cst_95 = arith.constant dense<0.000000e+00> : vector<2x8x8xf32>
    %219 = tpu.matmul %214, %216, %cst_95 {dimension_numbers = #tpu.dot_dimension_numbers<[2], [2], [1], [1], [0, 0, 0, 1, 1, 1], [0], [0]>} : vector<2x8x32xf32>, vector<2x8x32xf32>, vector<2x8x8xf32> -> vector<2x8x8xf32>
    "tpu.trace_stop"() : () -> ()
    %cst_96 = arith.constant 0.176776692 : f32
    %220 = vector.broadcast %cst_96 : f32 to vector<2x8x8xf32>
    %221 = arith.mulf %219, %220 : vector<2x8x8xf32>
    %cst_97 = arith.constant dense<0xFF800000> : vector<2x8xf32>
    %222 = vector.multi_reduction <maximumf>, %221, %cst_97 [2] : vector<2x8x8xf32> to vector<2x8xf32>
    %223 = vector.shape_cast %222 : vector<2x8xf32> to vector<2x8x1xf32>
    %224 = vector.broadcast %223 : vector<2x8x1xf32> to vector<2x8x8xf32>
    %225 = arith.subf %221, %224 : vector<2x8x8xf32>
    %226 = math.exp %225 : vector<2x8x8xf32>
    %cst_98 = arith.constant dense<0.000000e+00> : vector<2x8xf32>
    %227 = vector.multi_reduction <add>, %226, %cst_98 [2] : vector<2x8x8xf32> to vector<2x8xf32>
    %228 = vector.shape_cast %227 : vector<2x8xf32> to vector<2x8x1xf32>
    %cst_99 = arith.constant 1.000000e+00 : f32
    %229 = vector.broadcast %cst_99 : f32 to vector<2x8x1xf32>
    %230 = arith.divf %229, %228 : vector<2x8x1xf32>
    %231 = vector.broadcast %230 : vector<2x8x1xf32> to vector<2x8x8xf32>
    %232 = arith.mulf %226, %231 : vector<2x8x8xf32>
    "tpu.trace_start"() <{level = 10 : i32, message = "bls,bse->ble"}> : () -> ()
    %cst_100 = arith.constant dense<0.000000e+00> : vector<2x8x32xf32>
    %233 = tpu.matmul %232, %218, %cst_100 {dimension_numbers = #tpu.dot_dimension_numbers<[2], [1], [1], [2], [0, 0, 0, 1, 1, 2], [0], [0]>} : vector<2x8x8xf32>, vector<2x8x32xf32>, vector<2x8x32xf32> -> vector<2x8x32xf32>
    "tpu.trace_stop"() : () -> ()
    %234 = vector.shape_cast %233 : vector<2x8x32xf32> to vector<16x32xf32>
    %235 = vector.extract_strided_slice %210 {offsets = [0, 32], sizes = [16, 32], strides = [1, 1]} : vector<16x128xf32> to vector<16x32xf32>
    %236 = vector.shape_cast %235 : vector<16x32xf32> to vector<2x8x32xf32>
    %237 = vector.extract_strided_slice %211 {offsets = [0, 32], sizes = [16, 32], strides = [1, 1]} : vector<16x128xf32> to vector<16x32xf32>
    %238 = vector.shape_cast %237 : vector<16x32xf32> to vector<2x8x32xf32>
    %239 = vector.extract_strided_slice %212 {offsets = [0, 32], sizes = [16, 32], strides = [1, 1]} : vector<16x128xf32> to vector<16x32xf32>
    %240 = vector.shape_cast %239 : vector<16x32xf32> to vector<2x8x32xf32>
    "tpu.trace_start"() <{level = 10 : i32, message = "ble,bse->bls"}> : () -> ()
    %cst_101 = arith.constant dense<0.000000e+00> : vector<2x8x8xf32>
    %241 = tpu.matmul %236, %238, %cst_101 {dimension_numbers = #tpu.dot_dimension_numbers<[2], [2], [1], [1], [0, 0, 0, 1, 1, 1], [0], [0]>} : vector<2x8x32xf32>, vector<2x8x32xf32>, vector<2x8x8xf32> -> vector<2x8x8xf32>
    "tpu.trace_stop"() : () -> ()
    %cst_102 = arith.constant 0.176776692 : f32
    %242 = vector.broadcast %cst_102 : f32 to vector<2x8x8xf32>
    %243 = arith.mulf %241, %242 : vector<2x8x8xf32>
    %cst_103 = arith.constant dense<0xFF800000> : vector<2x8xf32>
    %244 = vector.multi_reduction <maximumf>, %243, %cst_103 [2] : vector<2x8x8xf32> to vector<2x8xf32>
    %245 = vector.shape_cast %244 : vector<2x8xf32> to vector<2x8x1xf32>
    %246 = vector.broadcast %245 : vector<2x8x1xf32> to vector<2x8x8xf32>
    %247 = arith.subf %243, %246 : vector<2x8x8xf32>
    %248 = math.exp %247 : vector<2x8x8xf32>
    %cst_104 = arith.constant dense<0.000000e+00> : vector<2x8xf32>
    %249 = vector.multi_reduction <add>, %248, %cst_104 [2] : vector<2x8x8xf32> to vector<2x8xf32>
    %250 = vector.shape_cast %249 : vector<2x8xf32> to vector<2x8x1xf32>
    %cst_105 = arith.constant 1.000000e+00 : f32
    %251 = vector.broadcast %cst_105 : f32 to vector<2x8x1xf32>
    %252 = arith.divf %251, %250 : vector<2x8x1xf32>
    %253 = vector.broadcast %252 : vector<2x8x1xf32> to vector<2x8x8xf32>
    %254 = arith.mulf %248, %253 : vector<2x8x8xf32>
    "tpu.trace_start"() <{level = 10 : i32, message = "bls,bse->ble"}> : () -> ()
    %cst_106 = arith.constant dense<0.000000e+00> : vector<2x8x32xf32>
    %255 = tpu.matmul %254, %240, %cst_106 {dimension_numbers = #tpu.dot_dimension_numbers<[2], [1], [1], [2], [0, 0, 0, 1, 1, 2], [0], [0]>} : vector<2x8x8xf32>, vector<2x8x32xf32>, vector<2x8x32xf32> -> vector<2x8x32xf32>
    "tpu.trace_stop"() : () -> ()
    %256 = vector.shape_cast %255 : vector<2x8x32xf32> to vector<16x32xf32>
    %257 = vector.extract_strided_slice %210 {offsets = [0, 64], sizes = [16, 32], strides = [1, 1]} : vector<16x128xf32> to vector<16x32xf32>
    %258 = vector.shape_cast %257 : vector<16x32xf32> to vector<2x8x32xf32>
    %259 = vector.extract_strided_slice %211 {offsets = [0, 64], sizes = [16, 32], strides = [1, 1]} : vector<16x128xf32> to vector<16x32xf32>
    %260 = vector.shape_cast %259 : vector<16x32xf32> to vector<2x8x32xf32>
    %261 = vector.extract_strided_slice %212 {offsets = [0, 64], sizes = [16, 32], strides = [1, 1]} : vector<16x128xf32> to vector<16x32xf32>
    %262 = vector.shape_cast %261 : vector<16x32xf32> to vector<2x8x32xf32>
    "tpu.trace_start"() <{level = 10 : i32, message = "ble,bse->bls"}> : () -> ()
    %cst_107 = arith.constant dense<0.000000e+00> : vector<2x8x8xf32>
    %263 = tpu.matmul %258, %260, %cst_107 {dimension_numbers = #tpu.dot_dimension_numbers<[2], [2], [1], [1], [0, 0, 0, 1, 1, 1], [0], [0]>} : vector<2x8x32xf32>, vector<2x8x32xf32>, vector<2x8x8xf32> -> vector<2x8x8xf32>
    "tpu.trace_stop"() : () -> ()
    %cst_108 = arith.constant 0.176776692 : f32
    %264 = vector.broadcast %cst_108 : f32 to vector<2x8x8xf32>
    %265 = arith.mulf %263, %264 : vector<2x8x8xf32>
    %cst_109 = arith.constant dense<0xFF800000> : vector<2x8xf32>
    %266 = vector.multi_reduction <maximumf>, %265, %cst_109 [2] : vector<2x8x8xf32> to vector<2x8xf32>
    %267 = vector.shape_cast %266 : vector<2x8xf32> to vector<2x8x1xf32>
    %268 = vector.broadcast %267 : vector<2x8x1xf32> to vector<2x8x8xf32>
    %269 = arith.subf %265, %268 : vector<2x8x8xf32>
    %270 = math.exp %269 : vector<2x8x8xf32>
    %cst_110 = arith.constant dense<0.000000e+00> : vector<2x8xf32>
    %271 = vector.multi_reduction <add>, %270, %cst_110 [2] : vector<2x8x8xf32> to vector<2x8xf32>
    %272 = vector.shape_cast %271 : vector<2x8xf32> to vector<2x8x1xf32>
    %cst_111 = arith.constant 1.000000e+00 : f32
    %273 = vector.broadcast %cst_111 : f32 to vector<2x8x1xf32>
    %274 = arith.divf %273, %272 : vector<2x8x1xf32>
    %275 = vector.broadcast %274 : vector<2x8x1xf32> to vector<2x8x8xf32>
    %276 = arith.mulf %270, %275 : vector<2x8x8xf32>
    "tpu.trace_start"() <{level = 10 : i32, message = "bls,bse->ble"}> : () -> ()
    %cst_112 = arith.constant dense<0.000000e+00> : vector<2x8x32xf32>
    %277 = tpu.matmul %276, %262, %cst_112 {dimension_numbers = #tpu.dot_dimension_numbers<[2], [1], [1], [2], [0, 0, 0, 1, 1, 2], [0], [0]>} : vector<2x8x8xf32>, vector<2x8x32xf32>, vector<2x8x32xf32> -> vector<2x8x32xf32>
    "tpu.trace_stop"() : () -> ()
    %278 = vector.shape_cast %277 : vector<2x8x32xf32> to vector<16x32xf32>
    %279 = vector.extract_strided_slice %210 {offsets = [0, 96], sizes = [16, 32], strides = [1, 1]} : vector<16x128xf32> to vector<16x32xf32>
    %280 = vector.shape_cast %279 : vector<16x32xf32> to vector<2x8x32xf32>
    %281 = vector.extract_strided_slice %211 {offsets = [0, 96], sizes = [16, 32], strides = [1, 1]} : vector<16x128xf32> to vector<16x32xf32>
    %282 = vector.shape_cast %281 : vector<16x32xf32> to vector<2x8x32xf32>
    %283 = vector.extract_strided_slice %212 {offsets = [0, 96], sizes = [16, 32], strides = [1, 1]} : vector<16x128xf32> to vector<16x32xf32>
    %284 = vector.shape_cast %283 : vector<16x32xf32> to vector<2x8x32xf32>
    "tpu.trace_start"() <{level = 10 : i32, message = "ble,bse->bls"}> : () -> ()
    %cst_113 = arith.constant dense<0.000000e+00> : vector<2x8x8xf32>
    %285 = tpu.matmul %280, %282, %cst_113 {dimension_numbers = #tpu.dot_dimension_numbers<[2], [2], [1], [1], [0, 0, 0, 1, 1, 1], [0], [0]>} : vector<2x8x32xf32>, vector<2x8x32xf32>, vector<2x8x8xf32> -> vector<2x8x8xf32>
    "tpu.trace_stop"() : () -> ()
    %cst_114 = arith.constant 0.176776692 : f32
    %286 = vector.broadcast %cst_114 : f32 to vector<2x8x8xf32>
    %287 = arith.mulf %285, %286 : vector<2x8x8xf32>
    %cst_115 = arith.constant dense<0xFF800000> : vector<2x8xf32>
    %288 = vector.multi_reduction <maximumf>, %287, %cst_115 [2] : vector<2x8x8xf32> to vector<2x8xf32>
    %289 = vector.shape_cast %288 : vector<2x8xf32> to vector<2x8x1xf32>
    %290 = vector.broadcast %289 : vector<2x8x1xf32> to vector<2x8x8xf32>
    %291 = arith.subf %287, %290 : vector<2x8x8xf32>
    %292 = math.exp %291 : vector<2x8x8xf32>
    %cst_116 = arith.constant dense<0.000000e+00> : vector<2x8xf32>
    %293 = vector.multi_reduction <add>, %292, %cst_116 [2] : vector<2x8x8xf32> to vector<2x8xf32>
    %294 = vector.shape_cast %293 : vector<2x8xf32> to vector<2x8x1xf32>
    %cst_117 = arith.constant 1.000000e+00 : f32
    %295 = vector.broadcast %cst_117 : f32 to vector<2x8x1xf32>
    %296 = arith.divf %295, %294 : vector<2x8x1xf32>
    %297 = vector.broadcast %296 : vector<2x8x1xf32> to vector<2x8x8xf32>
    %298 = arith.mulf %292, %297 : vector<2x8x8xf32>
    "tpu.trace_start"() <{level = 10 : i32, message = "bls,bse->ble"}> : () -> ()
    %cst_118 = arith.constant dense<0.000000e+00> : vector<2x8x32xf32>
    %299 = tpu.matmul %298, %284, %cst_118 {dimension_numbers = #tpu.dot_dimension_numbers<[2], [1], [1], [2], [0, 0, 0, 1, 1, 2], [0], [0]>} : vector<2x8x8xf32>, vector<2x8x32xf32>, vector<2x8x32xf32> -> vector<2x8x32xf32>
    "tpu.trace_stop"() : () -> ()
    %300 = vector.shape_cast %299 : vector<2x8x32xf32> to vector<16x32xf32>
    %301 = tpu.concatenate %234, %256, %278, %300 in 1 : vector<16x32xf32>, vector<16x32xf32>, vector<16x32xf32>, vector<16x32xf32> -> vector<16x128xf32>
    %c1_119 = arith.constant 1 : index
    %c0_120 = arith.constant 0 : index
    %c0_121 = arith.constant 0 : index
    %302 = vector.load %arg5[%c1_119, %c0_120, %c0_121] : memref<2x128x128xf32, #tpu.memory_space<vmem>>, vector<1x128x128xf32>
    %303 = vector.shape_cast %302 : vector<1x128x128xf32> to vector<128x128xf32>
    %cst_122 = arith.constant dense<0.000000e+00> : vector<16x128xf32>
    %304 = tpu.matmul %301, %303, %cst_122 {dimension_numbers = #tpu.dot_dimension_numbers<[1], [0], [0], [1], [0, 0, 1, 1], [], []>} : vector<16x128xf32>, vector<128x128xf32>, vector<16x128xf32> -> vector<16x128xf32>
    %305 = arith.addf %176, %304 : vector<16x128xf32>
    %c1_123 = arith.constant 1 : index
    %c0_124 = arith.constant 0 : index
    %c0_125 = arith.constant 0 : index
    %306 = vector.load %arg6[%c1_123, %c0_124, %c0_125] : memref<2x1x128xf32, #tpu.memory_space<vmem>>, vector<1x1x128xf32>
    %307 = vector.shape_cast %306 : vector<1x1x128xf32> to vector<1x128xf32>
    %308 = vector.broadcast %307 : vector<1x128xf32> to vector<16x128xf32>
    %309 = arith.addf %305, %308 : vector<16x128xf32>
    %c1_126 = arith.constant 1 : index
    %c0_127 = arith.constant 0 : index
    %c0_128 = arith.constant 0 : index
    %310 = vector.load %arg7[%c1_126, %c0_127, %c0_128] : memref<2x1x128xf32, #tpu.memory_space<vmem>>, vector<1x1x128xf32>
    %311 = vector.shape_cast %310 : vector<1x1x128xf32> to vector<1x128xf32>
    %c1_129 = arith.constant 1 : index
    %c0_130 = arith.constant 0 : index
    %c0_131 = arith.constant 0 : index
    %312 = vector.load %arg8[%c1_129, %c0_130, %c0_131] : memref<2x1x128xf32, #tpu.memory_space<vmem>>, vector<1x1x128xf32>
    %313 = vector.shape_cast %312 : vector<1x1x128xf32> to vector<1x128xf32>
    %cst_132 = arith.constant dense<0.000000e+00> : vector<16xf32>
    %314 = vector.multi_reduction <add>, %309, %cst_132 [1] : vector<16x128xf32> to vector<16xf32>
    %315 = vector.shape_cast %314 : vector<16xf32> to vector<16x1xf32>
    %cst_133 = arith.constant 1.280000e+02 : f32
    %316 = vector.broadcast %cst_133 : f32 to vector<16x1xf32>
    %317 = arith.divf %315, %316 : vector<16x1xf32>
    %318 = vector.broadcast %317 : vector<16x1xf32> to vector<16x128xf32>
    %319 = arith.subf %309, %318 : vector<16x128xf32>
    %320 = arith.mulf %319, %319 : vector<16x128xf32>
    %cst_134 = arith.constant dense<0.000000e+00> : vector<16xf32>
    %321 = vector.multi_reduction <add>, %320, %cst_134 [1] : vector<16x128xf32> to vector<16xf32>
    %322 = vector.shape_cast %321 : vector<16xf32> to vector<16x1xf32>
    %cst_135 = arith.constant 0.00787401571 : f32
    %323 = vector.broadcast %cst_135 : f32 to vector<16x1xf32>
    %324 = arith.mulf %322, %323 : vector<16x1xf32>
    %325 = math.sqrt %324 : vector<16x1xf32>
    %cst_136 = arith.constant 9.99999997E-7 : f32
    %326 = vector.broadcast %cst_136 : f32 to vector<16x1xf32>
    %327 = arith.addf %325, %326 : vector<16x1xf32>
    %cst_137 = arith.constant 1.000000e+00 : f32
    %328 = vector.broadcast %cst_137 : f32 to vector<16x1xf32>
    %329 = arith.divf %328, %327 : vector<16x1xf32>
    %330 = vector.broadcast %329 : vector<16x1xf32> to vector<16x128xf32>
    %331 = arith.mulf %319, %330 : vector<16x128xf32>
    %332 = vector.broadcast %311 : vector<1x128xf32> to vector<16x128xf32>
    %333 = arith.mulf %332, %331 : vector<16x128xf32>
    %334 = vector.broadcast %313 : vector<1x128xf32> to vector<16x128xf32>
    %335 = arith.addf %333, %334 : vector<16x128xf32>
    %c1_138 = arith.constant 1 : index
    %c0_139 = arith.constant 0 : index
    %c0_140 = arith.constant 0 : index
    %336 = vector.load %arg9[%c1_138, %c0_139, %c0_140] : memref<2x128x256xf32, #tpu.memory_space<vmem>>, vector<1x128x256xf32>
    %337 = vector.shape_cast %336 : vector<1x128x256xf32> to vector<128x256xf32>
    %cst_141 = arith.constant dense<0.000000e+00> : vector<16x256xf32>
    %338 = tpu.matmul %335, %337, %cst_141 {dimension_numbers = #tpu.dot_dimension_numbers<[1], [0], [0], [1], [0, 0, 1, 1], [], []>} : vector<16x128xf32>, vector<128x256xf32>, vector<16x256xf32> -> vector<16x256xf32>
    %c1_142 = arith.constant 1 : index
    %c0_143 = arith.constant 0 : index
    %c0_144 = arith.constant 0 : index
    %339 = vector.load %arg10[%c1_142, %c0_143, %c0_144] : memref<2x1x256xf32, #tpu.memory_space<vmem>>, vector<1x1x256xf32>
    %340 = vector.shape_cast %339 : vector<1x1x256xf32> to vector<1x256xf32>
    %341 = vector.broadcast %340 : vector<1x256xf32> to vector<16x256xf32>
    %342 = arith.addf %338, %341 : vector<16x256xf32>
    %cst_145 = arith.constant 0.000000e+00 : f32
    %343 = vector.broadcast %cst_145 : f32 to vector<16x256xf32>
    %344 = arith.maximumf %342, %343 : vector<16x256xf32>
    %c1_146 = arith.constant 1 : index
    %c0_147 = arith.constant 0 : index
    %c0_148 = arith.constant 0 : index
    %345 = vector.load %arg11[%c1_146, %c0_147, %c0_148] : memref<2x256x128xf32, #tpu.memory_space<vmem>>, vector<1x256x128xf32>
    %346 = vector.shape_cast %345 : vector<1x256x128xf32> to vector<256x128xf32>
    %cst_149 = arith.constant dense<0.000000e+00> : vector<16x128xf32>
    %347 = tpu.matmul %344, %346, %cst_149 {dimension_numbers = #tpu.dot_dimension_numbers<[1], [0], [0], [1], [0, 0, 1, 1], [], []>} : vector<16x256xf32>, vector<256x128xf32>, vector<16x128xf32> -> vector<16x128xf32>
    %348 = arith.addf %309, %347 : vector<16x128xf32>
    %c1_150 = arith.constant 1 : index
    %c0_151 = arith.constant 0 : index
    %c0_152 = arith.constant 0 : index
    %349 = vector.load %arg12[%c1_150, %c0_151, %c0_152] : memref<2x1x128xf32, #tpu.memory_space<vmem>>, vector<1x1x128xf32>
    %350 = vector.shape_cast %349 : vector<1x1x128xf32> to vector<1x128xf32>
    %351 = vector.broadcast %350 : vector<1x128xf32> to vector<16x128xf32>
    %352 = arith.addf %348, %351 : vector<16x128xf32>
    %c0_153 = arith.constant 0 : index
    %c0_154 = arith.constant 0 : index
    %353 = vector.load %arg13[%c0_153, %c0_154] : memref<1x128xf32, #tpu.memory_space<vmem>>, vector<1x128xf32>
    %c0_155 = arith.constant 0 : index
    %c0_156 = arith.constant 0 : index
    %354 = vector.load %arg14[%c0_155, %c0_156] : memref<1x128xf32, #tpu.memory_space<vmem>>, vector<1x128xf32>
    %cst_157 = arith.constant dense<0.000000e+00> : vector<16xf32>
    %355 = vector.multi_reduction <add>, %352, %cst_157 [1] : vector<16x128xf32> to vector<16xf32>
    %356 = vector.shape_cast %355 : vector<16xf32> to vector<16x1xf32>
    %cst_158 = arith.constant 1.280000e+02 : f32
    %357 = vector.broadcast %cst_158 : f32 to vector<16x1xf32>
    %358 = arith.divf %356, %357 : vector<16x1xf32>
    %359 = vector.broadcast %358 : vector<16x1xf32> to vector<16x128xf32>
    %360 = arith.subf %352, %359 : vector<16x128xf32>
    %361 = arith.mulf %360, %360 : vector<16x128xf32>
    %cst_159 = arith.constant dense<0.000000e+00> : vector<16xf32>
    %362 = vector.multi_reduction <add>, %361, %cst_159 [1] : vector<16x128xf32> to vector<16xf32>
    %363 = vector.shape_cast %362 : vector<16xf32> to vector<16x1xf32>
    %cst_160 = arith.constant 0.00787401571 : f32
    %364 = vector.broadcast %cst_160 : f32 to vector<16x1xf32>
    %365 = arith.mulf %363, %364 : vector<16x1xf32>
    %366 = math.sqrt %365 : vector<16x1xf32>
    %cst_161 = arith.constant 9.99999997E-7 : f32
    %367 = vector.broadcast %cst_161 : f32 to vector<16x1xf32>
    %368 = arith.addf %366, %367 : vector<16x1xf32>
    %cst_162 = arith.constant 1.000000e+00 : f32
    %369 = vector.broadcast %cst_162 : f32 to vector<16x1xf32>
    %370 = arith.divf %369, %368 : vector<16x1xf32>
    %371 = vector.broadcast %370 : vector<16x1xf32> to vector<16x128xf32>
    %372 = arith.mulf %360, %371 : vector<16x128xf32>
    %373 = vector.broadcast %353 : vector<1x128xf32> to vector<16x128xf32>
    %374 = arith.mulf %373, %372 : vector<16x128xf32>
    %375 = vector.broadcast %354 : vector<1x128xf32> to vector<16x128xf32>
    %376 = arith.addf %374, %375 : vector<16x128xf32>
    %c0_163 = arith.constant 0 : index
    %c0_164 = arith.constant 0 : index
    %377 = vector.load %arg15[%c0_163, %c0_164] : memref<16x128xf32, #tpu.memory_space<vmem>>, vector<16x128xf32>
    tpu.vector_store %arg15[%c0_163, %c0_164], %376 {strides = array<i32>} : memref<16x128xf32, #tpu.memory_space<vmem>>, vector<16x128xf32>,
    return
  }
}

</mosaic_0001>

<llo_original>
// kernel: tpu_custom_call.1
$region0: #{tpu_custom_call.1}
  #allocation0 [shape = 'u32[]', space=smem, size = 0x4, offset = 0x4, fixed_abs, tag = 'smem constant byte address 0x4 - core index']
  #allocation1 [shape = 'u32[144,128]{1,0:T(1,128)}', space=vmem, size = 0x12000, scoped, tag = 'internal scratch']
  %s0 = inlined_call_operand.hbm [shape: f32[16,128], index: 0, kind: input, shape index: {}]
  %s1 = inlined_call_operand.hbm [shape: f32[2,1,128], index: 1, kind: input, shape index: {}]
  %s2 = inlined_call_operand.hbm [shape: f32[2,1,128], index: 2, kind: input, shape index: {}]
  %s3 = inlined_call_operand.hbm [shape: f32[2,128,384], index: 3, kind: input, shape index: {}]
  %s4 = inlined_call_operand.hbm [shape: f32[2,1,128], index: 4, kind: input, shape index: {}]
  %s5 = inlined_call_operand.hbm [shape: f32[2,128,128], index: 5, kind: input, shape index: {}]
  %s6 = inlined_call_operand.hbm [shape: f32[2,1,128], index: 6, kind: input, shape index: {}]
  %s7 = inlined_call_operand.hbm [shape: f32[2,1,128], index: 7, kind: input, shape index: {}]
  %s8 = inlined_call_operand.hbm [shape: f32[2,1,128], index: 8, kind: input, shape index: {}]
  %s9 = inlined_call_operand.hbm [shape: f32[2,128,256], index: 9, kind: input, shape index: {}]
  %s10 = inlined_call_operand.hbm [shape: f32[2,1,256], index: 10, kind: input, shape index: {}]
  %s11 = inlined_call_operand.hbm [shape: f32[2,256,128], index: 11, kind: input, shape index: {}]
  %s12 = inlined_call_operand.hbm [shape: f32[2,1,128], index: 12, kind: input, shape index: {}]
  %s13 = inlined_call_operand.hbm [shape: f32[1,128], index: 13, kind: input, shape index: {}]
  %s14 = inlined_call_operand.hbm [shape: f32[1,128], index: 14, kind: input, shape index: {}]
  %s15 = inlined_call_operand.hbm [shape: f32[16,128], index: 15, kind: output, shape index: {}]
  %s16 = sld [smem:[#allocation0]]
  $region130: #{tpu_custom_call.1} parent=0
    _
  %s18 = ssub.s32 1, %s16
  %s19 = scalar_select 0, %s18, %s16
  $region1: #{tpu_custom_call.1} parent=0
    #allocation2 [shape = 'u8[8192]{0}', space=vmem, size = 0x2000, scoped, tag = 'input window, operand 0, single buffered']
    #allocation3 [shape = 's32[1]{0}', space=sflag, size = 0x4, scoped, tag = 'scoped memory for tpu_custom_call.1']
    #allocation4 [shape = 's32[1]{0}', space=sflag, size = 0x4, scoped, tag = 'scoped memory for tpu_custom_call.1']
    #allocation5 [shape = 'u8[1024]{0}', space=vmem, size = 0x400, scoped, tag = 'input window, operand 1, single buffered']
    #allocation6 [shape = 's32[1]{0}', space=sflag, size = 0x4, scoped, tag = 'scoped memory for tpu_custom_call.1']
    #allocation7 [shape = 'u8[1024]{0}', space=vmem, size = 0x400, scoped, tag = 'input window, operand 2, single buffered']
    #allocation8 [shape = 'u8[393216]{0}', space=vmem, size = 0x60000, scoped, tag = 'input window, operand 3, single buffered']
    #allocation9 [shape = 's32[1]{0}', space=sflag, size = 0x4, scoped, tag = 'scoped memory for tpu_custom_call.1']
    #allocation10 [shape = 'u8[1024]{0}', space=vmem, size = 0x400, scoped, tag = 'input window, operand 4, single buffered']
    #allocation11 [shape = 'u8[131072]{0}', space=vmem, size = 0x20000, scoped, tag = 'input window, operand 5, single buffered']
    #allocation12 [shape = 's32[1]{0}', space=sflag, size = 0x4, scoped, tag = 'scoped memory for tpu_custom_call.1']
    #allocation13 [shape = 'u8[1024]{0}', space=vmem, size = 0x400, scoped, tag = 'input window, operand 6, single buffered']
    #allocation14 [shape = 'u8[1024]{0}', space=vmem, size = 0x400, scoped, tag = 'input window, operand 7, single buffered']
    #allocation15 [shape = 's32[1]{0}', space=sflag, size = 0x4, scoped, tag = 'scoped memory for tpu_custom_call.1']
    #allocation16 [shape = 'u8[1024]{0}', space=vmem, size = 0x400, scoped, tag = 'input window, operand 8, single buffered']
    #allocation17 [shape = 'u8[262144]{0}', space=vmem, size = 0x40000, scoped, tag = 'input window, operand 9, single buffered']
    #allocation18 [shape = 's32[1]{0}', space=sflag, size = 0x4, scoped, tag = 'scoped memory for tpu_custom_call.1']
    #allocation19 [shape = 'u8[2048]{0}', space=vmem, size = 0x800, scoped, tag = 'input window, operand 10, single buffered']
    #allocation20 [shape = 'u8[262144]{0}', space=vmem, size = 0x40000, scoped, tag = 'input window, operand 11, single buffered']
    #allocation21 [shape = 's32[1]{0}', space=sflag, size = 0x4, scoped, tag = 'scoped memory for tpu_custom_call.1']
    #allocation22 [shape = 'u8[1024]{0}', space=vmem, size = 0x400, scoped, tag = 'input window, operand 12, single buffered']
    #allocation23 [shape = 'u8[512]{0}', space=vmem, size = 0x400, scoped, tag = 'input window, operand 13, single buffered']
    #allocation24 [shape = 's32[1]{0}', space=sflag, size = 0x4, scoped, tag = 'scoped memory for tpu_custom_call.1']
    #allocation25 [shape = 'u8[512]{0}', space=vmem, size = 0x400, scoped, tag = 'input window, operand 14, single buffered']
    #allocation26 [shape = 'u8[8192]{0}', space=vmem, size = 0x2000, scoped, tag = 'output window, operand 0, single buffered']
    %20 = vsyncpa [#allocation3], 0
    %21 = vsyncpa [#allocation6], 0
    %22 = vsyncpa [#allocation9], 0
    %23 = vsyncpa [#allocation12], 0
    %24 = vsyncpa [#allocation15], 0
    %25 = vsyncpa [#allocation18], 0
    %26 = vsyncpa [#allocation21], 0
    %27 = vsyncpa [#allocation24], 0
    %28 = vsyncpa [#allocation4], 0
    // Predicated region
    $region2: #{tpu_custom_call.1} parent=1 // pred_check
      _
    $region3: #{tpu_custom_call.1} parent=1 // pred_check_branch
      %30 = sbr.rel (0) target = $region5
    $region4: #{tpu_custom_call.1} parent=1 // pred_region
      %s32 = ssub.s32 256, 256
      %33 = vsyncadd [#allocation3], %s32
      %s34 = sshll.u32 [#allocation2], 4
      %s35 = int_to_ptr.vmem [resolvable:$true] %s34
      %40 = dma.hbm_to_vmem [thread:$0]  %s0, 256, %s35, [#allocation3], 128, 128, 8
    $region5: #{tpu_custom_call.1} parent=1 // pred_fallthru
      _
    // Predicated region
    $region6: #{tpu_custom_call.1} parent=1 // pred_check
      _
    $region7: #{tpu_custom_call.1} parent=1 // pred_check_branch
      %42 = sbr.rel (0) target = $region9
    $region8: #{tpu_custom_call.1} parent=1 // pred_region
      %s44 = ssub.s32 32, 32
      %45 = vsyncadd [#allocation6], %s44
      %s46 = sshll.u32 [#allocation5], 4
      %s47 = int_to_ptr.vmem [resolvable:$true] %s46
      %52 = dma.hbm_to_vmem [thread:$0]  %s1, 32, %s47, [#allocation6], 16, 16, 1
    $region9: #{tpu_custom_call.1} parent=1 // pred_fallthru
      _
    // Predicated region
    $region10: #{tpu_custom_call.1} parent=1 // pred_check
      _
    $region11: #{tpu_custom_call.1} parent=1 // pred_check_branch
      %54 = sbr.rel (0) target = $region13
    $region12: #{tpu_custom_call.1} parent=1 // pred_region
      %s56 = ssub.s32 32, 32
      %57 = vsyncadd [#allocation6], %s56
      %s58 = sshll.u32 [#allocation7], 4
      %s59 = int_to_ptr.vmem [resolvable:$true] %s58
      %64 = dma.hbm_to_vmem [thread:$0]  %s2, 32, %s59, [#allocation6], 16, 16, 1
    $region13: #{tpu_custom_call.1} parent=1 // pred_fallthru
      _
    // Predicated region
    $region14: #{tpu_custom_call.1} parent=1 // pred_check
      _
    $region15: #{tpu_custom_call.1} parent=1 // pred_check_branch
      %66 = sbr.rel (0) target = $region17
    $region16: #{tpu_custom_call.1} parent=1 // pred_region
      %s68 = ssub.s32 12288, 12288
      %69 = vsyncadd [#allocation9], %s68
      %s70 = sshll.u32 [#allocation8], 4
      %s71 = int_to_ptr.vmem [resolvable:$true] %s70
      %76 = dma.hbm_to_vmem [thread:$0]  %s3, 12288, %s71, [#allocation9], 384, 384, 24
    $region17: #{tpu_custom_call.1} parent=1 // pred_fallthru
      _
    // Predicated region
    $region18: #{tpu_custom_call.1} parent=1 // pred_check
      _
    $region19: #{tpu_custom_call.1} parent=1 // pred_check_branch
      %78 = sbr.rel (0) target = $region21
    $region20: #{tpu_custom_call.1} parent=1 // pred_region
      %s80 = ssub.s32 32, 32
      %81 = vsyncadd [#allocation9], %s80
      %s82 = sshll.u32 [#allocation10], 4
      %s83 = int_to_ptr.vmem [resolvable:$true] %s82
      %88 = dma.hbm_to_vmem [thread:$0]  %s4, 32, %s83, [#allocation9], 16, 16, 1
    $region21: #{tpu_custom_call.1} parent=1 // pred_fallthru
      _
    // Predicated region
    $region22: #{tpu_custom_call.1} parent=1 // pred_check
      _
    $region23: #{tpu_custom_call.1} parent=1 // pred_check_branch
      %90 = sbr.rel (0) target = $region25
    $region24: #{tpu_custom_call.1} parent=1 // pred_region
      %s92 = ssub.s32 4096, 4096
      %93 = vsyncadd [#allocation12], %s92
      %s94 = sshll.u32 [#allocation11], 4
      %s95 = int_to_ptr.vmem [resolvable:$true] %s94
      %100 = dma.hbm_to_vmem [thread:$0]  %s5, 4096, %s95, [#allocation12], 128, 128, 8
    $region25: #{tpu_custom_call.1} parent=1 // pred_fallthru
      _
    // Predicated region
    $region26: #{tpu_custom_call.1} parent=1 // pred_check
      _
    $region27: #{tpu_custom_call.1} parent=1 // pred_check_branch
      %102 = sbr.rel (0) target = $region29
    $region28: #{tpu_custom_call.1} parent=1 // pred_region
      %s104 = ssub.s32 32, 32
      %105 = vsyncadd [#allocation12], %s104
      %s106 = sshll.u32 [#allocation13], 4
      %s107 = int_to_ptr.vmem [resolvable:$true] %s106
      %112 = dma.hbm_to_vmem [thread:$0]  %s6, 32, %s107, [#allocation12], 16, 16, 1
    $region29: #{tpu_custom_call.1} parent=1 // pred_fallthru
      _
    // Predicated region
    $region30: #{tpu_custom_call.1} parent=1 // pred_check
      _
    $region31: #{tpu_custom_call.1} parent=1 // pred_check_branch
      %114 = sbr.rel (0) target = $region33
    $region32: #{tpu_custom_call.1} parent=1 // pred_region
      %s116 = ssub.s32 32, 32
      %117 = vsyncadd [#allocation15], %s116
      %s118 = sshll.u32 [#allocation14], 4
      %s119 = int_to_ptr.vmem [resolvable:$true] %s118
      %124 = dma.hbm_to_vmem [thread:$0]  %s7, 32, %s119, [#allocation15], 16, 16, 1
    $region33: #{tpu_custom_call.1} parent=1 // pred_fallthru
      _
    // Predicated region
    $region34: #{tpu_custom_call.1} parent=1 // pred_check
      _
    $region35: #{tpu_custom_call.1} parent=1 // pred_check_branch
      %126 = sbr.rel (0) target = $region37
    $region36: #{tpu_custom_call.1} parent=1 // pred_region
      %s128 = ssub.s32 32, 32
      %129 = vsyncadd [#allocation15], %s128
      %s130 = sshll.u32 [#allocation16], 4
      %s131 = int_to_ptr.vmem [resolvable:$true] %s130
      %136 = dma.hbm_to_vmem [thread:$0]  %s8, 32, %s131, [#allocation15], 16, 16, 1
    $region37: #{tpu_custom_call.1} parent=1 // pred_fallthru
      _
    // Predicated region
    $region38: #{tpu_custom_call.1} parent=1 // pred_check
      _
    $region39: #{tpu_custom_call.1} parent=1 // pred_check_branch
      %138 = sbr.rel (0) target = $region41
    $region40: #{tpu_custom_call.1} parent=1 // pred_region
      %s140 = ssub.s32 8192, 8192
      %141 = vsyncadd [#allocation18], %s140
      %s142 = sshll.u32 [#allocation17], 4
      %s143 = int_to_ptr.vmem [resolvable:$true] %s142
      %148 = dma.hbm_to_vmem [thread:$0]  %s9, 8192, %s143, [#allocation18], 256, 256, 16
    $region41: #{tpu_custom_call.1} parent=1 // pred_fallthru
      _
    // Predicated region
    $region42: #{tpu_custom_call.1} parent=1 // pred_check
      _
    $region43: #{tpu_custom_call.1} parent=1 // pred_check_branch
      %150 = sbr.rel (0) target = $region45
    $region44: #{tpu_custom_call.1} parent=1 // pred_region
      %s152 = ssub.s32 64, 64
      %153 = vsyncadd [#allocation18], %s152
      %s154 = sshll.u32 [#allocation19], 4
      %s155 = int_to_ptr.vmem [resolvable:$true] %s154
      %160 = dma.hbm_to_vmem [thread:$0]  %s10, 64, %s155, [#allocation18], 32, 32, 2
    $region45: #{tpu_custom_call.1} parent=1 // pred_fallthru
      _
    // Predicated region
    $region46: #{tpu_custom_call.1} parent=1 // pred_check
      _
    $region47: #{tpu_custom_call.1} parent=1 // pred_check_branch
      %162 = sbr.rel (0) target = $region49
    $region48: #{tpu_custom_call.1} parent=1 // pred_region
      %s164 = ssub.s32 8192, 8192
      %165 = vsyncadd [#allocation21], %s164
      %s166 = sshll.u32 [#allocation20], 4
      %s167 = int_to_ptr.vmem [resolvable:$true] %s166
      %172 = dma.hbm_to_vmem [thread:$0]  %s11, 8192, %s167, [#allocation21], 128, 128, 8
    $region49: #{tpu_custom_call.1} parent=1 // pred_fallthru
      _
    // Predicated region
    $region50: #{tpu_custom_call.1} parent=1 // pred_check
      _
    $region51: #{tpu_custom_call.1} parent=1 // pred_check_branch
      %174 = sbr.rel (0) target = $region53
    $region52: #{tpu_custom_call.1} parent=1 // pred_region
      %s176 = ssub.s32 32, 32
      %177 = vsyncadd [#allocation21], %s176
      %s178 = sshll.u32 [#allocation22], 4
      %s179 = int_to_ptr.vmem [resolvable:$true] %s178
      %184 = dma.hbm_to_vmem [thread:$0]  %s12, 32, %s179, [#allocation21], 16, 16, 1
    $region53: #{tpu_custom_call.1} parent=1 // pred_fallthru
      _
    // Predicated region
    $region54: #{tpu_custom_call.1} parent=1 // pred_check
      _
    $region55: #{tpu_custom_call.1} parent=1 // pred_check_branch
      %186 = sbr.rel (0) target = $region57
    $region56: #{tpu_custom_call.1} parent=1 // pred_region
      %s188 = ssub.s32 16, 16
      %189 = vsyncadd [#allocation24], %s188
      %s191 = sshll.u32 [#allocation23], 4
      %s192 = int_to_ptr.vmem [resolvable:$true] %s191
      %194 = dma.hbm_to_vmem [thread:$0]  %s13, 16, %s192, [#allocation24]
    $region57: #{tpu_custom_call.1} parent=1 // pred_fallthru
      _
    // Predicated region
    $region58: #{tpu_custom_call.1} parent=1 // pred_check
      _
    $region59: #{tpu_custom_call.1} parent=1 // pred_check_branch
      %196 = sbr.rel (0) target = $region61
    $region60: #{tpu_custom_call.1} parent=1 // pred_region
      %s198 = ssub.s32 16, 16
      %199 = vsyncadd [#allocation24], %s198
      %s201 = sshll.u32 [#allocation25], 4
      %s202 = int_to_ptr.vmem [resolvable:$true] %s201
      %204 = dma.hbm_to_vmem [thread:$0]  %s14, 16, %s202, [#allocation24]
    $region61: #{tpu_custom_call.1} parent=1 // pred_fallthru
      _
    // Predicated region
    $region62: #{tpu_custom_call.1} parent=1 // pred_check
      _
    $region63: #{tpu_custom_call.1} parent=1 // pred_check_branch
      %206 = sbr.rel (0) target = $region65
    $region64: #{tpu_custom_call.1} parent=1 // pred_region
      %207 = dma.done [#allocation3], 256
    $region65: #{tpu_custom_call.1} parent=1 // pred_fallthru
      _
    // Predicated region
    $region66: #{tpu_custom_call.1} parent=1 // pred_check
      _
    $region67: #{tpu_custom_call.1} parent=1 // pred_check_branch
      %209 = sbr.rel (0) target = $region69
    $region68: #{tpu_custom_call.1} parent=1 // pred_region
      %210 = dma.done [#allocation6], 32
    $region69: #{tpu_custom_call.1} parent=1 // pred_fallthru
      _
    // Predicated region
    $region70: #{tpu_custom_call.1} parent=1 // pred_check
      _
    $region71: #{tpu_custom_call.1} parent=1 // pred_check_branch
      %212 = sbr.rel (0) target = $region73
    $region72: #{tpu_custom_call.1} parent=1 // pred_region
      %213 = dma.done [#allocation6], 32
    $region73: #{tpu_custom_call.1} parent=1 // pred_fallthru
      _
    // Predicated region
    $region74: #{tpu_custom_call.1} parent=1 // pred_check
      _
    $region75: #{tpu_custom_call.1} parent=1 // pred_check_branch
      %215 = sbr.rel (0) target = $region77
    $region76: #{tpu_custom_call.1} parent=1 // pred_region
      %216 = dma.done [#allocation9], 12288
    $region77: #{tpu_custom_call.1} parent=1 // pred_fallthru
      _
    // Predicated region
    $region78: #{tpu_custom_call.1} parent=1 // pred_check
      _
    $region79: #{tpu_custom_call.1} parent=1 // pred_check_branch
      %218 = sbr.rel (0) target = $region81
    $region80: #{tpu_custom_call.1} parent=1 // pred_region
      %219 = dma.done [#allocation9], 32
    $region81: #{tpu_custom_call.1} parent=1 // pred_fallthru
      _
    // Predicated region
    $region82: #{tpu_custom_call.1} parent=1 // pred_check
      _
    $region83: #{tpu_custom_call.1} parent=1 // pred_check_branch
      %221 = sbr.rel (0) target = $region85
    $region84: #{tpu_custom_call.1} parent=1 // pred_region
      %222 = dma.done [#allocation12], 4096
    $region85: #{tpu_custom_call.1} parent=1 // pred_fallthru
      _
    // Predicated region
    $region86: #{tpu_custom_call.1} parent=1 // pred_check
      _
    $region87: #{tpu_custom_call.1} parent=1 // pred_check_branch
      %224 = sbr.rel (0) target = $region89
    $region88: #{tpu_custom_call.1} parent=1 // pred_region
      %225 = dma.done [#allocation12], 32
    $region89: #{tpu_custom_call.1} parent=1 // pred_fallthru
      _
    // Predicated region
    $region90: #{tpu_custom_call.1} parent=1 // pred_check
      _
    $region91: #{tpu_custom_call.1} parent=1 // pred_check_branch
      %227 = sbr.rel (0) target = $region93
    $region92: #{tpu_custom_call.1} parent=1 // pred_region
      %228 = dma.done [#allocation15], 32
    $region93: #{tpu_custom_call.1} parent=1 // pred_fallthru
      _
    // Predicated region
    $region94: #{tpu_custom_call.1} parent=1 // pred_check
      _
    $region95: #{tpu_custom_call.1} parent=1 // pred_check_branch
      %230 = sbr.rel (0) target = $region97
    $region96: #{tpu_custom_call.1} parent=1 // pred_region
      %231 = dma.done [#allocation15], 32
    $region97: #{tpu_custom_call.1} parent=1 // pred_fallthru
      _
    // Predicated region
    $region98: #{tpu_custom_call.1} parent=1 // pred_check
      _
    $region99: #{tpu_custom_call.1} parent=1 // pred_check_branch
      %233 = sbr.rel (0) target = $region101
    $region100: #{tpu_custom_call.1} parent=1 // pred_region
      %234 = dma.done [#allocation18], 8192
    $region101: #{tpu_custom_call.1} parent=1 // pred_fallthru
      _
    // Predicated region
    $region102: #{tpu_custom_call.1} parent=1 // pred_check
      _
    $region103: #{tpu_custom_call.1} parent=1 // pred_check_branch
      %236 = sbr.rel (0) target = $region105
    $region104: #{tpu_custom_call.1} parent=1 // pred_region
      %237 = dma.done [#allocation18], 64
    $region105: #{tpu_custom_call.1} parent=1 // pred_fallthru
      _
    // Predicated region
    $region106: #{tpu_custom_call.1} parent=1 // pred_check
      _
    $region107: #{tpu_custom_call.1} parent=1 // pred_check_branch
      %239 = sbr.rel (0) target = $region109
    $region108: #{tpu_custom_call.1} parent=1 // pred_region
      %240 = dma.done [#allocation21], 8192
    $region109: #{tpu_custom_call.1} parent=1 // pred_fallthru
      _
    // Predicated region
    $region110: #{tpu_custom_call.1} parent=1 // pred_check
      _
    $region111: #{tpu_custom_call.1} parent=1 // pred_check_branch
      %242 = sbr.rel (0) target = $region113
    $region112: #{tpu_custom_call.1} parent=1 // pred_region
      %243 = dma.done [#allocation21], 32
    $region113: #{tpu_custom_call.1} parent=1 // pred_fallthru
      _
    // Predicated region
    $region114: #{tpu_custom_call.1} parent=1 // pred_check
      _
    $region115: #{tpu_custom_call.1} parent=1 // pred_check_branch
      %245 = sbr.rel (0) target = $region117
    $region116: #{tpu_custom_call.1} parent=1 // pred_region
      %246 = dma.done [#allocation24], 16
    $region117: #{tpu_custom_call.1} parent=1 // pred_fallthru
      _
    // Predicated region
    $region118: #{tpu_custom_call.1} parent=1 // pred_check
      _
    $region119: #{tpu_custom_call.1} parent=1 // pred_check_branch
      %248 = sbr.rel (0) target = $region121
    $region120: #{tpu_custom_call.1} parent=1 // pred_region
      %249 = dma.done [#allocation24], 16
    $region121: #{tpu_custom_call.1} parent=1 // pred_fallthru
      _
    %v250 = vld [vmem:[#allocation2] sm:$0xff]
    %v251 = vld [vmem:[#allocation2 + $0x8] sm:$0xff]
    %v252 = vld [vmem:[#allocation5] sm:$0x1]
    %v253 = vld [vmem:[#allocation7] sm:$0x1]
    %254 = vadd.xlane.f32.xlu0 %v250
    %v255 = vpop.xlane.xlu0 %254
    %256 = vadd.xlane.f32.xlu0 %v251
    %v257 = vpop.xlane.xlu0 %256
    %v258 = vrcp.pop 128.0
    %v259 = vmul.f32 %v255, %v258
    %v260 = vmul.f32 %v257, %v258
    %v261 = vsub.f32 %v250, %v259
    %v262 = vsub.f32 %v251, %v260
    %v263 = vmul.f32 %v261, %v261
    %v264 = vmul.f32 %v262, %v262
    %265 = vadd.xlane.f32.xlu0 %v263
    %v266 = vpop.xlane.xlu0 %265
    %267 = vadd.xlane.f32.xlu0 %v264
    %v268 = vpop.xlane.xlu0 %267
    %v269 = vmul.f32 %v266, 0.007874016
    %v270 = vmul.f32 %v268, 0.007874016
    %v271 = vrsqrt.pop %v269
    %v272 = vmul.f32 %v269, %v271
    %vm273 = vcmp.eq.f32.partialorder %v269, inf
    %v274 = vsel %vm273, %v269, %v272
    %vm275 = vcmp.eq.f32.partialorder %v269, 0.0
    %v276 = vand.u32 %v269, 2147483648
    %v277 = vsel %vm275, %v276, %v274
    %v278 = vrsqrt.pop %v270
    %v279 = vmul.f32 %v270, %v278
    %vm280 = vcmp.eq.f32.partialorder %v270, inf
    %v281 = vsel %vm280, %v270, %v279
    %vm282 = vcmp.eq.f32.partialorder %v270, 0.0
    %v283 = vand.u32 %v270, 2147483648
    %v284 = vsel %vm282, %v283, %v281
    %v285 = vadd.f32 %v277, 1e-06
    %v286 = vadd.f32 %v284, 1e-06
    %v287 = vrcp.pop %v285
    %v288 = vmul.f32 1.0, %v287
    %v289 = vrcp.pop %v286
    %v290 = vmul.f32 1.0, %v289
    %v291 = vmul.f32 %v261, %v288
    %v292 = vmul.f32 %v262, %v290
    %v294 = vlaneseq
    %v295 = vshrl.u32 %v294, 7
    %v296 = vsub.s32 0, %v295
    %v297 = vrot.slane %v252, %v296
    %v299 = vmul.f32 %v297, %v291
    %v300 = vmul.f32 %v297, %v292
    %v302 = vlaneseq
    %v303 = vshrl.u32 %v302, 7
    %v304 = vsub.s32 0, %v303
    %v305 = vrot.slane %v253, %v304
    %v307 = vadd.f32 %v299, %v305
    %v308 = vadd.f32 %v300, %v305
    %v309 = vld [vmem:[#allocation8] sm:$0xff]
    %v310 = vld [vmem:[#allocation8 + $0x8] sm:$0xff]
    %v311 = vld [vmem:[#allocation8 + $0x10] sm:$0xff]
    %v312 = vld [vmem:[#allocation8 + $0x18] sm:$0xff]
    %v313 = vld [vmem:[#allocation8 + $0x20] sm:$0xff]
    %v314 = vld [vmem:[#allocation8 + $0x28] sm:$0xff]
    %v315 = vld [vmem:[#allocation8 + $0x30] sm:$0xff]
    %v316 = vld [vmem:[#allocation8 + $0x38] sm:$0xff]
    %v317 = vld [vmem:[#allocation8 + $0x40] sm:$0xff]
    %v318 = vld [vmem:[#allocation8 + $0x48] sm:$0xff]
    %v319 = vld [vmem:[#allocation8 + $0x50] sm:$0xff]
    %v320 = vld [vmem:[#allocation8 + $0x58] sm:$0xff]
    %v321 = vld [vmem:[#allocation8 + $0x60] sm:$0xff]
    %v322 = vld [vmem:[#allocation8 + $0x68] sm:$0xff]
    %v323 = vld [vmem:[#allocation8 + $0x70] sm:$0xff]
    %v324 = vld [vmem:[#allocation8 + $0x78] sm:$0xff]
    %v325 = vld [vmem:[#allocation8 + $0x80] sm:$0xff]
    %v326 = vld [vmem:[#allocation8 + $0x88] sm:$0xff]
    %v327 = vld [vmem:[#allocation8 + $0x90] sm:$0xff]
    %v328 = vld [vmem:[#allocation8 + $0x98] sm:$0xff]
    %v329 = vld [vmem:[#allocation8 + $0xa0] sm:$0xff]
    %v330 = vld [vmem:[#allocation8 + $0xa8] sm:$0xff]
    %v331 = vld [vmem:[#allocation8 + $0xb0] sm:$0xff]
    %v332 = vld [vmem:[#allocation8 + $0xb8] sm:$0xff]
    %v333 = vld [vmem:[#allocation8 + $0xc0] sm:$0xff]
    %v334 = vld [vmem:[#allocation8 + $0xc8] sm:$0xff]
    %v335 = vld [vmem:[#allocation8 + $0xd0] sm:$0xff]
    %v336 = vld [vmem:[#allocation8 + $0xd8] sm:$0xff]
    %v337 = vld [vmem:[#allocation8 + $0xe0] sm:$0xff]
    %v338 = vld [vmem:[#allocation8 + $0xe8] sm:$0xff]
    %v339 = vld [vmem:[#allocation8 + $0xf0] sm:$0xff]
    %v340 = vld [vmem:[#allocation8 + $0xf8] sm:$0xff]
    %v341 = vld [vmem:[#allocation8 + $0x100] sm:$0xff]
    %v342 = vld [vmem:[#allocation8 + $0x108] sm:$0xff]
    %v343 = vld [vmem:[#allocation8 + $0x110] sm:$0xff]
    %v344 = vld [vmem:[#allocation8 + $0x118] sm:$0xff]
    %v345 = vld [vmem:[#allocation8 + $0x120] sm:$0xff]
    %v346 = vld [vmem:[#allocation8 + $0x128] sm:$0xff]
    %v347 = vld [vmem:[#allocation8 + $0x130] sm:$0xff]
    %v348 = vld [vmem:[#allocation8 + $0x138] sm:$0xff]
    %v349 = vld [vmem:[#allocation8 + $0x140] sm:$0xff]
    %v350 = vld [vmem:[#allocation8 + $0x148] sm:$0xff]
    %v351 = vld [vmem:[#allocation8 + $0x150] sm:$0xff]
    %v352 = vld [vmem:[#allocation8 + $0x158] sm:$0xff]
    %v353 = vld [vmem:[#allocation8 + $0x160] sm:$0xff]
    %v354 = vld [vmem:[#allocation8 + $0x168] sm:$0xff]
    %v355 = vld [vmem:[#allocation8 + $0x170] sm:$0xff]
    %v356 = vld [vmem:[#allocation8 + $0x178] sm:$0xff]
    %357 = vmatprep.subr.mxu0 %v310
    %358 = vmatpush1.msra.mxu0 %v309
    %359 = vmatprep.subr.mxu0 %v313
    %360 = vmatpush1.msra.mxu0 %v312
    %361 = vmatprep.subr.mxu0 %v316
    %362 = vmatpush1.msra.mxu0 %v315
    %363 = vmatprep.subr.mxu0 %v319
    %364 = vmatpush1.msra.mxu0 %v318
    %365 = vmatprep.subr.mxu0 %v322
    %366 = vmatpush1.msra.mxu0 %v321
    %367 = vmatprep.subr.mxu0 %v325
    %368 = vmatpush1.msra.mxu0 %v324
    %369 = vmatprep.subr.mxu0 %v328
    %370 = vmatpush1.msra.mxu0 %v327
    %371 = vmatprep.subr.mxu0 %v331
    %372 = vmatpush1.msra.mxu0 %v330
    %373 = vmatprep.subr.mxu0 %v334
    %374 = vmatpush1.msra.mxu0 %v333
    %375 = vmatprep.subr.mxu0 %v337
    %376 = vmatpush1.msra.mxu0 %v336
    %377 = vmatprep.subr.mxu0 %v340
    %378 = vmatpush1.msra.mxu0 %v339
    %379 = vmatprep.subr.mxu0 %v343
    %380 = vmatpush1.msra.mxu0 %v342
    %381 = vmatprep.subr.mxu0 %v346
    %382 = vmatpush1.msra.mxu0 %v345
    %383 = vmatprep.subr.mxu0 %v349
    %384 = vmatpush1.msra.mxu0 %v348
    %385 = vmatprep.subr.mxu0 %v352
    %386 = vmatpush1.msra.mxu0 %v351
    %387 = vmatprep.subr.mxu0 %v355
    %388 = vmatpush1.msra.mxu0 %v354
    %389 = vmatprep.subr.mxu0 0.0
    %390 = vmatpush1.msra.mxu0 0.0
    %391 = vmatprep.subr.mxu0 0.0
    %392 = vmatpush1.msra.mxu0 0.0
    %393 = vmatprep.subr.mxu0 0.0
    %394 = vmatpush1.msra.mxu0 0.0
    %395 = vmatprep.subr.mxu0 0.0
    %396 = vmatpush1.msra.mxu0 0.0
    %397 = vmatprep.subr.mxu0 0.0
    %398 = vmatpush1.msra.mxu0 0.0
    %399 = vmatprep.subr.mxu0 0.0
    %400 = vmatpush1.msra.mxu0 0.0
    %401 = vmatprep.subr.mxu0 0.0
    %402 = vmatpush1.msra.mxu0 0.0
    %403 = vmatprep.subr.mxu0 0.0
    %404 = vmatpush1.msra.mxu0 0.0
    %405 = vmatprep.subr.mxu0 0.0
    %406 = vmatpush1.msra.mxu0 0.0
    %407 = vmatprep.subr.mxu0 0.0
    %408 = vmatpush1.msra.mxu0 0.0
    %409 = vmatprep.subr.mxu0 0.0
    %410 = vmatpush1.msra.mxu0 0.0
    %411 = vmatprep.subr.mxu0 0.0
    %412 = vmatpush1.msra.mxu0 0.0
    %413 = vmatprep.subr.mxu0 0.0
    %414 = vmatpush1.msra.mxu0 0.0
    %415 = vmatprep.subr.mxu0 0.0
    %416 = vmatpush1.msra.mxu0 0.0
    %417 = vmatprep.subr.mxu0 0.0
    %418 = vmatpush1.msra.mxu0 0.0
    %419 = vmatprep.subr.mxu0 0.0
    %420 = vmatpush1.msra.mxu0 0.0
    %421 = vmatprep.mubr.f32.mxu0 0.0
    %422 = vmatmul.mubr.f32.gmra.mrb[0].mxu0 %v307
    %v423 = vpop.f32.mrb[0].mxu0
    %v424 = vadd.f32 0.0, %v423
    %v425 = vpop.f32.mrb[0].mxu0
    %v426 = vadd.f32 0.0, %v425
    %427 = vmatprep.mubr.f32.mxu0 0.0
    %428 = vmatmul.mubr.f32.gmra.mrb[0].mxu0 %v308
    %v429 = vpop.f32.mrb[0].mxu0
    %v430 = vadd.f32 0.0, %v429
    %v431 = vpop.f32.mrb[0].mxu0
    %v432 = vadd.f32 0.0, %v431
    %433 = vdwg.mxu0
    %434 = vmatprep.subr.mxu0 0.0
    %435 = vmatpush1.msra.mxu0 %v311
    %436 = vmatprep.subr.mxu0 0.0
    %437 = vmatpush1.msra.mxu0 %v314
    %438 = vmatprep.subr.mxu0 0.0
    %439 = vmatpush1.msra.mxu0 %v317
    %440 = vmatprep.subr.mxu0 0.0
    %441 = vmatpush1.msra.mxu0 %v320
    %442 = vmatprep.subr.mxu0 0.0
    %443 = vmatpush1.msra.mxu0 %v323
    %444 = vmatprep.subr.mxu0 0.0
    %445 = vmatpush1.msra.mxu0 %v326
    %446 = vmatprep.subr.mxu0 0.0
    %447 = vmatpush1.msra.mxu0 %v329
    %448 = vmatprep.subr.mxu0 0.0
    %449 = vmatpush1.msra.mxu0 %v332
    %450 = vmatprep.subr.mxu0 0.0
    %451 = vmatpush1.msra.mxu0 %v335
    %452 = vmatprep.subr.mxu0 0.0
    %453 = vmatpush1.msra.mxu0 %v338
    %454 = vmatprep.subr.mxu0 0.0
    %455 = vmatpush1.msra.mxu0 %v341
    %456 = vmatprep.subr.mxu0 0.0
    %457 = vmatpush1.msra.mxu0 %v344
    %458 = vmatprep.subr.mxu0 0.0
    %459 = vmatpush1.msra.mxu0 %v347
    %460 = vmatprep.subr.mxu0 0.0
    %461 = vmatpush1.msra.mxu0 %v350
    %462 = vmatprep.subr.mxu0 0.0
    %463 = vmatpush1.msra.mxu0 %v353
    %464 = vmatprep.subr.mxu0 0.0
    %465 = vmatpush1.msra.mxu0 %v356
    %466 = vmatprep.subr.mxu0 0.0
    %467 = vmatpush1.msra.mxu0 0.0
    %468 = vmatprep.subr.mxu0 0.0
    %469 = vmatpush1.msra.mxu0 0.0
    %470 = vmatprep.subr.mxu0 0.0
    %471 = vmatpush1.msra.mxu0 0.0
    %472 = vmatprep.subr.mxu0 0.0
    %473 = vmatpush1.msra.mxu0 0.0
    %474 = vmatprep.subr.mxu0 0.0
    %475 = vmatpush1.msra.mxu0 0.0
    %476 = vmatprep.subr.mxu0 0.0
    %477 = vmatpush1.msra.mxu0 0.0
    %478 = vmatprep.subr.mxu0 0.0
    %479 = vmatpush1.msra.mxu0 0.0
    %480 = vmatprep.subr.mxu0 0.0
    %481 = vmatpush1.msra.mxu0 0.0
    %482 = vmatprep.subr.mxu0 0.0
    %483 = vmatpush1.msra.mxu0 0.0
    %484 = vmatprep.subr.mxu0 0.0
    %485 = vmatpush1.msra.mxu0 0.0
    %486 = vmatprep.subr.mxu0 0.0
    %487 = vmatpush1.msra.mxu0 0.0
    %488 = vmatprep.subr.mxu0 0.0
    %489 = vmatpush1.msra.mxu0 0.0
    %490 = vmatprep.subr.mxu0 0.0
    %491 = vmatpush1.msra.mxu0 0.0
    %492 = vmatprep.subr.mxu0 0.0
    %493 = vmatpush1.msra.mxu0 0.0
    %494 = vmatprep.subr.mxu0 0.0
    %495 = vmatpush1.msra.mxu0 0.0
    %496 = vmatprep.subr.mxu0 0.0
    %497 = vmatpush1.msra.mxu0 0.0
    %498 = vmatprep.mubr.f32.mxu0 0.0
    %499 = vmatmul.mubr.f32.gmra.mrb[0].mxu0 %v307
    %v500 = vpop.f32.mrb[0].mxu0
    %v501 = vadd.f32 0.0, %v500
    %v502 = vpop.f32.mrb[0].mxu0
    %503 = vmatprep.mubr.f32.mxu0 0.0
    %504 = vmatmul.mubr.f32.gmra.mrb[0].mxu0 %v308
    %v505 = vpop.f32.mrb[0].mxu0
    %v506 = vadd.f32 0.0, %v505
    %v507 = vpop.f32.mrb[0].mxu0
    %508 = vdwg.mxu0
    %v509 = vld [vmem:[#allocation10] sm:$0x1]
    %v511 = vlaneseq
    %v512 = vshrl.u32 %v511, 7
    %v513 = vsub.s32 0, %v512
    %v514 = vrot.slane %v509, %v513
    %v516 = vadd.f32 %v424, %v514
    %v517 = vadd.f32 %v430, %v514
    %vm518 = vcmask 261120
    %v520 = vsel %vm518, %v516, 0
    %v523 = vsel %vm518, %v426, 0
    %525 = vmatprep.subr.mxu0 0.0
    %526 = vmatpush1.xpose.msra.mxu0 %v523
    %527 = vmatprep.subr.mxu0 0.0
    %528 = vmatpush1.xpose.msra.mxu0 0.0
    %529 = vmatprep.subr.mxu0 0.0
    %530 = vmatpush1.xpose.msra.mxu0 0.0
    %531 = vmatprep.subr.mxu0 0.0
    %532 = vmatpush1.xpose.msra.mxu0 0.0
    %533 = vmatprep.subr.mxu0 0.0
    %534 = vmatpush1.xpose.msra.mxu0 0.0
    %535 = vmatprep.subr.mxu0 0.0
    %536 = vmatpush1.xpose.msra.mxu0 0.0
    %537 = vmatprep.subr.mxu0 0.0
    %538 = vmatpush1.xpose.msra.mxu0 0.0
    %539 = vmatprep.subr.mxu0 0.0
    %540 = vmatpush1.xpose.msra.mxu0 0.0
    %541 = vmatprep.subr.mxu0 0.0
    %542 = vmatpush1.xpose.msra.mxu0 0.0
    %543 = vmatprep.subr.mxu0 0.0
    %544 = vmatpush1.xpose.msra.mxu0 0.0
    %545 = vmatprep.subr.mxu0 0.0
    %546 = vmatpush1.xpose.msra.mxu0 0.0
    %547 = vmatprep.subr.mxu0 0.0
    %548 = vmatpush1.xpose.msra.mxu0 0.0
    %549 = vmatprep.subr.mxu0 0.0
    %550 = vmatpush1.xpose.msra.mxu0 0.0
    %551 = vmatprep.subr.mxu0 0.0
    %552 = vmatpush1.xpose.msra.mxu0 0.0
    %553 = vmatprep.subr.mxu0 0.0
    %554 = vmatpush1.xpose.msra.mxu0 0.0
    %555 = vmatprep.subr.mxu0 0.0
    %556 = vmatpush1.xpose.msra.mxu0 0.0
    %557 = vmatprep.subr.mxu0 0.0
    %558 = vmatpush1.xpose.msra.mxu0 0.0
    %559 = vmatprep.subr.mxu0 0.0
    %560 = vmatpush1.xpose.msra.mxu0 0.0
    %561 = vmatprep.subr.mxu0 0.0
    %562 = vmatpush1.xpose.msra.mxu0 0.0
    %563 = vmatprep.subr.mxu0 0.0
    %564 = vmatpush1.xpose.msra.mxu0 0.0
    %565 = vmatprep.subr.mxu0 0.0
    %566 = vmatpush1.xpose.msra.mxu0 0.0
    %567 = vmatprep.subr.mxu0 0.0
    %568 = vmatpush1.xpose.msra.mxu0 0.0
    %569 = vmatprep.subr.mxu0 0.0
    %570 = vmatpush1.xpose.msra.mxu0 0.0
    %571 = vmatprep.subr.mxu0 0.0
    %572 = vmatpush1.xpose.msra.mxu0 0.0
    %573 = vmatprep.subr.mxu0 0.0
    %574 = vmatpush1.xpose.msra.mxu0 0.0
    %575 = vmatprep.subr.mxu0 0.0
    %576 = vmatpush1.xpose.msra.mxu0 0.0
    %577 = vmatprep.subr.mxu0 0.0
    %578 = vmatpush1.xpose.msra.mxu0 0.0
    %579 = vmatprep.subr.mxu0 0.0
    %580 = vmatpush1.xpose.msra.mxu0 0.0
    %581 = vmatprep.subr.mxu0 0.0
    %582 = vmatpush1.xpose.msra.mxu0 0.0
    %583 = vmatprep.subr.mxu0 0.0
    %584 = vmatpush1.xpose.msra.mxu0 0.0
    %585 = vmatprep.subr.mxu0 0.0
    %586 = vmatpush1.xpose.msra.mxu0 0.0
    %587 = vmatprep.subr.mxu0 0.0
    %588 = vmatpush1.xpose.msra.mxu0 0.0
    %589 = vmatprep.mubr.f32.mxu0 0.0
    %590 = vmatmul.mubr.f32.gmra.mrb[0].mxu0 %v520
    %v591 = vpop.f32.mrb[0].mxu0
    %v592 = vadd.f32 0.0, %v591
    %v593 = vpop.f32.mrb[0].mxu0
    %594 = vdwg.mxu0
    %v596 = vsel %vm518, %v517, 0
    %v599 = vsel %vm518, %v432, 0
    %601 = vmatprep.subr.mxu0 0.0
    %602 = vmatpush1.xpose.msra.mxu0 %v599
    %603 = vmatprep.subr.mxu0 0.0
    %604 = vmatpush1.xpose.msra.mxu0 0.0
    %605 = vmatprep.subr.mxu0 0.0
    %606 = vmatpush1.xpose.msra.mxu0 0.0
    %607 = vmatprep.subr.mxu0 0.0
    %608 = vmatpush1.xpose.msra.mxu0 0.0
    %609 = vmatprep.subr.mxu0 0.0
    %610 = vmatpush1.xpose.msra.mxu0 0.0
    %611 = vmatprep.subr.mxu0 0.0
    %612 = vmatpush1.xpose.msra.mxu0 0.0
    %613 = vmatprep.subr.mxu0 0.0
    %614 = vmatpush1.xpose.msra.mxu0 0.0
    %615 = vmatprep.subr.mxu0 0.0
    %616 = vmatpush1.xpose.msra.mxu0 0.0
    %617 = vmatprep.subr.mxu0 0.0
    %618 = vmatpush1.xpose.msra.mxu0 0.0
    %619 = vmatprep.subr.mxu0 0.0
    %620 = vmatpush1.xpose.msra.mxu0 0.0
    %621 = vmatprep.subr.mxu0 0.0
    %622 = vmatpush1.xpose.msra.mxu0 0.0
    %623 = vmatprep.subr.mxu0 0.0
    %624 = vmatpush1.xpose.msra.mxu0 0.0
    %625 = vmatprep.subr.mxu0 0.0
    %626 = vmatpush1.xpose.msra.mxu0 0.0
    %627 = vmatprep.subr.mxu0 0.0
    %628 = vmatpush1.xpose.msra.mxu0 0.0
    %629 = vmatprep.subr.mxu0 0.0
    %630 = vmatpush1.xpose.msra.mxu0 0.0
    %631 = vmatprep.subr.mxu0 0.0
    %632 = vmatpush1.xpose.msra.mxu0 0.0
    %633 = vmatprep.subr.mxu0 0.0
    %634 = vmatpush1.xpose.msra.mxu0 0.0
    %635 = vmatprep.subr.mxu0 0.0
    %636 = vmatpush1.xpose.msra.mxu0 0.0
    %637 = vmatprep.subr.mxu0 0.0
    %638 = vmatpush1.xpose.msra.mxu0 0.0
    %639 = vmatprep.subr.mxu0 0.0
    %640 = vmatpush1.xpose.msra.mxu0 0.0
    %641 = vmatprep.subr.mxu0 0.0
    %642 = vmatpush1.xpose.msra.mxu0 0.0
    %643 = vmatprep.subr.mxu0 0.0
    %644 = vmatpush1.xpose.msra.mxu0 0.0
    %645 = vmatprep.subr.mxu0 0.0
    %646 = vmatpush1.xpose.msra.mxu0 0.0
    %647 = vmatprep.subr.mxu0 0.0
    %648 = vmatpush1.xpose.msra.mxu0 0.0
    %649 = vmatprep.subr.mxu0 0.0
    %650 = vmatpush1.xpose.msra.mxu0 0.0
    %651 = vmatprep.subr.mxu0 0.0
    %652 = vmatpush1.xpose.msra.mxu0 0.0
    %653 = vmatprep.subr.mxu0 0.0
    %654 = vmatpush1.xpose.msra.mxu0 0.0
    %655 = vmatprep.subr.mxu0 0.0
    %656 = vmatpush1.xpose.msra.mxu0 0.0
    %657 = vmatprep.subr.mxu0 0.0
    %658 = vmatpush1.xpose.msra.mxu0 0.0
    %659 = vmatprep.subr.mxu0 0.0
    %660 = vmatpush1.xpose.msra.mxu0 0.0
    %661 = vmatprep.subr.mxu0 0.0
    %662 = vmatpush1.xpose.msra.mxu0 0.0
    %663 = vmatprep.subr.mxu0 0.0
    %664 = vmatpush1.xpose.msra.mxu0 0.0
    %665 = vmatprep.mubr.f32.mxu0 0.0
    %666 = vmatmul.mubr.f32.gmra.mrb[0].mxu0 %v596
    %v667 = vpop.f32.mrb[0].mxu0
    %v668 = vadd.f32 0.0, %v667
    %v669 = vpop.f32.mrb[0].mxu0
    %670 = vdwg.mxu0
    %v671 = vmul.f32 %v592, 0.17677669
    %v672 = vmul.f32 %v668, 0.17677669
    %vm673 = vcmask 64512
    %v674 = vsel %vm673, %v671, -inf
    %675 = vmax.xlane.f32.xlu0 %v674
    %v676 = vpop.xlane.xlu0 %675
    %v677 = vsel %vm673, %v672, -inf
    %678 = vmax.xlane.f32.xlu0 %v677
    %v679 = vpop.xlane.xlu0 %678
    %v680 = vsub.f32 %v671, %v676
    %v681 = vsub.f32 %v672, %v679
    %v682 = vmul.f32 %v680, 1.442695
    %v683 = vpow.pop %v682
    %v684 = vmul.f32 %v681, 1.442695
    %v685 = vpow.pop %v684
    %v686 = vsel %vm673, %v683, 0.0
    %687 = vadd.xlane.f32.xlu0 %v686
    %v688 = vpop.xlane.xlu0 %687
    %v689 = vsel %vm673, %v685, 0.0
    %690 = vadd.xlane.f32.xlu0 %v689
    %v691 = vpop.xlane.xlu0 %690
    %v692 = vrcp.pop %v688
    %v693 = vmul.f32 1.0, %v692
    %v694 = vrcp.pop %v691
    %v695 = vmul.f32 1.0, %v694
    %v696 = vmul.f32 %v683, %v693
    %v697 = vmul.f32 %v685, %v695
    %v699 = vsel %vm673, %v696, 0
    %701 = vmatprep.subr.mxu0 0.0
    %702 = vmatpush1.msra.mxu0 %v501
    %703 = vmatprep.subr.mxu0 0.0
    %704 = vmatpush1.msra.mxu0 0.0
    %705 = vmatprep.subr.mxu0 0.0
    %706 = vmatpush1.msra.mxu0 0.0
    %707 = vmatprep.subr.mxu0 0.0
    %708 = vmatpush1.msra.mxu0 0.0
    %709 = vmatprep.subr.mxu0 0.0
    %710 = vmatpush1.msra.mxu0 0.0
    %711 = vmatprep.subr.mxu0 0.0
    %712 = vmatpush1.msra.mxu0 0.0
    %713 = vmatprep.subr.mxu0 0.0
    %714 = vmatpush1.msra.mxu0 0.0
    %715 = vmatprep.subr.mxu0 0.0
    %716 = vmatpush1.msra.mxu0 0.0
    %717 = vmatprep.subr.mxu0 0.0
    %718 = vmatpush1.msra.mxu0 0.0
    %719 = vmatprep.subr.mxu0 0.0
    %720 = vmatpush1.msra.mxu0 0.0
    %721 = vmatprep.subr.mxu0 0.0
    %722 = vmatpush1.msra.mxu0 0.0
    %723 = vmatprep.subr.mxu0 0.0
    %724 = vmatpush1.msra.mxu0 0.0
    %725 = vmatprep.subr.mxu0 0.0
    %726 = vmatpush1.msra.mxu0 0.0
    %727 = vmatprep.subr.mxu0 0.0
    %728 = vmatpush1.msra.mxu0 0.0
    %729 = vmatprep.subr.mxu0 0.0
    %730 = vmatpush1.msra.mxu0 0.0
    %731 = vmatprep.subr.mxu0 0.0
    %732 = vmatpush1.msra.mxu0 0.0
    %733 = vmatprep.subr.mxu0 0.0
    %734 = vmatpush1.msra.mxu0 0.0
    %735 = vmatprep.subr.mxu0 0.0
    %736 = vmatpush1.msra.mxu0 0.0
    %737 = vmatprep.subr.mxu0 0.0
    %738 = vmatpush1.msra.mxu0 0.0
    %739 = vmatprep.subr.mxu0 0.0
    %740 = vmatpush1.msra.mxu0 0.0
    %741 = vmatprep.subr.mxu0 0.0
    %742 = vmatpush1.msra.mxu0 0.0
    %743 = vmatprep.subr.mxu0 0.0
    %744 = vmatpush1.msra.mxu0 0.0
    %745 = vmatprep.subr.mxu0 0.0
    %746 = vmatpush1.msra.mxu0 0.0
    %747 = vmatprep.subr.mxu0 0.0
    %748 = vmatpush1.msra.mxu0 0.0
    %749 = vmatprep.subr.mxu0 0.0
    %750 = vmatpush1.msra.mxu0 0.0
    %751 = vmatprep.subr.mxu0 0.0
    %752 = vmatpush1.msra.mxu0 0.0
    %753 = vmatprep.subr.mxu0 0.0
    %754 = vmatpush1.msra.mxu0 0.0
    %755 = vmatprep.subr.mxu0 0.0
    %756 = vmatpush1.msra.mxu0 0.0
    %757 = vmatprep.subr.mxu0 0.0
    %758 = vmatpush1.msra.mxu0 0.0
    %759 = vmatprep.subr.mxu0 0.0
    %760 = vmatpush1.msra.mxu0 0.0
    %761 = vmatprep.subr.mxu0 0.0
    %762 = vmatpush1.msra.mxu0 0.0
    %763 = vmatprep.subr.mxu0 0.0
    %764 = vmatpush1.msra.mxu0 0.0
    %765 = vmatprep.mubr.f32.mxu0 0.0
    %766 = vmatmul.mubr.f32.gmra.mrb[0].mxu0 %v699
    %v767 = vpop.f32.mrb[0].mxu0
    %v768 = vadd.f32 0.0, %v767
    %v769 = vpop.f32.mrb[0].mxu0
    %770 = vdwg.mxu0
    %v772 = vsel %vm673, %v697, 0
    %774 = vmatprep.subr.mxu0 0.0
    %775 = vmatpush1.msra.mxu0 %v506
    %776 = vmatprep.subr.mxu0 0.0
    %777 = vmatpush1.msra.mxu0 0.0
    %778 = vmatprep.subr.mxu0 0.0
    %779 = vmatpush1.msra.mxu0 0.0
    %780 = vmatprep.subr.mxu0 0.0
    %781 = vmatpush1.msra.mxu0 0.0
    %782 = vmatprep.subr.mxu0 0.0
    %783 = vmatpush1.msra.mxu0 0.0
    %784 = vmatprep.subr.mxu0 0.0
    %785 = vmatpush1.msra.mxu0 0.0
    %786 = vmatprep.subr.mxu0 0.0
    %787 = vmatpush1.msra.mxu0 0.0
    %788 = vmatprep.subr.mxu0 0.0
    %789 = vmatpush1.msra.mxu0 0.0
    %790 = vmatprep.subr.mxu0 0.0
    %791 = vmatpush1.msra.mxu0 0.0
    %792 = vmatprep.subr.mxu0 0.0
    %793 = vmatpush1.msra.mxu0 0.0
    %794 = vmatprep.subr.mxu0 0.0
    %795 = vmatpush1.msra.mxu0 0.0
    %796 = vmatprep.subr.mxu0 0.0
    %797 = vmatpush1.msra.mxu0 0.0
    %798 = vmatprep.subr.mxu0 0.0
    %799 = vmatpush1.msra.mxu0 0.0
    %800 = vmatprep.subr.mxu0 0.0
    %801 = vmatpush1.msra.mxu0 0.0
    %802 = vmatprep.subr.mxu0 0.0
    %803 = vmatpush1.msra.mxu0 0.0
    %804 = vmatprep.subr.mxu0 0.0
    %805 = vmatpush1.msra.mxu0 0.0
    %806 = vmatprep.subr.mxu0 0.0
    %807 = vmatpush1.msra.mxu0 0.0
    %808 = vmatprep.subr.mxu0 0.0
    %809 = vmatpush1.msra.mxu0 0.0
    %810 = vmatprep.subr.mxu0 0.0
    %811 = vmatpush1.msra.mxu0 0.0
    %812 = vmatprep.subr.mxu0 0.0
    %813 = vmatpush1.msra.mxu0 0.0
    %814 = vmatprep.subr.mxu0 0.0
    %815 = vmatpush1.msra.mxu0 0.0
    %816 = vmatprep.subr.mxu0 0.0
    %817 = vmatpush1.msra.mxu0 0.0
    %818 = vmatprep.subr.mxu0 0.0
    %819 = vmatpush1.msra.mxu0 0.0
    %820 = vmatprep.subr.mxu0 0.0
    %821 = vmatpush1.msra.mxu0 0.0
    %822 = vmatprep.subr.mxu0 0.0
    %823 = vmatpush1.msra.mxu0 0.0
    %824 = vmatprep.subr.mxu0 0.0
    %825 = vmatpush1.msra.mxu0 0.0
    %826 = vmatprep.subr.mxu0 0.0
    %827 = vmatpush1.msra.mxu0 0.0
    %828 = vmatprep.subr.mxu0 0.0
    %829 = vmatpush1.msra.mxu0 0.0
    %830 = vmatprep.subr.mxu0 0.0
    %831 = vmatpush1.msra.mxu0 0.0
    %832 = vmatprep.subr.mxu0 0.0
    %833 = vmatpush1.msra.mxu0 0.0
    %834 = vmatprep.subr.mxu0 0.0
    %835 = vmatpush1.msra.mxu0 0.0
    %836 = vmatprep.subr.mxu0 0.0
    %837 = vmatpush1.msra.mxu0 0.0
    %838 = vmatprep.mubr.f32.mxu0 0.0
    %839 = vmatmul.mubr.f32.gmra.mrb[0].mxu0 %v772
    %v840 = vpop.f32.mrb[0].mxu0
    %v841 = vadd.f32 0.0, %v840
    %v842 = vpop.f32.mrb[0].mxu0
    %843 = vdwg.mxu0
    %844 = vrot.lane.b32.xlu0 %v516, 96
    %v845 = vpop.permute.xlu0 %844
    %846 = vrot.lane.b32.xlu0 %v426, 96
    %v847 = vpop.permute.xlu0 %846
    %v848 = vsel %vm518, %v845, 0
    %v850 = vsel %vm518, %v847, 0
    %852 = vmatprep.subr.mxu0 0.0
    %853 = vmatpush1.xpose.msra.mxu0 %v850
    %854 = vmatprep.subr.mxu0 0.0
    %855 = vmatpush1.xpose.msra.mxu0 0.0
    %856 = vmatprep.subr.mxu0 0.0
    %857 = vmatpush1.xpose.msra.mxu0 0.0
    %858 = vmatprep.subr.mxu0 0.0
    %859 = vmatpush1.xpose.msra.mxu0 0.0
    %860 = vmatprep.subr.mxu0 0.0
    %861 = vmatpush1.xpose.msra.mxu0 0.0
    %862 = vmatprep.subr.mxu0 0.0
    %863 = vmatpush1.xpose.msra.mxu0 0.0
    %864 = vmatprep.subr.mxu0 0.0
    %865 = vmatpush1.xpose.msra.mxu0 0.0
    %866 = vmatprep.subr.mxu0 0.0
    %867 = vmatpush1.xpose.msra.mxu0 0.0
    %868 = vmatprep.subr.mxu0 0.0
    %869 = vmatpush1.xpose.msra.mxu0 0.0
    %870 = vmatprep.subr.mxu0 0.0
    %871 = vmatpush1.xpose.msra.mxu0 0.0
    %872 = vmatprep.subr.mxu0 0.0
    %873 = vmatpush1.xpose.msra.mxu0 0.0
    %874 = vmatprep.subr.mxu0 0.0
    %875 = vmatpush1.xpose.msra.mxu0 0.0
    %876 = vmatprep.subr.mxu0 0.0
    %877 = vmatpush1.xpose.msra.mxu0 0.0
    %878 = vmatprep.subr.mxu0 0.0
    %879 = vmatpush1.xpose.msra.mxu0 0.0
    %880 = vmatprep.subr.mxu0 0.0
    %881 = vmatpush1.xpose.msra.mxu0 0.0
    %882 = vmatprep.subr.mxu0 0.0
    %883 = vmatpush1.xpose.msra.mxu0 0.0
    %884 = vmatprep.subr.mxu0 0.0
    %885 = vmatpush1.xpose.msra.mxu0 0.0
    %886 = vmatprep.subr.mxu0 0.0
    %887 = vmatpush1.xpose.msra.mxu0 0.0
    %888 = vmatprep.subr.mxu0 0.0
    %889 = vmatpush1.xpose.msra.mxu0 0.0
    %890 = vmatprep.subr.mxu0 0.0
    %891 = vmatpush1.xpose.msra.mxu0 0.0
    %892 = vmatprep.subr.mxu0 0.0
    %893 = vmatpush1.xpose.msra.mxu0 0.0
    %894 = vmatprep.subr.mxu0 0.0
    %895 = vmatpush1.xpose.msra.mxu0 0.0
    %896 = vmatprep.subr.mxu0 0.0
    %897 = vmatpush1.xpose.msra.mxu0 0.0
    %898 = vmatprep.subr.mxu0 0.0
    %899 = vmatpush1.xpose.msra.mxu0 0.0
    %900 = vmatprep.subr.mxu0 0.0
    %901 = vmatpush1.xpose.msra.mxu0 0.0
    %902 = vmatprep.subr.mxu0 0.0
    %903 = vmatpush1.xpose.msra.mxu0 0.0
    %904 = vmatprep.subr.mxu0 0.0
    %905 = vmatpush1.xpose.msra.mxu0 0.0
    %906 = vmatprep.subr.mxu0 0.0
    %907 = vmatpush1.xpose.msra.mxu0 0.0
    %908 = vmatprep.subr.mxu0 0.0
    %909 = vmatpush1.xpose.msra.mxu0 0.0
    %910 = vmatprep.subr.mxu0 0.0
    %911 = vmatpush1.xpose.msra.mxu0 0.0
    %912 = vmatprep.subr.mxu0 0.0
    %913 = vmatpush1.xpose.msra.mxu0 0.0
    %914 = vmatprep.subr.mxu0 0.0
    %915 = vmatpush1.xpose.msra.mxu0 0.0
    %916 = vmatprep.mubr.f32.mxu0 0.0
    %917 = vmatmul.mubr.f32.gmra.mrb[0].mxu0 %v848
    %v918 = vpop.f32.mrb[0].mxu0
    %v919 = vadd.f32 0.0, %v918
    %v920 = vpop.f32.mrb[0].mxu0
    %921 = vdwg.mxu0
    %922 = vrot.lane.b32.xlu0 %v517, 96
    %v923 = vpop.permute.xlu0 %922
    %924 = vrot.lane.b32.xlu0 %v432, 96
    %v925 = vpop.permute.xlu0 %924
    %v926 = vsel %vm518, %v923, 0
    %v928 = vsel %vm518, %v925, 0
    %930 = vmatprep.subr.mxu0 0.0
    %931 = vmatpush1.xpose.msra.mxu0 %v928
    %932 = vmatprep.subr.mxu0 0.0
    %933 = vmatpush1.xpose.msra.mxu0 0.0
    %934 = vmatprep.subr.mxu0 0.0
    %935 = vmatpush1.xpose.msra.mxu0 0.0
    %936 = vmatprep.subr.mxu0 0.0
    %937 = vmatpush1.xpose.msra.mxu0 0.0
    %938 = vmatprep.subr.mxu0 0.0
    %939 = vmatpush1.xpose.msra.mxu0 0.0
    %940 = vmatprep.subr.mxu0 0.0
    %941 = vmatpush1.xpose.msra.mxu0 0.0
    %942 = vmatprep.subr.mxu0 0.0
    %943 = vmatpush1.xpose.msra.mxu0 0.0
    %944 = vmatprep.subr.mxu0 0.0
    %945 = vmatpush1.xpose.msra.mxu0 0.0
    %946 = vmatprep.subr.mxu0 0.0
    %947 = vmatpush1.xpose.msra.mxu0 0.0
    %948 = vmatprep.subr.mxu0 0.0
    %949 = vmatpush1.xpose.msra.mxu0 0.0
    %950 = vmatprep.subr.mxu0 0.0
    %951 = vmatpush1.xpose.msra.mxu0 0.0
    %952 = vmatprep.subr.mxu0 0.0
    %953 = vmatpush1.xpose.msra.mxu0 0.0
    %954 = vmatprep.subr.mxu0 0.0
    %955 = vmatpush1.xpose.msra.mxu0 0.0
    %956 = vmatprep.subr.mxu0 0.0
    %957 = vmatpush1.xpose.msra.mxu0 0.0
    %958 = vmatprep.subr.mxu0 0.0
    %959 = vmatpush1.xpose.msra.mxu0 0.0
    %960 = vmatprep.subr.mxu0 0.0
    %961 = vmatpush1.xpose.msra.mxu0 0.0
    %962 = vmatprep.subr.mxu0 0.0
    %963 = vmatpush1.xpose.msra.mxu0 0.0
    %964 = vmatprep.subr.mxu0 0.0
    %965 = vmatpush1.xpose.msra.mxu0 0.0
    %966 = vmatprep.subr.mxu0 0.0
    %967 = vmatpush1.xpose.msra.mxu0 0.0
    %968 = vmatprep.subr.mxu0 0.0
    %969 = vmatpush1.xpose.msra.mxu0 0.0
    %970 = vmatprep.subr.mxu0 0.0
    %971 = vmatpush1.xpose.msra.mxu0 0.0
    %972 = vmatprep.subr.mxu0 0.0
    %973 = vmatpush1.xpose.msra.mxu0 0.0
    %974 = vmatprep.subr.mxu0 0.0
    %975 = vmatpush1.xpose.msra.mxu0 0.0
    %976 = vmatprep.subr.mxu0 0.0
    %977 = vmatpush1.xpose.msra.mxu0 0.0
    %978 = vmatprep.subr.mxu0 0.0
    %979 = vmatpush1.xpose.msra.mxu0 0.0
    %980 = vmatprep.subr.mxu0 0.0
    %981 = vmatpush1.xpose.msra.mxu0 0.0
    %982 = vmatprep.subr.mxu0 0.0
    %983 = vmatpush1.xpose.msra.mxu0 0.0
    %984 = vmatprep.subr.mxu0 0.0
    %985 = vmatpush1.xpose.msra.mxu0 0.0
    %986 = vmatprep.subr.mxu0 0.0
    %987 = vmatpush1.xpose.msra.mxu0 0.0
    %988 = vmatprep.subr.mxu0 0.0
    %989 = vmatpush1.xpose.msra.mxu0 0.0
    %990 = vmatprep.subr.mxu0 0.0
    %991 = vmatpush1.xpose.msra.mxu0 0.0
    %992 = vmatprep.subr.mxu0 0.0
    %993 = vmatpush1.xpose.msra.mxu0 0.0
    %994 = vmatprep.mubr.f32.mxu0 0.0
    %995 = vmatmul.mubr.f32.gmra.mrb[0].mxu0 %v926
    %v996 = vpop.f32.mrb[0].mxu0
    %v997 = vadd.f32 0.0, %v996
    %v998 = vpop.f32.mrb[0].mxu0
    %999 = vdwg.mxu0
    %v1000 = vmul.f32 %v919, 0.17677669
    %v1001 = vmul.f32 %v997, 0.17677669
    %v1002 = vsel %vm673, %v1000, -inf
    %1003 = vmax.xlane.f32.xlu0 %v1002
    %v1004 = vpop.xlane.xlu0 %1003
    %v1005 = vsel %vm673, %v1001, -inf
    %1006 = vmax.xlane.f32.xlu0 %v1005
    %v1007 = vpop.xlane.xlu0 %1006
    %v1008 = vsub.f32 %v1000, %v1004
    %v1009 = vsub.f32 %v1001, %v1007
    %v1010 = vmul.f32 %v1008, 1.442695
    %v1011 = vpow.pop %v1010
    %v1012 = vmul.f32 %v1009, 1.442695
    %v1013 = vpow.pop %v1012
    %v1014 = vsel %vm673, %v1011, 0.0
    %1015 = vadd.xlane.f32.xlu0 %v1014
    %v1016 = vpop.xlane.xlu0 %1015
    %v1017 = vsel %vm673, %v1013, 0.0
    %1018 = vadd.xlane.f32.xlu0 %v1017
    %v1019 = vpop.xlane.xlu0 %1018
    %v1020 = vrcp.pop %v1016
    %v1021 = vmul.f32 1.0, %v1020
    %v1022 = vrcp.pop %v1019
    %v1023 = vmul.f32 1.0, %v1022
    %v1024 = vmul.f32 %v1011, %v1021
    %v1025 = vmul.f32 %v1013, %v1023
    %1027 = vrot.lane.b32.xlu0 %v501, 96
    %v1028 = vpop.permute.xlu0 %1027
    %v1031 = vsel %vm673, %v1024, 0
    %1033 = vmatprep.subr.mxu0 0.0
    %1034 = vmatpush1.msra.mxu0 %v1028
    %1035 = vmatprep.subr.mxu0 0.0
    %1036 = vmatpush1.msra.mxu0 0.0
    %1037 = vmatprep.subr.mxu0 0.0
    %1038 = vmatpush1.msra.mxu0 0.0
    %1039 = vmatprep.subr.mxu0 0.0
    %1040 = vmatpush1.msra.mxu0 0.0
    %1041 = vmatprep.subr.mxu0 0.0
    %1042 = vmatpush1.msra.mxu0 0.0
    %1043 = vmatprep.subr.mxu0 0.0
    %1044 = vmatpush1.msra.mxu0 0.0
    %1045 = vmatprep.subr.mxu0 0.0
    %1046 = vmatpush1.msra.mxu0 0.0
    %1047 = vmatprep.subr.mxu0 0.0
    %1048 = vmatpush1.msra.mxu0 0.0
    %1049 = vmatprep.subr.mxu0 0.0
    %1050 = vmatpush1.msra.mxu0 0.0
    %1051 = vmatprep.subr.mxu0 0.0
    %1052 = vmatpush1.msra.mxu0 0.0
    %1053 = vmatprep.subr.mxu0 0.0
    %1054 = vmatpush1.msra.mxu0 0.0
    %1055 = vmatprep.subr.mxu0 0.0
    %1056 = vmatpush1.msra.mxu0 0.0
    %1057 = vmatprep.subr.mxu0 0.0
    %1058 = vmatpush1.msra.mxu0 0.0
    %1059 = vmatprep.subr.mxu0 0.0
    %1060 = vmatpush1.msra.mxu0 0.0
    %1061 = vmatprep.subr.mxu0 0.0
    %1062 = vmatpush1.msra.mxu0 0.0
    %1063 = vmatprep.subr.mxu0 0.0
    %1064 = vmatpush1.msra.mxu0 0.0
    %1065 = vmatprep.subr.mxu0 0.0
    %1066 = vmatpush1.msra.mxu0 0.0
    %1067 = vmatprep.subr.mxu0 0.0
    %1068 = vmatpush1.msra.mxu0 0.0
    %1069 = vmatprep.subr.mxu0 0.0
    %1070 = vmatpush1.msra.mxu0 0.0
    %1071 = vmatprep.subr.mxu0 0.0
    %1072 = vmatpush1.msra.mxu0 0.0
    %1073 = vmatprep.subr.mxu0 0.0
    %1074 = vmatpush1.msra.mxu0 0.0
    %1075 = vmatprep.subr.mxu0 0.0
    %1076 = vmatpush1.msra.mxu0 0.0
    %1077 = vmatprep.subr.mxu0 0.0
    %1078 = vmatpush1.msra.mxu0 0.0
    %1079 = vmatprep.subr.mxu0 0.0
    %1080 = vmatpush1.msra.mxu0 0.0
    %1081 = vmatprep.subr.mxu0 0.0
    %1082 = vmatpush1.msra.mxu0 0.0
    %1083 = vmatprep.subr.mxu0 0.0
    %1084 = vmatpush1.msra.mxu0 0.0
    %1085 = vmatprep.subr.mxu0 0.0
    %1086 = vmatpush1.msra.mxu0 0.0
    %1087 = vmatprep.subr.mxu0 0.0
    %1088 = vmatpush1.msra.mxu0 0.0
    %1089 = vmatprep.subr.mxu0 0.0
    %1090 = vmatpush1.msra.mxu0 0.0
    %1091 = vmatprep.subr.mxu0 0.0
    %1092 = vmatpush1.msra.mxu0 0.0
    %1093 = vmatprep.subr.mxu0 0.0
    %1094 = vmatpush1.msra.mxu0 0.0
    %1095 = vmatprep.subr.mxu0 0.0
    %1096 = vmatpush1.msra.mxu0 0.0
    %1097 = vmatprep.mubr.f32.mxu0 0.0
    %1098 = vmatmul.mubr.f32.gmra.mrb[0].mxu0 %v1031
    %v1099 = vpop.f32.mrb[0].mxu0
    %v1100 = vadd.f32 0.0, %v1099
    %v1101 = vpop.f32.mrb[0].mxu0
    %1102 = vdwg.mxu0
    %1104 = vrot.lane.b32.xlu0 %v506, 96
    %v1105 = vpop.permute.xlu0 %1104
    %v1108 = vsel %vm673, %v1025, 0
    %1110 = vmatprep.subr.mxu0 0.0
    %1111 = vmatpush1.msra.mxu0 %v1105
    %1112 = vmatprep.subr.mxu0 0.0
    %1113 = vmatpush1.msra.mxu0 0.0
    %1114 = vmatprep.subr.mxu0 0.0
    %1115 = vmatpush1.msra.mxu0 0.0
    %1116 = vmatprep.subr.mxu0 0.0
    %1117 = vmatpush1.msra.mxu0 0.0
    %1118 = vmatprep.subr.mxu0 0.0
    %1119 = vmatpush1.msra.mxu0 0.0
    %1120 = vmatprep.subr.mxu0 0.0
    %1121 = vmatpush1.msra.mxu0 0.0
    %1122 = vmatprep.subr.mxu0 0.0
    %1123 = vmatpush1.msra.mxu0 0.0
    %1124 = vmatprep.subr.mxu0 0.0
    %1125 = vmatpush1.msra.mxu0 0.0
    %1126 = vmatprep.subr.mxu0 0.0
    %1127 = vmatpush1.msra.mxu0 0.0
    %1128 = vmatprep.subr.mxu0 0.0
    %1129 = vmatpush1.msra.mxu0 0.0
    %1130 = vmatprep.subr.mxu0 0.0
    %1131 = vmatpush1.msra.mxu0 0.0
    %1132 = vmatprep.subr.mxu0 0.0
    %1133 = vmatpush1.msra.mxu0 0.0
    %1134 = vmatprep.subr.mxu0 0.0
    %1135 = vmatpush1.msra.mxu0 0.0
    %1136 = vmatprep.subr.mxu0 0.0
    %1137 = vmatpush1.msra.mxu0 0.0
    %1138 = vmatprep.subr.mxu0 0.0
    %1139 = vmatpush1.msra.mxu0 0.0
    %1140 = vmatprep.subr.mxu0 0.0
    %1141 = vmatpush1.msra.mxu0 0.0
    %1142 = vmatprep.subr.mxu0 0.0
    %1143 = vmatpush1.msra.mxu0 0.0
    %1144 = vmatprep.subr.mxu0 0.0
    %1145 = vmatpush1.msra.mxu0 0.0
    %1146 = vmatprep.subr.mxu0 0.0
    %1147 = vmatpush1.msra.mxu0 0.0
    %1148 = vmatprep.subr.mxu0 0.0
    %1149 = vmatpush1.msra.mxu0 0.0
    %1150 = vmatprep.subr.mxu0 0.0
    %1151 = vmatpush1.msra.mxu0 0.0
    %1152 = vmatprep.subr.mxu0 0.0
    %1153 = vmatpush1.msra.mxu0 0.0
    %1154 = vmatprep.subr.mxu0 0.0
    %1155 = vmatpush1.msra.mxu0 0.0
    %1156 = vmatprep.subr.mxu0 0.0
    %1157 = vmatpush1.msra.mxu0 0.0
    %1158 = vmatprep.subr.mxu0 0.0
    %1159 = vmatpush1.msra.mxu0 0.0
    %1160 = vmatprep.subr.mxu0 0.0
    %1161 = vmatpush1.msra.mxu0 0.0
    %1162 = vmatprep.subr.mxu0 0.0
    %1163 = vmatpush1.msra.mxu0 0.0
    %1164 = vmatprep.subr.mxu0 0.0
    %1165 = vmatpush1.msra.mxu0 0.0
    %1166 = vmatprep.subr.mxu0 0.0
    %1167 = vmatpush1.msra.mxu0 0.0
    %1168 = vmatprep.subr.mxu0 0.0
    %1169 = vmatpush1.msra.mxu0 0.0
    %1170 = vmatprep.subr.mxu0 0.0
    %1171 = vmatpush1.msra.mxu0 0.0
    %1172 = vmatprep.subr.mxu0 0.0
    %1173 = vmatpush1.msra.mxu0 0.0
    %1174 = vmatprep.mubr.f32.mxu0 0.0
    %1175 = vmatmul.mubr.f32.gmra.mrb[0].mxu0 %v1108
    %v1176 = vpop.f32.mrb[0].mxu0
    %v1177 = vadd.f32 0.0, %v1176
    %v1178 = vpop.f32.mrb[0].mxu0
    %1179 = vdwg.mxu0
    %1180 = vrot.lane.b32.xlu0 %v516, 64
    %v1181 = vpop.permute.xlu0 %1180
    %1182 = vrot.lane.b32.xlu0 %v426, 64
    %v1183 = vpop.permute.xlu0 %1182
    %v1184 = vsel %vm518, %v1181, 0
    %v1186 = vsel %vm518, %v1183, 0
    %1188 = vmatprep.subr.mxu0 0.0
    %1189 = vmatpush1.xpose.msra.mxu0 %v1186
    %1190 = vmatprep.subr.mxu0 0.0
    %1191 = vmatpush1.xpose.msra.mxu0 0.0
    %1192 = vmatprep.subr.mxu0 0.0
    %1193 = vmatpush1.xpose.msra.mxu0 0.0
    %1194 = vmatprep.subr.mxu0 0.0
    %1195 = vmatpush1.xpose.msra.mxu0 0.0
    %1196 = vmatprep.subr.mxu0 0.0
    %1197 = vmatpush1.xpose.msra.mxu0 0.0
    %1198 = vmatprep.subr.mxu0 0.0
    %1199 = vmatpush1.xpose.msra.mxu0 0.0
    %1200 = vmatprep.subr.mxu0 0.0
    %1201 = vmatpush1.xpose.msra.mxu0 0.0
    %1202 = vmatprep.subr.mxu0 0.0
    %1203 = vmatpush1.xpose.msra.mxu0 0.0
    %1204 = vmatprep.subr.mxu0 0.0
    %1205 = vmatpush1.xpose.msra.mxu0 0.0
    %1206 = vmatprep.subr.mxu0 0.0
    %1207 = vmatpush1.xpose.msra.mxu0 0.0
    %1208 = vmatprep.subr.mxu0 0.0
    %1209 = vmatpush1.xpose.msra.mxu0 0.0
    %1210 = vmatprep.subr.mxu0 0.0
    %1211 = vmatpush1.xpose.msra.mxu0 0.0
    %1212 = vmatprep.subr.mxu0 0.0
    %1213 = vmatpush1.xpose.msra.mxu0 0.0
    %1214 = vmatprep.subr.mxu0 0.0
    %1215 = vmatpush1.xpose.msra.mxu0 0.0
    %1216 = vmatprep.subr.mxu0 0.0
    %1217 = vmatpush1.xpose.msra.mxu0 0.0
    %1218 = vmatprep.subr.mxu0 0.0
    %1219 = vmatpush1.xpose.msra.mxu0 0.0
    %1220 = vmatprep.subr.mxu0 0.0
    %1221 = vmatpush1.xpose.msra.mxu0 0.0
    %1222 = vmatprep.subr.mxu0 0.0
    %1223 = vmatpush1.xpose.msra.mxu0 0.0
    %1224 = vmatprep.subr.mxu0 0.0
    %1225 = vmatpush1.xpose.msra.mxu0 0.0
    %1226 = vmatprep.subr.mxu0 0.0
    %1227 = vmatpush1.xpose.msra.mxu0 0.0
    %1228 = vmatprep.subr.mxu0 0.0
    %1229 = vmatpush1.xpose.msra.mxu0 0.0
    %1230 = vmatprep.subr.mxu0 0.0
    %1231 = vmatpush1.xpose.msra.mxu0 0.0
    %1232 = vmatprep.subr.mxu0 0.0
    %1233 = vmatpush1.xpose.msra.mxu0 0.0
    %1234 = vmatprep.subr.mxu0 0.0
    %1235 = vmatpush1.xpose.msra.mxu0 0.0
    %1236 = vmatprep.subr.mxu0 0.0
    %1237 = vmatpush1.xpose.msra.mxu0 0.0
    %1238 = vmatprep.subr.mxu0 0.0
    %1239 = vmatpush1.xpose.msra.mxu0 0.0
    %1240 = vmatprep.subr.mxu0 0.0
    %1241 = vmatpush1.xpose.msra.mxu0 0.0
    %1242 = vmatprep.subr.mxu0 0.0
    %1243 = vmatpush1.xpose.msra.mxu0 0.0
    %1244 = vmatprep.subr.mxu0 0.0
    %1245 = vmatpush1.xpose.msra.mxu0 0.0
    %1246 = vmatprep.subr.mxu0 0.0
    %1247 = vmatpush1.xpose.msra.mxu0 0.0
    %1248 = vmatprep.subr.mxu0 0.0
    %1249 = vmatpush1.xpose.msra.mxu0 0.0
    %1250 = vmatprep.subr.mxu0 0.0
    %1251 = vmatpush1.xpose.msra.mxu0 0.0
    %1252 = vmatprep.mubr.f32.mxu0 0.0
    %1253 = vmatmul.mubr.f32.gmra.mrb[0].mxu0 %v1184
    %v1254 = vpop.f32.mrb[0].mxu0
    %v1255 = vadd.f32 0.0, %v1254
    %v1256 = vpop.f32.mrb[0].mxu0
    %1257 = vdwg.mxu0
    %1258 = vrot.lane.b32.xlu0 %v517, 64
    %v1259 = vpop.permute.xlu0 %1258
    %1260 = vrot.lane.b32.xlu0 %v432, 64
    %v1261 = vpop.permute.xlu0 %1260
    %v1262 = vsel %vm518, %v1259, 0
    %v1264 = vsel %vm518, %v1261, 0
    %1266 = vmatprep.subr.mxu0 0.0
    %1267 = vmatpush1.xpose.msra.mxu0 %v1264
    %1268 = vmatprep.subr.mxu0 0.0
    %1269 = vmatpush1.xpose.msra.mxu0 0.0
    %1270 = vmatprep.subr.mxu0 0.0
    %1271 = vmatpush1.xpose.msra.mxu0 0.0
    %1272 = vmatprep.subr.mxu0 0.0
    %1273 = vmatpush1.xpose.msra.mxu0 0.0
    %1274 = vmatprep.subr.mxu0 0.0
    %1275 = vmatpush1.xpose.msra.mxu0 0.0
    %1276 = vmatprep.subr.mxu0 0.0
    %1277 = vmatpush1.xpose.msra.mxu0 0.0
    %1278 = vmatprep.subr.mxu0 0.0
    %1279 = vmatpush1.xpose.msra.mxu0 0.0
    %1280 = vmatprep.subr.mxu0 0.0
    %1281 = vmatpush1.xpose.msra.mxu0 0.0
    %1282 = vmatprep.subr.mxu0 0.0
    %1283 = vmatpush1.xpose.msra.mxu0 0.0
    %1284 = vmatprep.subr.mxu0 0.0
    %1285 = vmatpush1.xpose.msra.mxu0 0.0
    %1286 = vmatprep.subr.mxu0 0.0
    %1287 = vmatpush1.xpose.msra.mxu0 0.0
    %1288 = vmatprep.subr.mxu0 0.0
    %1289 = vmatpush1.xpose.msra.mxu0 0.0
    %1290 = vmatprep.subr.mxu0 0.0
    %1291 = vmatpush1.xpose.msra.mxu0 0.0
    %1292 = vmatprep.subr.mxu0 0.0
    %1293 = vmatpush1.xpose.msra.mxu0 0.0
    %1294 = vmatprep.subr.mxu0 0.0
    %1295 = vmatpush1.xpose.msra.mxu0 0.0
    %1296 = vmatprep.subr.mxu0 0.0
    %1297 = vmatpush1.xpose.msra.mxu0 0.0
    %1298 = vmatprep.subr.mxu0 0.0
    %1299 = vmatpush1.xpose.msra.mxu0 0.0
    %1300 = vmatprep.subr.mxu0 0.0
    %1301 = vmatpush1.xpose.msra.mxu0 0.0
    %1302 = vmatprep.subr.mxu0 0.0
    %1303 = vmatpush1.xpose.msra.mxu0 0.0
    %1304 = vmatprep.subr.mxu0 0.0
    %1305 = vmatpush1.xpose.msra.mxu0 0.0
    %1306 = vmatprep.subr.mxu0 0.0
    %1307 = vmatpush1.xpose.msra.mxu0 0.0
    %1308 = vmatprep.subr.mxu0 0.0
    %1309 = vmatpush1.xpose.msra.mxu0 0.0
    %1310 = vmatprep.subr.mxu0 0.0
    %1311 = vmatpush1.xpose.msra.mxu0 0.0
    %1312 = vmatprep.subr.mxu0 0.0
    %1313 = vmatpush1.xpose.msra.mxu0 0.0
    %1314 = vmatprep.subr.mxu0 0.0
    %1315 = vmatpush1.xpose.msra.mxu0 0.0
    %1316 = vmatprep.subr.mxu0 0.0
    %1317 = vmatpush1.xpose.msra.mxu0 0.0
    %1318 = vmatprep.subr.mxu0 0.0
    %1319 = vmatpush1.xpose.msra.mxu0 0.0
    %1320 = vmatprep.subr.mxu0 0.0
    %1321 = vmatpush1.xpose.msra.mxu0 0.0
    %1322 = vmatprep.subr.mxu0 0.0
    %1323 = vmatpush1.xpose.msra.mxu0 0.0
    %1324 = vmatprep.subr.mxu0 0.0
    %1325 = vmatpush1.xpose.msra.mxu0 0.0
    %1326 = vmatprep.subr.mxu0 0.0
    %1327 = vmatpush1.xpose.msra.mxu0 0.0
    %1328 = vmatprep.subr.mxu0 0.0
    %1329 = vmatpush1.xpose.msra.mxu0 0.0
    %1330 = vmatprep.mubr.f32.mxu0 0.0
    %1331 = vmatmul.mubr.f32.gmra.mrb[0].mxu0 %v1262
    %v1332 = vpop.f32.mrb[0].mxu0
    %v1333 = vadd.f32 0.0, %v1332
    %v1334 = vpop.f32.mrb[0].mxu0
    %1335 = vdwg.mxu0
    %v1336 = vmul.f32 %v1255, 0.17677669
    %v1337 = vmul.f32 %v1333, 0.17677669
    %v1338 = vsel %vm673, %v1336, -inf
    %1339 = vmax.xlane.f32.xlu0 %v1338
    %v1340 = vpop.xlane.xlu0 %1339
    %v1341 = vsel %vm673, %v1337, -inf
    %1342 = vmax.xlane.f32.xlu0 %v1341
    %v1343 = vpop.xlane.xlu0 %1342
    %v1344 = vsub.f32 %v1336, %v1340
    %v1345 = vsub.f32 %v1337, %v1343
    %v1346 = vmul.f32 %v1344, 1.442695
    %v1347 = vpow.pop %v1346
    %v1348 = vmul.f32 %v1345, 1.442695
    %v1349 = vpow.pop %v1348
    %v1350 = vsel %vm673, %v1347, 0.0
    %1351 = vadd.xlane.f32.xlu0 %v1350
    %v1352 = vpop.xlane.xlu0 %1351
    %v1353 = vsel %vm673, %v1349, 0.0
    %1354 = vadd.xlane.f32.xlu0 %v1353
    %v1355 = vpop.xlane.xlu0 %1354
    %v1356 = vrcp.pop %v1352
    %v1357 = vmul.f32 1.0, %v1356
    %v1358 = vrcp.pop %v1355
    %v1359 = vmul.f32 1.0, %v1358
    %v1360 = vmul.f32 %v1347, %v1357
    %v1361 = vmul.f32 %v1349, %v1359
    %1362 = vrot.lane.b32.xlu0 %v501, 64
    %v1363 = vpop.permute.xlu0 %1362
    %v1366 = vsel %vm673, %v1360, 0
    %1368 = vmatprep.subr.mxu0 0.0
    %1369 = vmatpush1.msra.mxu0 %v1363
    %1370 = vmatprep.subr.mxu0 0.0
    %1371 = vmatpush1.msra.mxu0 0.0
    %1372 = vmatprep.subr.mxu0 0.0
    %1373 = vmatpush1.msra.mxu0 0.0
    %1374 = vmatprep.subr.mxu0 0.0
    %1375 = vmatpush1.msra.mxu0 0.0
    %1376 = vmatprep.subr.mxu0 0.0
    %1377 = vmatpush1.msra.mxu0 0.0
    %1378 = vmatprep.subr.mxu0 0.0
    %1379 = vmatpush1.msra.mxu0 0.0
    %1380 = vmatprep.subr.mxu0 0.0
    %1381 = vmatpush1.msra.mxu0 0.0
    %1382 = vmatprep.subr.mxu0 0.0
    %1383 = vmatpush1.msra.mxu0 0.0
    %1384 = vmatprep.subr.mxu0 0.0
    %1385 = vmatpush1.msra.mxu0 0.0
    %1386 = vmatprep.subr.mxu0 0.0
    %1387 = vmatpush1.msra.mxu0 0.0
    %1388 = vmatprep.subr.mxu0 0.0
    %1389 = vmatpush1.msra.mxu0 0.0
    %1390 = vmatprep.subr.mxu0 0.0
    %1391 = vmatpush1.msra.mxu0 0.0
    %1392 = vmatprep.subr.mxu0 0.0
    %1393 = vmatpush1.msra.mxu0 0.0
    %1394 = vmatprep.subr.mxu0 0.0
    %1395 = vmatpush1.msra.mxu0 0.0
    %1396 = vmatprep.subr.mxu0 0.0
    %1397 = vmatpush1.msra.mxu0 0.0
    %1398 = vmatprep.subr.mxu0 0.0
    %1399 = vmatpush1.msra.mxu0 0.0
    %1400 = vmatprep.subr.mxu0 0.0
    %1401 = vmatpush1.msra.mxu0 0.0
    %1402 = vmatprep.subr.mxu0 0.0
    %1403 = vmatpush1.msra.mxu0 0.0
    %1404 = vmatprep.subr.mxu0 0.0
    %1405 = vmatpush1.msra.mxu0 0.0
    %1406 = vmatprep.subr.mxu0 0.0
    %1407 = vmatpush1.msra.mxu0 0.0
    %1408 = vmatprep.subr.mxu0 0.0
    %1409 = vmatpush1.msra.mxu0 0.0
    %1410 = vmatprep.subr.mxu0 0.0
    %1411 = vmatpush1.msra.mxu0 0.0
    %1412 = vmatprep.subr.mxu0 0.0
    %1413 = vmatpush1.msra.mxu0 0.0
    %1414 = vmatprep.subr.mxu0 0.0
    %1415 = vmatpush1.msra.mxu0 0.0
    %1416 = vmatprep.subr.mxu0 0.0
    %1417 = vmatpush1.msra.mxu0 0.0
    %1418 = vmatprep.subr.mxu0 0.0
    %1419 = vmatpush1.msra.mxu0 0.0
    %1420 = vmatprep.subr.mxu0 0.0
    %1421 = vmatpush1.msra.mxu0 0.0
    %1422 = vmatprep.subr.mxu0 0.0
    %1423 = vmatpush1.msra.mxu0 0.0
    %1424 = vmatprep.subr.mxu0 0.0
    %1425 = vmatpush1.msra.mxu0 0.0
    %1426 = vmatprep.subr.mxu0 0.0
    %1427 = vmatpush1.msra.mxu0 0.0
    %1428 = vmatprep.subr.mxu0 0.0
    %1429 = vmatpush1.msra.mxu0 0.0
    %1430 = vmatprep.subr.mxu0 0.0
    %1431 = vmatpush1.msra.mxu0 0.0
    %1432 = vmatprep.mubr.f32.mxu0 0.0
    %1433 = vmatmul.mubr.f32.gmra.mrb[0].mxu0 %v1366
    %v1434 = vpop.f32.mrb[0].mxu0
    %v1435 = vadd.f32 0.0, %v1434
    %v1436 = vpop.f32.mrb[0].mxu0
    %1437 = vdwg.mxu0
    %1438 = vrot.lane.b32.xlu0 %v506, 64
    %v1439 = vpop.permute.xlu0 %1438
    %v1442 = vsel %vm673, %v1361, 0
    %1444 = vmatprep.subr.mxu0 0.0
    %1445 = vmatpush1.msra.mxu0 %v1439
    %1446 = vmatprep.subr.mxu0 0.0
    %1447 = vmatpush1.msra.mxu0 0.0
    %1448 = vmatprep.subr.mxu0 0.0
    %1449 = vmatpush1.msra.mxu0 0.0
    %1450 = vmatprep.subr.mxu0 0.0
    %1451 = vmatpush1.msra.mxu0 0.0
    %1452 = vmatprep.subr.mxu0 0.0
    %1453 = vmatpush1.msra.mxu0 0.0
    %1454 = vmatprep.subr.mxu0 0.0
    %1455 = vmatpush1.msra.mxu0 0.0
    %1456 = vmatprep.subr.mxu0 0.0
    %1457 = vmatpush1.msra.mxu0 0.0
    %1458 = vmatprep.subr.mxu0 0.0
    %1459 = vmatpush1.msra.mxu0 0.0
    %1460 = vmatprep.subr.mxu0 0.0
    %1461 = vmatpush1.msra.mxu0 0.0
    %1462 = vmatprep.subr.mxu0 0.0
    %1463 = vmatpush1.msra.mxu0 0.0
    %1464 = vmatprep.subr.mxu0 0.0
    %1465 = vmatpush1.msra.mxu0 0.0
    %1466 = vmatprep.subr.mxu0 0.0
    %1467 = vmatpush1.msra.mxu0 0.0
    %1468 = vmatprep.subr.mxu0 0.0
    %1469 = vmatpush1.msra.mxu0 0.0
    %1470 = vmatprep.subr.mxu0 0.0
    %1471 = vmatpush1.msra.mxu0 0.0
    %1472 = vmatprep.subr.mxu0 0.0
    %1473 = vmatpush1.msra.mxu0 0.0
    %1474 = vmatprep.subr.mxu0 0.0
    %1475 = vmatpush1.msra.mxu0 0.0
    %1476 = vmatprep.subr.mxu0 0.0
    %1477 = vmatpush1.msra.mxu0 0.0
    %1478 = vmatprep.subr.mxu0 0.0
    %1479 = vmatpush1.msra.mxu0 0.0
    %1480 = vmatprep.subr.mxu0 0.0
    %1481 = vmatpush1.msra.mxu0 0.0
    %1482 = vmatprep.subr.mxu0 0.0
    %1483 = vmatpush1.msra.mxu0 0.0
    %1484 = vmatprep.subr.mxu0 0.0
    %1485 = vmatpush1.msra.mxu0 0.0
    %1486 = vmatprep.subr.mxu0 0.0
    %1487 = vmatpush1.msra.mxu0 0.0
    %1488 = vmatprep.subr.mxu0 0.0
    %1489 = vmatpush1.msra.mxu0 0.0
    %1490 = vmatprep.subr.mxu0 0.0
    %1491 = vmatpush1.msra.mxu0 0.0
    %1492 = vmatprep.subr.mxu0 0.0
    %1493 = vmatpush1.msra.mxu0 0.0
    %1494 = vmatprep.subr.mxu0 0.0
    %1495 = vmatpush1.msra.mxu0 0.0
    %1496 = vmatprep.subr.mxu0 0.0
    %1497 = vmatpush1.msra.mxu0 0.0
    %1498 = vmatprep.subr.mxu0 0.0
    %1499 = vmatpush1.msra.mxu0 0.0
    %1500 = vmatprep.subr.mxu0 0.0
    %1501 = vmatpush1.msra.mxu0 0.0
    %1502 = vmatprep.subr.mxu0 0.0
    %1503 = vmatpush1.msra.mxu0 0.0
    %1504 = vmatprep.subr.mxu0 0.0
    %1505 = vmatpush1.msra.mxu0 0.0
    %1506 = vmatprep.subr.mxu0 0.0
    %1507 = vmatpush1.msra.mxu0 0.0
    %1508 = vmatprep.mubr.f32.mxu0 0.0
    %1509 = vmatmul.mubr.f32.gmra.mrb[0].mxu0 %v1442
    %v1510 = vpop.f32.mrb[0].mxu0
    %v1511 = vadd.f32 0.0, %v1510
    %v1512 = vpop.f32.mrb[0].mxu0
    %1513 = vdwg.mxu0
    %1514 = vrot.lane.b32.xlu0 %v516, 32
    %v1515 = vpop.permute.xlu0 %1514
    %1516 = vrot.lane.b32.xlu0 %v426, 32
    %v1517 = vpop.permute.xlu0 %1516
    %v1518 = vsel %vm518, %v1515, 0
    %v1520 = vsel %vm518, %v1517, 0
    %1522 = vmatprep.subr.mxu0 0.0
    %1523 = vmatpush1.xpose.msra.mxu0 %v1520
    %1524 = vmatprep.subr.mxu0 0.0
    %1525 = vmatpush1.xpose.msra.mxu0 0.0
    %1526 = vmatprep.subr.mxu0 0.0
    %1527 = vmatpush1.xpose.msra.mxu0 0.0
    %1528 = vmatprep.subr.mxu0 0.0
    %1529 = vmatpush1.xpose.msra.mxu0 0.0
    %1530 = vmatprep.subr.mxu0 0.0
    %1531 = vmatpush1.xpose.msra.mxu0 0.0
    %1532 = vmatprep.subr.mxu0 0.0
    %1533 = vmatpush1.xpose.msra.mxu0 0.0
    %1534 = vmatprep.subr.mxu0 0.0
    %1535 = vmatpush1.xpose.msra.mxu0 0.0
    %1536 = vmatprep.subr.mxu0 0.0
    %1537 = vmatpush1.xpose.msra.mxu0 0.0
    %1538 = vmatprep.subr.mxu0 0.0
    %1539 = vmatpush1.xpose.msra.mxu0 0.0
    %1540 = vmatprep.subr.mxu0 0.0
    %1541 = vmatpush1.xpose.msra.mxu0 0.0
    %1542 = vmatprep.subr.mxu0 0.0
    %1543 = vmatpush1.xpose.msra.mxu0 0.0
    %1544 = vmatprep.subr.mxu0 0.0
    %1545 = vmatpush1.xpose.msra.mxu0 0.0
    %1546 = vmatprep.subr.mxu0 0.0
    %1547 = vmatpush1.xpose.msra.mxu0 0.0
    %1548 = vmatprep.subr.mxu0 0.0
    %1549 = vmatpush1.xpose.msra.mxu0 0.0
    %1550 = vmatprep.subr.mxu0 0.0
    %1551 = vmatpush1.xpose.msra.mxu0 0.0
    %1552 = vmatprep.subr.mxu0 0.0
    %1553 = vmatpush1.xpose.msra.mxu0 0.0
    %1554 = vmatprep.subr.mxu0 0.0
    %1555 = vmatpush1.xpose.msra.mxu0 0.0
    %1556 = vmatprep.subr.mxu0 0.0
    %1557 = vmatpush1.xpose.msra.mxu0 0.0
    %1558 = vmatprep.subr.mxu0 0.0
    %1559 = vmatpush1.xpose.msra.mxu0 0.0
    %1560 = vmatprep.subr.mxu0 0.0
    %1561 = vmatpush1.xpose.msra.mxu0 0.0
    %1562 = vmatprep.subr.mxu0 0.0
    %1563 = vmatpush1.xpose.msra.mxu0 0.0
    %1564 = vmatprep.subr.mxu0 0.0
    %1565 = vmatpush1.xpose.msra.mxu0 0.0
    %1566 = vmatprep.subr.mxu0 0.0
    %1567 = vmatpush1.xpose.msra.mxu0 0.0
    %1568 = vmatprep.subr.mxu0 0.0
    %1569 = vmatpush1.xpose.msra.mxu0 0.0
    %1570 = vmatprep.subr.mxu0 0.0
    %1571 = vmatpush1.xpose.msra.mxu0 0.0
    %1572 = vmatprep.subr.mxu0 0.0
    %1573 = vmatpush1.xpose.msra.mxu0 0.0
    %1574 = vmatprep.subr.mxu0 0.0
    %1575 = vmatpush1.xpose.msra.mxu0 0.0
    %1576 = vmatprep.subr.mxu0 0.0
    %1577 = vmatpush1.xpose.msra.mxu0 0.0
    %1578 = vmatprep.subr.mxu0 0.0
    %1579 = vmatpush1.xpose.msra.mxu0 0.0
    %1580 = vmatprep.subr.mxu0 0.0
    %1581 = vmatpush1.xpose.msra.mxu0 0.0
    %1582 = vmatprep.subr.mxu0 0.0
    %1583 = vmatpush1.xpose.msra.mxu0 0.0
    %1584 = vmatprep.subr.mxu0 0.0
    %1585 = vmatpush1.xpose.msra.mxu0 0.0
    %1586 = vmatprep.mubr.f32.mxu0 0.0
    %1587 = vmatmul.mubr.f32.gmra.mrb[0].mxu0 %v1518
    %v1588 = vpop.f32.mrb[0].mxu0
    %v1589 = vadd.f32 0.0, %v1588
    %v1590 = vpop.f32.mrb[0].mxu0
    %1591 = vdwg.mxu0
    %1592 = vrot.lane.b32.xlu0 %v517, 32
    %v1593 = vpop.permute.xlu0 %1592
    %1594 = vrot.lane.b32.xlu0 %v432, 32
    %v1595 = vpop.permute.xlu0 %1594
    %v1596 = vsel %vm518, %v1593, 0
    %v1598 = vsel %vm518, %v1595, 0
    %1600 = vmatprep.subr.mxu0 0.0
    %1601 = vmatpush1.xpose.msra.mxu0 %v1598
    %1602 = vmatprep.subr.mxu0 0.0
    %1603 = vmatpush1.xpose.msra.mxu0 0.0
    %1604 = vmatprep.subr.mxu0 0.0
    %1605 = vmatpush1.xpose.msra.mxu0 0.0
    %1606 = vmatprep.subr.mxu0 0.0
    %1607 = vmatpush1.xpose.msra.mxu0 0.0
    %1608 = vmatprep.subr.mxu0 0.0
    %1609 = vmatpush1.xpose.msra.mxu0 0.0
    %1610 = vmatprep.subr.mxu0 0.0
    %1611 = vmatpush1.xpose.msra.mxu0 0.0
    %1612 = vmatprep.subr.mxu0 0.0
    %1613 = vmatpush1.xpose.msra.mxu0 0.0
    %1614 = vmatprep.subr.mxu0 0.0
    %1615 = vmatpush1.xpose.msra.mxu0 0.0
    %1616 = vmatprep.subr.mxu0 0.0
    %1617 = vmatpush1.xpose.msra.mxu0 0.0
    %1618 = vmatprep.subr.mxu0 0.0
    %1619 = vmatpush1.xpose.msra.mxu0 0.0
    %1620 = vmatprep.subr.mxu0 0.0
    %1621 = vmatpush1.xpose.msra.mxu0 0.0
    %1622 = vmatprep.subr.mxu0 0.0
    %1623 = vmatpush1.xpose.msra.mxu0 0.0
    %1624 = vmatprep.subr.mxu0 0.0
    %1625 = vmatpush1.xpose.msra.mxu0 0.0
    %1626 = vmatprep.subr.mxu0 0.0
    %1627 = vmatpush1.xpose.msra.mxu0 0.0
    %1628 = vmatprep.subr.mxu0 0.0
    %1629 = vmatpush1.xpose.msra.mxu0 0.0
    %1630 = vmatprep.subr.mxu0 0.0
    %1631 = vmatpush1.xpose.msra.mxu0 0.0
    %1632 = vmatprep.subr.mxu0 0.0
    %1633 = vmatpush1.xpose.msra.mxu0 0.0
    %1634 = vmatprep.subr.mxu0 0.0
    %1635 = vmatpush1.xpose.msra.mxu0 0.0
    %1636 = vmatprep.subr.mxu0 0.0
    %1637 = vmatpush1.xpose.msra.mxu0 0.0
    %1638 = vmatprep.subr.mxu0 0.0
    %1639 = vmatpush1.xpose.msra.mxu0 0.0
    %1640 = vmatprep.subr.mxu0 0.0
    %1641 = vmatpush1.xpose.msra.mxu0 0.0
    %1642 = vmatprep.subr.mxu0 0.0
    %1643 = vmatpush1.xpose.msra.mxu0 0.0
    %1644 = vmatprep.subr.mxu0 0.0
    %1645 = vmatpush1.xpose.msra.mxu0 0.0
    %1646 = vmatprep.subr.mxu0 0.0
    %1647 = vmatpush1.xpose.msra.mxu0 0.0
    %1648 = vmatprep.subr.mxu0 0.0
    %1649 = vmatpush1.xpose.msra.mxu0 0.0
    %1650 = vmatprep.subr.mxu0 0.0
    %1651 = vmatpush1.xpose.msra.mxu0 0.0
    %1652 = vmatprep.subr.mxu0 0.0
    %1653 = vmatpush1.xpose.msra.mxu0 0.0
    %1654 = vmatprep.subr.mxu0 0.0
    %1655 = vmatpush1.xpose.msra.mxu0 0.0
    %1656 = vmatprep.subr.mxu0 0.0
    %1657 = vmatpush1.xpose.msra.mxu0 0.0
    %1658 = vmatprep.subr.mxu0 0.0
    %1659 = vmatpush1.xpose.msra.mxu0 0.0
    %1660 = vmatprep.subr.mxu0 0.0
    %1661 = vmatpush1.xpose.msra.mxu0 0.0
    %1662 = vmatprep.subr.mxu0 0.0
    %1663 = vmatpush1.xpose.msra.mxu0 0.0
    %1664 = vmatprep.mubr.f32.mxu0 0.0
    %1665 = vmatmul.mubr.f32.gmra.mrb[0].mxu0 %v1596
    %v1666 = vpop.f32.mrb[0].mxu0
    %v1667 = vadd.f32 0.0, %v1666
    %v1668 = vpop.f32.mrb[0].mxu0
    %1669 = vdwg.mxu0
    %v1670 = vmul.f32 %v1589, 0.17677669
    %v1671 = vmul.f32 %v1667, 0.17677669
    %v1672 = vsel %vm673, %v1670, -inf
    %1673 = vmax.xlane.f32.xlu0 %v1672
    %v1674 = vpop.xlane.xlu0 %1673
    %v1675 = vsel %vm673, %v1671, -inf
    %1676 = vmax.xlane.f32.xlu0 %v1675
    %v1677 = vpop.xlane.xlu0 %1676
    %v1678 = vsub.f32 %v1670, %v1674
    %v1679 = vsub.f32 %v1671, %v1677
    %v1680 = vmul.f32 %v1678, 1.442695
    %v1681 = vpow.pop %v1680
    %v1682 = vmul.f32 %v1679, 1.442695
    %v1683 = vpow.pop %v1682
    %v1684 = vsel %vm673, %v1681, 0.0
    %1685 = vadd.xlane.f32.xlu0 %v1684
    %v1686 = vpop.xlane.xlu0 %1685
    %v1687 = vsel %vm673, %v1683, 0.0
    %1688 = vadd.xlane.f32.xlu0 %v1687
    %v1689 = vpop.xlane.xlu0 %1688
    %v1690 = vrcp.pop %v1686
    %v1691 = vmul.f32 1.0, %v1690
    %v1692 = vrcp.pop %v1689
    %v1693 = vmul.f32 1.0, %v1692
    %v1694 = vmul.f32 %v1681, %v1691
    %v1695 = vmul.f32 %v1683, %v1693
    %1696 = vrot.lane.b32.xlu0 %v501, 32
    %v1697 = vpop.permute.xlu0 %1696
    %v1700 = vsel %vm673, %v1694, 0
    %1702 = vmatprep.subr.mxu0 0.0
    %1703 = vmatpush1.msra.mxu0 %v1697
    %1704 = vmatprep.subr.mxu0 0.0
    %1705 = vmatpush1.msra.mxu0 0.0
    %1706 = vmatprep.subr.mxu0 0.0
    %1707 = vmatpush1.msra.mxu0 0.0
    %1708 = vmatprep.subr.mxu0 0.0
    %1709 = vmatpush1.msra.mxu0 0.0
    %1710 = vmatprep.subr.mxu0 0.0
    %1711 = vmatpush1.msra.mxu0 0.0
    %1712 = vmatprep.subr.mxu0 0.0
    %1713 = vmatpush1.msra.mxu0 0.0
    %1714 = vmatprep.subr.mxu0 0.0
    %1715 = vmatpush1.msra.mxu0 0.0
    %1716 = vmatprep.subr.mxu0 0.0
    %1717 = vmatpush1.msra.mxu0 0.0
    %1718 = vmatprep.subr.mxu0 0.0
    %1719 = vmatpush1.msra.mxu0 0.0
    %1720 = vmatprep.subr.mxu0 0.0
    %1721 = vmatpush1.msra.mxu0 0.0
    %1722 = vmatprep.subr.mxu0 0.0
    %1723 = vmatpush1.msra.mxu0 0.0
    %1724 = vmatprep.subr.mxu0 0.0
    %1725 = vmatpush1.msra.mxu0 0.0
    %1726 = vmatprep.subr.mxu0 0.0
    %1727 = vmatpush1.msra.mxu0 0.0
    %1728 = vmatprep.subr.mxu0 0.0
    %1729 = vmatpush1.msra.mxu0 0.0
    %1730 = vmatprep.subr.mxu0 0.0
    %1731 = vmatpush1.msra.mxu0 0.0
    %1732 = vmatprep.subr.mxu0 0.0
    %1733 = vmatpush1.msra.mxu0 0.0
    %1734 = vmatprep.subr.mxu0 0.0
    %1735 = vmatpush1.msra.mxu0 0.0
    %1736 = vmatprep.subr.mxu0 0.0
    %1737 = vmatpush1.msra.mxu0 0.0
    %1738 = vmatprep.subr.mxu0 0.0
    %1739 = vmatpush1.msra.mxu0 0.0
    %1740 = vmatprep.subr.mxu0 0.0
    %1741 = vmatpush1.msra.mxu0 0.0
    %1742 = vmatprep.subr.mxu0 0.0
    %1743 = vmatpush1.msra.mxu0 0.0
    %1744 = vmatprep.subr.mxu0 0.0
    %1745 = vmatpush1.msra.mxu0 0.0
    %1746 = vmatprep.subr.mxu0 0.0
    %1747 = vmatpush1.msra.mxu0 0.0
    %1748 = vmatprep.subr.mxu0 0.0
    %1749 = vmatpush1.msra.mxu0 0.0
    %1750 = vmatprep.subr.mxu0 0.0
    %1751 = vmatpush1.msra.mxu0 0.0
    %1752 = vmatprep.subr.mxu0 0.0
    %1753 = vmatpush1.msra.mxu0 0.0
    %1754 = vmatprep.subr.mxu0 0.0
    %1755 = vmatpush1.msra.mxu0 0.0
    %1756 = vmatprep.subr.mxu0 0.0
    %1757 = vmatpush1.msra.mxu0 0.0
    %1758 = vmatprep.subr.mxu0 0.0
    %1759 = vmatpush1.msra.mxu0 0.0
    %1760 = vmatprep.subr.mxu0 0.0
    %1761 = vmatpush1.msra.mxu0 0.0
    %1762 = vmatprep.subr.mxu0 0.0
    %1763 = vmatpush1.msra.mxu0 0.0
    %1764 = vmatprep.subr.mxu0 0.0
    %1765 = vmatpush1.msra.mxu0 0.0
    %1766 = vmatprep.mubr.f32.mxu0 0.0
    %1767 = vmatmul.mubr.f32.gmra.mrb[0].mxu0 %v1700
    %v1768 = vpop.f32.mrb[0].mxu0
    %v1769 = vadd.f32 0.0, %v1768
    %v1770 = vpop.f32.mrb[0].mxu0
    %1771 = vdwg.mxu0
    %1772 = vrot.lane.b32.xlu0 %v506, 32
    %v1773 = vpop.permute.xlu0 %1772
    %v1776 = vsel %vm673, %v1695, 0
    %1778 = vmatprep.subr.mxu0 0.0
    %1779 = vmatpush1.msra.mxu0 %v1773
    %1780 = vmatprep.subr.mxu0 0.0
    %1781 = vmatpush1.msra.mxu0 0.0
    %1782 = vmatprep.subr.mxu0 0.0
    %1783 = vmatpush1.msra.mxu0 0.0
    %1784 = vmatprep.subr.mxu0 0.0
    %1785 = vmatpush1.msra.mxu0 0.0
    %1786 = vmatprep.subr.mxu0 0.0
    %1787 = vmatpush1.msra.mxu0 0.0
    %1788 = vmatprep.subr.mxu0 0.0
    %1789 = vmatpush1.msra.mxu0 0.0
    %1790 = vmatprep.subr.mxu0 0.0
    %1791 = vmatpush1.msra.mxu0 0.0
    %1792 = vmatprep.subr.mxu0 0.0
    %1793 = vmatpush1.msra.mxu0 0.0
    %1794 = vmatprep.subr.mxu0 0.0
    %1795 = vmatpush1.msra.mxu0 0.0
    %1796 = vmatprep.subr.mxu0 0.0
    %1797 = vmatpush1.msra.mxu0 0.0
    %1798 = vmatprep.subr.mxu0 0.0
    %1799 = vmatpush1.msra.mxu0 0.0
    %1800 = vmatprep.subr.mxu0 0.0
    %1801 = vmatpush1.msra.mxu0 0.0
    %1802 = vmatprep.subr.mxu0 0.0
    %1803 = vmatpush1.msra.mxu0 0.0
    %1804 = vmatprep.subr.mxu0 0.0
    %1805 = vmatpush1.msra.mxu0 0.0
    %1806 = vmatprep.subr.mxu0 0.0
    %1807 = vmatpush1.msra.mxu0 0.0
    %1808 = vmatprep.subr.mxu0 0.0
    %1809 = vmatpush1.msra.mxu0 0.0
    %1810 = vmatprep.subr.mxu0 0.0
    %1811 = vmatpush1.msra.mxu0 0.0
    %1812 = vmatprep.subr.mxu0 0.0
    %1813 = vmatpush1.msra.mxu0 0.0
    %1814 = vmatprep.subr.mxu0 0.0
    %1815 = vmatpush1.msra.mxu0 0.0
    %1816 = vmatprep.subr.mxu0 0.0
    %1817 = vmatpush1.msra.mxu0 0.0
    %1818 = vmatprep.subr.mxu0 0.0
    %1819 = vmatpush1.msra.mxu0 0.0
    %1820 = vmatprep.subr.mxu0 0.0
    %1821 = vmatpush1.msra.mxu0 0.0
    %1822 = vmatprep.subr.mxu0 0.0
    %1823 = vmatpush1.msra.mxu0 0.0
    %1824 = vmatprep.subr.mxu0 0.0
    %1825 = vmatpush1.msra.mxu0 0.0
    %1826 = vmatprep.subr.mxu0 0.0
    %1827 = vmatpush1.msra.mxu0 0.0
    %1828 = vmatprep.subr.mxu0 0.0
    %1829 = vmatpush1.msra.mxu0 0.0
    %1830 = vmatprep.subr.mxu0 0.0
    %1831 = vmatpush1.msra.mxu0 0.0
    %1832 = vmatprep.subr.mxu0 0.0
    %1833 = vmatpush1.msra.mxu0 0.0
    %1834 = vmatprep.subr.mxu0 0.0
    %1835 = vmatpush1.msra.mxu0 0.0
    %1836 = vmatprep.subr.mxu0 0.0
    %1837 = vmatpush1.msra.mxu0 0.0
    %1838 = vmatprep.subr.mxu0 0.0
    %1839 = vmatpush1.msra.mxu0 0.0
    %1840 = vmatprep.subr.mxu0 0.0
    %1841 = vmatpush1.msra.mxu0 0.0
    %1842 = vmatprep.mubr.f32.mxu0 0.0
    %1843 = vmatmul.mubr.f32.gmra.mrb[0].mxu0 %v1776
    %v1844 = vpop.f32.mrb[0].mxu0
    %v1845 = vadd.f32 0.0, %v1844
    %v1846 = vpop.f32.mrb[0].mxu0
    %1847 = vdwg.mxu0
    %1850 = vrot.lane.b32.xlu0 %v1100, 32
    %v1851 = vpop.permute.xlu0 %1850
    %1852 = vrot.lane.b32.xlu0 %v1177, 32
    %v1853 = vpop.permute.xlu0 %1852
    %1858 = vrot.lane.b32.xlu0 %v1435, 64
    %v1859 = vpop.permute.xlu0 %1858
    %1860 = vrot.lane.b32.xlu0 %v1511, 64
    %v1861 = vpop.permute.xlu0 %1860
    %1866 = vrot.lane.b32.xlu0 %v1769, 96
    %v1867 = vpop.permute.xlu0 %1866
    %1868 = vrot.lane.b32.xlu0 %v1845, 96
    %v1869 = vpop.permute.xlu0 %1868
    %v1872 = vsel %vm518, %v768, %v1851
    %v1873 = vsel %vm518, %v841, %v1853
    %vm1874 = vcmask 523264
    %v1875 = vsel %vm1874, %v1872, %v1859
    %v1876 = vsel %vm1874, %v1873, %v1861
    %vm1877 = vcmask 785408
    %v1878 = vsel %vm1877, %v1875, %v1867
    %v1879 = vsel %vm1877, %v1876, %v1869
    %v1880 = vld [vmem:[#allocation11] sm:$0xff]
    %v1881 = vld [vmem:[#allocation11 + $0x8] sm:$0xff]
    %v1882 = vld [vmem:[#allocation11 + $0x10] sm:$0xff]
    %v1883 = vld [vmem:[#allocation11 + $0x18] sm:$0xff]
    %v1884 = vld [vmem:[#allocation11 + $0x20] sm:$0xff]
    %v1885 = vld [vmem:[#allocation11 + $0x28] sm:$0xff]
    %v1886 = vld [vmem:[#allocation11 + $0x30] sm:$0xff]
    %v1887 = vld [vmem:[#allocation11 + $0x38] sm:$0xff]
    %v1888 = vld [vmem:[#allocation11 + $0x40] sm:$0xff]
    %v1889 = vld [vmem:[#allocation11 + $0x48] sm:$0xff]
    %v1890 = vld [vmem:[#allocation11 + $0x50] sm:$0xff]
    %v1891 = vld [vmem:[#allocation11 + $0x58] sm:$0xff]
    %v1892 = vld [vmem:[#allocation11 + $0x60] sm:$0xff]
    %v1893 = vld [vmem:[#allocation11 + $0x68] sm:$0xff]
    %v1894 = vld [vmem:[#allocation11 + $0x70] sm:$0xff]
    %v1895 = vld [vmem:[#allocation11 + $0x78] sm:$0xff]
    %1896 = vmatprep.subr.mxu0 0.0
    %1897 = vmatpush1.msra.mxu0 %v1880
    %1898 = vmatprep.subr.mxu0 0.0
    %1899 = vmatpush1.msra.mxu0 %v1881
    %1900 = vmatprep.subr.mxu0 0.0
    %1901 = vmatpush1.msra.mxu0 %v1882
    %1902 = vmatprep.subr.mxu0 0.0
    %1903 = vmatpush1.msra.mxu0 %v1883
    %1904 = vmatprep.subr.mxu0 0.0
    %1905 = vmatpush1.msra.mxu0 %v1884
    %1906 = vmatprep.subr.mxu0 0.0
    %1907 = vmatpush1.msra.mxu0 %v1885
    %1908 = vmatprep.subr.mxu0 0.0
    %1909 = vmatpush1.msra.mxu0 %v1886
    %1910 = vmatprep.subr.mxu0 0.0
    %1911 = vmatpush1.msra.mxu0 %v1887
    %1912 = vmatprep.subr.mxu0 0.0
    %1913 = vmatpush1.msra.mxu0 %v1888
    %1914 = vmatprep.subr.mxu0 0.0
    %1915 = vmatpush1.msra.mxu0 %v1889
    %1916 = vmatprep.subr.mxu0 0.0
    %1917 = vmatpush1.msra.mxu0 %v1890
    %1918 = vmatprep.subr.mxu0 0.0
    %1919 = vmatpush1.msra.mxu0 %v1891
    %1920 = vmatprep.subr.mxu0 0.0
    %1921 = vmatpush1.msra.mxu0 %v1892
    %1922 = vmatprep.subr.mxu0 0.0
    %1923 = vmatpush1.msra.mxu0 %v1893
    %1924 = vmatprep.subr.mxu0 0.0
    %1925 = vmatpush1.msra.mxu0 %v1894
    %1926 = vmatprep.subr.mxu0 0.0
    %1927 = vmatpush1.msra.mxu0 %v1895
    %1928 = vmatprep.subr.mxu0 0.0
    %1929 = vmatpush1.msra.mxu0 0.0
    %1930 = vmatprep.subr.mxu0 0.0
    %1931 = vmatpush1.msra.mxu0 0.0
    %1932 = vmatprep.subr.mxu0 0.0
    %1933 = vmatpush1.msra.mxu0 0.0
    %1934 = vmatprep.subr.mxu0 0.0
    %1935 = vmatpush1.msra.mxu0 0.0
    %1936 = vmatprep.subr.mxu0 0.0
    %1937 = vmatpush1.msra.mxu0 0.0
    %1938 = vmatprep.subr.mxu0 0.0
    %1939 = vmatpush1.msra.mxu0 0.0
    %1940 = vmatprep.subr.mxu0 0.0
    %1941 = vmatpush1.msra.mxu0 0.0
    %1942 = vmatprep.subr.mxu0 0.0
    %1943 = vmatpush1.msra.mxu0 0.0
    %1944 = vmatprep.subr.mxu0 0.0
    %1945 = vmatpush1.msra.mxu0 0.0
    %1946 = vmatprep.subr.mxu0 0.0
    %1947 = vmatpush1.msra.mxu0 0.0
    %1948 = vmatprep.subr.mxu0 0.0
    %1949 = vmatpush1.msra.mxu0 0.0
    %1950 = vmatprep.subr.mxu0 0.0
    %1951 = vmatpush1.msra.mxu0 0.0
    %1952 = vmatprep.subr.mxu0 0.0
    %1953 = vmatpush1.msra.mxu0 0.0
    %1954 = vmatprep.subr.mxu0 0.0
    %1955 = vmatpush1.msra.mxu0 0.0
    %1956 = vmatprep.subr.mxu0 0.0
    %1957 = vmatpush1.msra.mxu0 0.0
    %1958 = vmatprep.subr.mxu0 0.0
    %1959 = vmatpush1.msra.mxu0 0.0
    %1960 = vmatprep.mubr.f32.mxu0 0.0
    %1961 = vmatmul.mubr.f32.gmra.mrb[0].mxu0 %v1878
    %v1962 = vpop.f32.mrb[0].mxu0
    %v1963 = vadd.f32 0.0, %v1962
    %v1964 = vpop.f32.mrb[0].mxu0
    %1965 = vmatprep.mubr.f32.mxu0 0.0
    %1966 = vmatmul.mubr.f32.gmra.mrb[0].mxu0 %v1879
    %v1967 = vpop.f32.mrb[0].mxu0
    %v1968 = vadd.f32 0.0, %v1967
    %v1969 = vpop.f32.mrb[0].mxu0
    %1970 = vdwg.mxu0
    %v1971 = vadd.f32 %v250, %v1963
    %v1972 = vadd.f32 %v251, %v1968
    %v1973 = vld [vmem:[#allocation13] sm:$0x1]
    %v1975 = vlaneseq
    %v1976 = vshrl.u32 %v1975, 7
    %v1977 = vsub.s32 0, %v1976
    %v1978 = vrot.slane %v1973, %v1977
    %v1980 = vadd.f32 %v1971, %v1978
    %v1981 = vadd.f32 %v1972, %v1978
    %v1982 = vld [vmem:[#allocation14] sm:$0x1]
    %v1983 = vld [vmem:[#allocation16] sm:$0x1]
    %1984 = vadd.xlane.f32.xlu0 %v1980
    %v1985 = vpop.xlane.xlu0 %1984
    %1986 = vadd.xlane.f32.xlu0 %v1981
    %v1987 = vpop.xlane.xlu0 %1986
    %v1988 = vmul.f32 %v1985, %v258
    %v1989 = vmul.f32 %v1987, %v258
    %v1990 = vsub.f32 %v1980, %v1988
    %v1991 = vsub.f32 %v1981, %v1989
    %v1992 = vmul.f32 %v1990, %v1990
    %v1993 = vmul.f32 %v1991, %v1991
    %1994 = vadd.xlane.f32.xlu0 %v1992
    %v1995 = vpop.xlane.xlu0 %1994
    %1996 = vadd.xlane.f32.xlu0 %v1993
    %v1997 = vpop.xlane.xlu0 %1996
    %v1998 = vmul.f32 %v1995, 0.007874016
    %v1999 = vmul.f32 %v1997, 0.007874016
    %v2000 = vrsqrt.pop %v1998
    %v2001 = vmul.f32 %v1998, %v2000
    %vm2002 = vcmp.eq.f32.partialorder %v1998, inf
    %v2003 = vsel %vm2002, %v1998, %v2001
    %vm2004 = vcmp.eq.f32.partialorder %v1998, 0.0
    %v2005 = vand.u32 %v1998, 2147483648
    %v2006 = vsel %vm2004, %v2005, %v2003
    %v2007 = vrsqrt.pop %v1999
    %v2008 = vmul.f32 %v1999, %v2007
    %vm2009 = vcmp.eq.f32.partialorder %v1999, inf
    %v2010 = vsel %vm2009, %v1999, %v2008
    %vm2011 = vcmp.eq.f32.partialorder %v1999, 0.0
    %v2012 = vand.u32 %v1999, 2147483648
    %v2013 = vsel %vm2011, %v2012, %v2010
    %v2014 = vadd.f32 %v2006, 1e-06
    %v2015 = vadd.f32 %v2013, 1e-06
    %v2016 = vrcp.pop %v2014
    %v2017 = vmul.f32 1.0, %v2016
    %v2018 = vrcp.pop %v2015
    %v2019 = vmul.f32 1.0, %v2018
    %v2020 = vmul.f32 %v1990, %v2017
    %v2021 = vmul.f32 %v1991, %v2019
    %v2023 = vlaneseq
    %v2024 = vshrl.u32 %v2023, 7
    %v2025 = vsub.s32 0, %v2024
    %v2026 = vrot.slane %v1982, %v2025
    %v2028 = vmul.f32 %v2026, %v2020
    %v2029 = vmul.f32 %v2026, %v2021
    %v2031 = vlaneseq
    %v2032 = vshrl.u32 %v2031, 7
    %v2033 = vsub.s32 0, %v2032
    %v2034 = vrot.slane %v1983, %v2033
    %v2036 = vadd.f32 %v2028, %v2034
    %v2037 = vadd.f32 %v2029, %v2034
    %v2038 = vld [vmem:[#allocation17] sm:$0xff]
    %v2039 = vld [vmem:[#allocation17 + $0x8] sm:$0xff]
    %v2040 = vld [vmem:[#allocation17 + $0x10] sm:$0xff]
    %v2041 = vld [vmem:[#allocation17 + $0x18] sm:$0xff]
    %v2042 = vld [vmem:[#allocation17 + $0x20] sm:$0xff]
    %v2043 = vld [vmem:[#allocation17 + $0x28] sm:$0xff]
    %v2044 = vld [vmem:[#allocation17 + $0x30] sm:$0xff]
    %v2045 = vld [vmem:[#allocation17 + $0x38] sm:$0xff]
    %v2046 = vld [vmem:[#allocation17 + $0x40] sm:$0xff]
    %v2047 = vld [vmem:[#allocation17 + $0x48] sm:$0xff]
    %v2048 = vld [vmem:[#allocation17 + $0x50] sm:$0xff]
    %v2049 = vld [vmem:[#allocation17 + $0x58] sm:$0xff]
    %v2050 = vld [vmem:[#allocation17 + $0x60] sm:$0xff]
    %v2051 = vld [vmem:[#allocation17 + $0x68] sm:$0xff]
    %v2052 = vld [vmem:[#allocation17 + $0x70] sm:$0xff]
    %v2053 = vld [vmem:[#allocation17 + $0x78] sm:$0xff]
    %v2054 = vld [vmem:[#allocation17 + $0x80] sm:$0xff]
    %v2055 = vld [vmem:[#allocation17 + $0x88] sm:$0xff]
    %v2056 = vld [vmem:[#allocation17 + $0x90] sm:$0xff]
    %v2057 = vld [vmem:[#allocation17 + $0x98] sm:$0xff]
    %v2058 = vld [vmem:[#allocation17 + $0xa0] sm:$0xff]
    %v2059 = vld [vmem:[#allocation17 + $0xa8] sm:$0xff]
    %v2060 = vld [vmem:[#allocation17 + $0xb0] sm:$0xff]
    %v2061 = vld [vmem:[#allocation17 + $0xb8] sm:$0xff]
    %v2062 = vld [vmem:[#allocation17 + $0xc0] sm:$0xff]
    %v2063 = vld [vmem:[#allocation17 + $0xc8] sm:$0xff]
    %v2064 = vld [vmem:[#allocation17 + $0xd0] sm:$0xff]
    %v2065 = vld [vmem:[#allocation17 + $0xd8] sm:$0xff]
    %v2066 = vld [vmem:[#allocation17 + $0xe0] sm:$0xff]
    %v2067 = vld [vmem:[#allocation17 + $0xe8] sm:$0xff]
    %v2068 = vld [vmem:[#allocation17 + $0xf0] sm:$0xff]
    %v2069 = vld [vmem:[#allocation17 + $0xf8] sm:$0xff]
    %v2070 = vld [vmem:[#allocation19] sm:$0x3]
    %v2072 = vlaneseq
    %v2073 = vshrl.u32 %v2072, 7
    %v2074 = vsub.s32 0, %v2073
    %v2075 = vrot.slane %v2070, %v2074
    %v2076 = vlaneseq
    %v2077 = vshrl.u32 %v2076, 7
    %v2078 = vsub.s32 1, %v2077
    %v2079 = vrot.slane %v2070, %v2078
    %2082 = vmatprep.subr.mxu0 %v2039
    %2083 = vmatpush1.msra.mxu0 %v2038
    %2084 = vmatprep.subr.mxu0 %v2041
    %2085 = vmatpush1.msra.mxu0 %v2040
    %2086 = vmatprep.subr.mxu0 %v2043
    %2087 = vmatpush1.msra.mxu0 %v2042
    %2088 = vmatprep.subr.mxu0 %v2045
    %2089 = vmatpush1.msra.mxu0 %v2044
    %2090 = vmatprep.subr.mxu0 %v2047
    %2091 = vmatpush1.msra.mxu0 %v2046
    %2092 = vmatprep.subr.mxu0 %v2049
    %2093 = vmatpush1.msra.mxu0 %v2048
    %2094 = vmatprep.subr.mxu0 %v2051
    %2095 = vmatpush1.msra.mxu0 %v2050
    %2096 = vmatprep.subr.mxu0 %v2053
    %2097 = vmatpush1.msra.mxu0 %v2052
    %2098 = vmatprep.subr.mxu0 %v2055
    %2099 = vmatpush1.msra.mxu0 %v2054
    %2100 = vmatprep.subr.mxu0 %v2057
    %2101 = vmatpush1.msra.mxu0 %v2056
    %2102 = vmatprep.subr.mxu0 %v2059
    %2103 = vmatpush1.msra.mxu0 %v2058
    %2104 = vmatprep.subr.mxu0 %v2061
    %2105 = vmatpush1.msra.mxu0 %v2060
    %2106 = vmatprep.subr.mxu0 %v2063
    %2107 = vmatpush1.msra.mxu0 %v2062
    %2108 = vmatprep.subr.mxu0 %v2065
    %2109 = vmatpush1.msra.mxu0 %v2064
    %2110 = vmatprep.subr.mxu0 %v2067
    %2111 = vmatpush1.msra.mxu0 %v2066
    %2112 = vmatprep.subr.mxu0 %v2069
    %2113 = vmatpush1.msra.mxu0 %v2068
    %2114 = vmatprep.subr.mxu0 0.0
    %2115 = vmatpush1.msra.mxu0 0.0
    %2116 = vmatprep.subr.mxu0 0.0
    %2117 = vmatpush1.msra.mxu0 0.0
    %2118 = vmatprep.subr.mxu0 0.0
    %2119 = vmatpush1.msra.mxu0 0.0
    %2120 = vmatprep.subr.mxu0 0.0
    %2121 = vmatpush1.msra.mxu0 0.0
    %2122 = vmatprep.subr.mxu0 0.0
    %2123 = vmatpush1.msra.mxu0 0.0
    %2124 = vmatprep.subr.mxu0 0.0
    %2125 = vmatpush1.msra.mxu0 0.0
    %2126 = vmatprep.subr.mxu0 0.0
    %2127 = vmatpush1.msra.mxu0 0.0
    %2128 = vmatprep.subr.mxu0 0.0
    %2129 = vmatpush1.msra.mxu0 0.0
    %2130 = vmatprep.subr.mxu0 0.0
    %2131 = vmatpush1.msra.mxu0 0.0
    %2132 = vmatprep.subr.mxu0 0.0
    %2133 = vmatpush1.msra.mxu0 0.0
    %2134 = vmatprep.subr.mxu0 0.0
    %2135 = vmatpush1.msra.mxu0 0.0
    %2136 = vmatprep.subr.mxu0 0.0
    %2137 = vmatpush1.msra.mxu0 0.0
    %2138 = vmatprep.subr.mxu0 0.0
    %2139 = vmatpush1.msra.mxu0 0.0
    %2140 = vmatprep.subr.mxu0 0.0
    %2141 = vmatpush1.msra.mxu0 0.0
    %2142 = vmatprep.subr.mxu0 0.0
    %2143 = vmatpush1.msra.mxu0 0.0
    %2144 = vmatprep.subr.mxu0 0.0
    %2145 = vmatpush1.msra.mxu0 0.0
    %2146 = vmatprep.mubr.f32.mxu0 0.0
    %2147 = vmatmul.mubr.f32.gmra.mrb[0].mxu0 %v2036
    %v2148 = vpop.f32.mrb[0].mxu0
    %v2149 = vadd.f32 %v2075, %v2148
    %v2150 = vpop.f32.mrb[0].mxu0
    %v2151 = vadd.f32 %v2079, %v2150
    %2152 = vmatprep.mubr.f32.mxu0 0.0
    %2153 = vmatmul.mubr.f32.gmra.mrb[0].mxu0 %v2037
    %v2154 = vpop.f32.mrb[0].mxu0
    %v2155 = vadd.f32 %v2075, %v2154
    %v2156 = vpop.f32.mrb[0].mxu0
    %v2157 = vadd.f32 %v2079, %v2156
    %2158 = vdwg.mxu0
    %v2159 = vmax.f32 %v2149, 0.0
    %v2160 = vmax.f32 %v2151, 0.0
    %v2161 = vmax.f32 %v2155, 0.0
    %v2162 = vmax.f32 %v2157, 0.0
    %v2163 = vld [vmem:[#allocation20] sm:$0xff]
    %v2164 = vld [vmem:[#allocation20 + $0x8] sm:$0xff]
    %v2165 = vld [vmem:[#allocation20 + $0x10] sm:$0xff]
    %v2166 = vld [vmem:[#allocation20 + $0x18] sm:$0xff]
    %v2167 = vld [vmem:[#allocation20 + $0x20] sm:$0xff]
    %v2168 = vld [vmem:[#allocation20 + $0x28] sm:$0xff]
    %v2169 = vld [vmem:[#allocation20 + $0x30] sm:$0xff]
    %v2170 = vld [vmem:[#allocation20 + $0x38] sm:$0xff]
    %v2171 = vld [vmem:[#allocation20 + $0x40] sm:$0xff]
    %v2172 = vld [vmem:[#allocation20 + $0x48] sm:$0xff]
    %v2173 = vld [vmem:[#allocation20 + $0x50] sm:$0xff]
    %v2174 = vld [vmem:[#allocation20 + $0x58] sm:$0xff]
    %v2175 = vld [vmem:[#allocation20 + $0x60] sm:$0xff]
    %v2176 = vld [vmem:[#allocation20 + $0x68] sm:$0xff]
    %v2177 = vld [vmem:[#allocation20 + $0x70] sm:$0xff]
    %v2178 = vld [vmem:[#allocation20 + $0x78] sm:$0xff]
    %v2179 = vld [vmem:[#allocation20 + $0x80] sm:$0xff]
    %v2180 = vld [vmem:[#allocation20 + $0x88] sm:$0xff]
    %v2181 = vld [vmem:[#allocation20 + $0x90] sm:$0xff]
    %v2182 = vld [vmem:[#allocation20 + $0x98] sm:$0xff]
    %v2183 = vld [vmem:[#allocation20 + $0xa0] sm:$0xff]
    %v2184 = vld [vmem:[#allocation20 + $0xa8] sm:$0xff]
    %v2185 = vld [vmem:[#allocation20 + $0xb0] sm:$0xff]
    %v2186 = vld [vmem:[#allocation20 + $0xb8] sm:$0xff]
    %v2187 = vld [vmem:[#allocation20 + $0xc0] sm:$0xff]
    %v2188 = vld [vmem:[#allocation20 + $0xc8] sm:$0xff]
    %v2189 = vld [vmem:[#allocation20 + $0xd0] sm:$0xff]
    %v2190 = vld [vmem:[#allocation20 + $0xd8] sm:$0xff]
    %v2191 = vld [vmem:[#allocation20 + $0xe0] sm:$0xff]
    %v2192 = vld [vmem:[#allocation20 + $0xe8] sm:$0xff]
    %v2193 = vld [vmem:[#allocation20 + $0xf0] sm:$0xff]
    %v2194 = vld [vmem:[#allocation20 + $0xf8] sm:$0xff]
    %2195 = vmatprep.subr.mxu0 0.0
    %2196 = vmatpush1.msra.mxu0 %v2163
    %2197 = vmatprep.subr.mxu0 0.0
    %2198 = vmatpush1.msra.mxu0 %v2164
    %2199 = vmatprep.subr.mxu0 0.0
    %2200 = vmatpush1.msra.mxu0 %v2165
    %2201 = vmatprep.subr.mxu0 0.0
    %2202 = vmatpush1.msra.mxu0 %v2166
    %2203 = vmatprep.subr.mxu0 0.0
    %2204 = vmatpush1.msra.mxu0 %v2167
    %2205 = vmatprep.subr.mxu0 0.0
    %2206 = vmatpush1.msra.mxu0 %v2168
    %2207 = vmatprep.subr.mxu0 0.0
    %2208 = vmatpush1.msra.mxu0 %v2169
    %2209 = vmatprep.subr.mxu0 0.0
    %2210 = vmatpush1.msra.mxu0 %v2170
    %2211 = vmatprep.subr.mxu0 0.0
    %2212 = vmatpush1.msra.mxu0 %v2171
    %2213 = vmatprep.subr.mxu0 0.0
    %2214 = vmatpush1.msra.mxu0 %v2172
    %2215 = vmatprep.subr.mxu0 0.0
    %2216 = vmatpush1.msra.mxu0 %v2173
    %2217 = vmatprep.subr.mxu0 0.0
    %2218 = vmatpush1.msra.mxu0 %v2174
    %2219 = vmatprep.subr.mxu0 0.0
    %2220 = vmatpush1.msra.mxu0 %v2175
    %2221 = vmatprep.subr.mxu0 0.0
    %2222 = vmatpush1.msra.mxu0 %v2176
    %2223 = vmatprep.subr.mxu0 0.0
    %2224 = vmatpush1.msra.mxu0 %v2177
    %2225 = vmatprep.subr.mxu0 0.0
    %2226 = vmatpush1.msra.mxu0 %v2178
    %2227 = vmatprep.subr.mxu0 0.0
    %2228 = vmatpush1.msra.mxu0 %v2179
    %2229 = vmatprep.subr.mxu0 0.0
    %2230 = vmatpush1.msra.mxu0 %v2180
    %2231 = vmatprep.subr.mxu0 0.0
    %2232 = vmatpush1.msra.mxu0 %v2181
    %2233 = vmatprep.subr.mxu0 0.0
    %2234 = vmatpush1.msra.mxu0 %v2182
    %2235 = vmatprep.subr.mxu0 0.0
    %2236 = vmatpush1.msra.mxu0 %v2183
    %2237 = vmatprep.subr.mxu0 0.0
    %2238 = vmatpush1.msra.mxu0 %v2184
    %2239 = vmatprep.subr.mxu0 0.0
    %2240 = vmatpush1.msra.mxu0 %v2185
    %2241 = vmatprep.subr.mxu0 0.0
    %2242 = vmatpush1.msra.mxu0 %v2186
    %2243 = vmatprep.subr.mxu0 0.0
    %2244 = vmatpush1.msra.mxu0 %v2187
    %2245 = vmatprep.subr.mxu0 0.0
    %2246 = vmatpush1.msra.mxu0 %v2188
    %2247 = vmatprep.subr.mxu0 0.0
    %2248 = vmatpush1.msra.mxu0 %v2189
    %2249 = vmatprep.subr.mxu0 0.0
    %2250 = vmatpush1.msra.mxu0 %v2190
    %2251 = vmatprep.subr.mxu0 0.0
    %2252 = vmatpush1.msra.mxu0 %v2191
    %2253 = vmatprep.subr.mxu0 0.0
    %2254 = vmatpush1.msra.mxu0 %v2192
    %2255 = vmatprep.subr.mxu0 0.0
    %2256 = vmatpush1.msra.mxu0 %v2193
    %2257 = vmatprep.subr.mxu0 0.0
    %2258 = vmatpush1.msra.mxu0 %v2194
    %2259 = vmatprep.mubr.f32.mxu0 %v2160
    %2260 = vmatmul.mubr.f32.gmra.mrb[0].mxu0 %v2159
    %v2261 = vpop.f32.mrb[0].mxu0
    %v2262 = vadd.f32 0.0, %v2261
    %v2263 = vpop.f32.mrb[0].mxu0
    %2264 = vmatprep.mubr.f32.mxu0 %v2162
    %2265 = vmatmul.mubr.f32.gmra.mrb[0].mxu0 %v2161
    %v2266 = vpop.f32.mrb[0].mxu0
    %v2267 = vadd.f32 0.0, %v2266
    %v2268 = vpop.f32.mrb[0].mxu0
    %2269 = vdwg.mxu0
    %v2270 = vadd.f32 %v1980, %v2262
    %v2271 = vadd.f32 %v1981, %v2267
    %v2272 = vld [vmem:[#allocation22] sm:$0x1]
    %v2274 = vlaneseq
    %v2275 = vshrl.u32 %v2274, 7
    %v2276 = vsub.s32 0, %v2275
    %v2277 = vrot.slane %v2272, %v2276
    %v2279 = vadd.f32 %v2270, %v2277
    %v2280 = vadd.f32 %v2271, %v2277
    %s2281 = scalar_lea.vmem [#allocation5], 1
    %v2282 = vld [vmem:[%s2281] sm:$0x1]
    %s2283 = scalar_lea.vmem [#allocation7], 1
    %v2284 = vld [vmem:[%s2283] sm:$0x1]
    %2285 = vadd.xlane.f32.xlu0 %v2279
    %v2286 = vpop.xlane.xlu0 %2285
    %2287 = vadd.xlane.f32.xlu0 %v2280
    %v2288 = vpop.xlane.xlu0 %2287
    %v2289 = vmul.f32 %v2286, %v258
    %v2290 = vmul.f32 %v2288, %v258
    %v2291 = vsub.f32 %v2279, %v2289
    %v2292 = vsub.f32 %v2280, %v2290
    %v2293 = vmul.f32 %v2291, %v2291
    %v2294 = vmul.f32 %v2292, %v2292
    %2295 = vadd.xlane.f32.xlu0 %v2293
    %v2296 = vpop.xlane.xlu0 %2295
    %2297 = vadd.xlane.f32.xlu0 %v2294
    %v2298 = vpop.xlane.xlu0 %2297
    %v2299 = vmul.f32 %v2296, 0.007874016
    %v2300 = vmul.f32 %v2298, 0.007874016
    %v2301 = vrsqrt.pop %v2299
    %v2302 = vmul.f32 %v2299, %v2301
    %vm2303 = vcmp.eq.f32.partialorder %v2299, inf
    %v2304 = vsel %vm2303, %v2299, %v2302
    %vm2305 = vcmp.eq.f32.partialorder %v2299, 0.0
    %v2306 = vand.u32 %v2299, 2147483648
    %v2307 = vsel %vm2305, %v2306, %v2304
    %v2308 = vrsqrt.pop %v2300
    %v2309 = vmul.f32 %v2300, %v2308
    %vm2310 = vcmp.eq.f32.partialorder %v2300, inf
    %v2311 = vsel %vm2310, %v2300, %v2309
    %vm2312 = vcmp.eq.f32.partialorder %v2300, 0.0
    %v2313 = vand.u32 %v2300, 2147483648
    %v2314 = vsel %vm2312, %v2313, %v2311
    %v2315 = vadd.f32 %v2307, 1e-06
    %v2316 = vadd.f32 %v2314, 1e-06
    %v2317 = vrcp.pop %v2315
    %v2318 = vmul.f32 1.0, %v2317
    %v2319 = vrcp.pop %v2316
    %v2320 = vmul.f32 1.0, %v2319
    %v2321 = vmul.f32 %v2291, %v2318
    %v2322 = vmul.f32 %v2292, %v2320
    %v2324 = vlaneseq
    %v2325 = vshrl.u32 %v2324, 7
    %v2326 = vsub.s32 0, %v2325
    %v2327 = vrot.slane %v2282, %v2326
    %v2329 = vmul.f32 %v2327, %v2321
    %v2330 = vmul.f32 %v2327, %v2322
    %v2332 = vlaneseq
    %v2333 = vshrl.u32 %v2332, 7
    %v2334 = vsub.s32 0, %v2333
    %v2335 = vrot.slane %v2284, %v2334
    %v2337 = vadd.f32 %v2329, %v2335
    %v2338 = vadd.f32 %v2330, %v2335
    %s2339 = scalar_lea.vmem [#allocation8], 384
    %v2340 = vld [vmem:[%s2339] sm:$0xff]
    %v2341 = vld [vmem:[%s2339 + $0x8] sm:$0xff]
    %v2342 = vld [vmem:[%s2339 + $0x10] sm:$0xff]
    %v2343 = vld [vmem:[%s2339 + $0x18] sm:$0xff]
    %v2344 = vld [vmem:[%s2339 + $0x20] sm:$0xff]
    %v2345 = vld [vmem:[%s2339 + $0x28] sm:$0xff]
    %v2346 = vld [vmem:[%s2339 + $0x30] sm:$0xff]
    %v2347 = vld [vmem:[%s2339 + $0x38] sm:$0xff]
    %v2348 = vld [vmem:[%s2339 + $0x40] sm:$0xff]
    %v2349 = vld [vmem:[%s2339 + $0x48] sm:$0xff]
    %v2350 = vld [vmem:[%s2339 + $0x50] sm:$0xff]
    %v2351 = vld [vmem:[%s2339 + $0x58] sm:$0xff]
    %v2352 = vld [vmem:[%s2339 + $0x60] sm:$0xff]
    %v2353 = vld [vmem:[%s2339 + $0x68] sm:$0xff]
    %v2354 = vld [vmem:[%s2339 + $0x70] sm:$0xff]
    %v2355 = vld [vmem:[%s2339 + $0x78] sm:$0xff]
    %v2356 = vld [vmem:[%s2339 + $0x80] sm:$0xff]
    %v2357 = vld [vmem:[%s2339 + $0x88] sm:$0xff]
    %v2358 = vld [vmem:[%s2339 + $0x90] sm:$0xff]
    %v2359 = vld [vmem:[%s2339 + $0x98] sm:$0xff]
    %v2360 = vld [vmem:[%s2339 + $0xa0] sm:$0xff]
    %v2361 = vld [vmem:[%s2339 + $0xa8] sm:$0xff]
    %v2362 = vld [vmem:[%s2339 + $0xb0] sm:$0xff]
    %v2363 = vld [vmem:[%s2339 + $0xb8] sm:$0xff]
    %v2364 = vld [vmem:[%s2339 + $0xc0] sm:$0xff]
    %v2365 = vld [vmem:[%s2339 + $0xc8] sm:$0xff]
    %v2366 = vld [vmem:[%s2339 + $0xd0] sm:$0xff]
    %v2367 = vld [vmem:[%s2339 + $0xd8] sm:$0xff]
    %v2368 = vld [vmem:[%s2339 + $0xe0] sm:$0xff]
    %v2369 = vld [vmem:[%s2339 + $0xe8] sm:$0xff]
    %v2370 = vld [vmem:[%s2339 + $0xf0] sm:$0xff]
    %v2371 = vld [vmem:[%s2339 + $0xf8] sm:$0xff]
    %v2372 = vld [vmem:[%s2339 + $0x100] sm:$0xff]
    %v2373 = vld [vmem:[%s2339 + $0x108] sm:$0xff]
    %v2374 = vld [vmem:[%s2339 + $0x110] sm:$0xff]
    %v2375 = vld [vmem:[%s2339 + $0x118] sm:$0xff]
    %v2376 = vld [vmem:[%s2339 + $0x120] sm:$0xff]
    %v2377 = vld [vmem:[%s2339 + $0x128] sm:$0xff]
    %v2378 = vld [vmem:[%s2339 + $0x130] sm:$0xff]
    %v2379 = vld [vmem:[%s2339 + $0x138] sm:$0xff]
    %v2380 = vld [vmem:[%s2339 + $0x140] sm:$0xff]
    %v2381 = vld [vmem:[%s2339 + $0x148] sm:$0xff]
    %v2382 = vld [vmem:[%s2339 + $0x150] sm:$0xff]
    %v2383 = vld [vmem:[%s2339 + $0x158] sm:$0xff]
    %v2384 = vld [vmem:[%s2339 + $0x160] sm:$0xff]
    %v2385 = vld [vmem:[%s2339 + $0x168] sm:$0xff]
    %v2386 = vld [vmem:[%s2339 + $0x170] sm:$0xff]
    %v2387 = vld [vmem:[%s2339 + $0x178] sm:$0xff]
    %2388 = vmatprep.subr.mxu0 %v2341
    %2389 = vmatpush1.msra.mxu0 %v2340
    %2390 = vmatprep.subr.mxu0 %v2344
    %2391 = vmatpush1.msra.mxu0 %v2343
    %2392 = vmatprep.subr.mxu0 %v2347
    %2393 = vmatpush1.msra.mxu0 %v2346
    %2394 = vmatprep.subr.mxu0 %v2350
    %2395 = vmatpush1.msra.mxu0 %v2349
    %2396 = vmatprep.subr.mxu0 %v2353
    %2397 = vmatpush1.msra.mxu0 %v2352
    %2398 = vmatprep.subr.mxu0 %v2356
    %2399 = vmatpush1.msra.mxu0 %v2355
    %2400 = vmatprep.subr.mxu0 %v2359
    %2401 = vmatpush1.msra.mxu0 %v2358
    %2402 = vmatprep.subr.mxu0 %v2362
    %2403 = vmatpush1.msra.mxu0 %v2361
    %2404 = vmatprep.subr.mxu0 %v2365
    %2405 = vmatpush1.msra.mxu0 %v2364
    %2406 = vmatprep.subr.mxu0 %v2368
    %2407 = vmatpush1.msra.mxu0 %v2367
    %2408 = vmatprep.subr.mxu0 %v2371
    %2409 = vmatpush1.msra.mxu0 %v2370
    %2410 = vmatprep.subr.mxu0 %v2374
    %2411 = vmatpush1.msra.mxu0 %v2373
    %2412 = vmatprep.subr.mxu0 %v2377
    %2413 = vmatpush1.msra.mxu0 %v2376
    %2414 = vmatprep.subr.mxu0 %v2380
    %2415 = vmatpush1.msra.mxu0 %v2379
    %2416 = vmatprep.subr.mxu0 %v2383
    %2417 = vmatpush1.msra.mxu0 %v2382
    %2418 = vmatprep.subr.mxu0 %v2386
    %2419 = vmatpush1.msra.mxu0 %v2385
    %2420 = vmatprep.subr.mxu0 0.0
    %2421 = vmatpush1.msra.mxu0 0.0
    %2422 = vmatprep.subr.mxu0 0.0
    %2423 = vmatpush1.msra.mxu0 0.0
    %2424 = vmatprep.subr.mxu0 0.0
    %2425 = vmatpush1.msra.mxu0 0.0
    %2426 = vmatprep.subr.mxu0 0.0
    %2427 = vmatpush1.msra.mxu0 0.0
    %2428 = vmatprep.subr.mxu0 0.0
    %2429 = vmatpush1.msra.mxu0 0.0
    %2430 = vmatprep.subr.mxu0 0.0
    %2431 = vmatpush1.msra.mxu0 0.0
    %2432 = vmatprep.subr.mxu0 0.0
    %2433 = vmatpush1.msra.mxu0 0.0
    %2434 = vmatprep.subr.mxu0 0.0
    %2435 = vmatpush1.msra.mxu0 0.0
    %2436 = vmatprep.subr.mxu0 0.0
    %2437 = vmatpush1.msra.mxu0 0.0
    %2438 = vmatprep.subr.mxu0 0.0
    %2439 = vmatpush1.msra.mxu0 0.0
    %2440 = vmatprep.subr.mxu0 0.0
    %2441 = vmatpush1.msra.mxu0 0.0
    %2442 = vmatprep.subr.mxu0 0.0
    %2443 = vmatpush1.msra.mxu0 0.0
    %2444 = vmatprep.subr.mxu0 0.0
    %2445 = vmatpush1.msra.mxu0 0.0
    %2446 = vmatprep.subr.mxu0 0.0
    %2447 = vmatpush1.msra.mxu0 0.0
    %2448 = vmatprep.subr.mxu0 0.0
    %2449 = vmatpush1.msra.mxu0 0.0
    %2450 = vmatprep.subr.mxu0 0.0
    %2451 = vmatpush1.msra.mxu0 0.0
    %2452 = vmatprep.mubr.f32.mxu0 0.0
    %2453 = vmatmul.mubr.f32.gmra.mrb[0].mxu0 %v2337
    %v2454 = vpop.f32.mrb[0].mxu0
    %v2455 = vadd.f32 0.0, %v2454
    %v2456 = vpop.f32.mrb[0].mxu0
    %v2457 = vadd.f32 0.0, %v2456
    %2458 = vmatprep.mubr.f32.mxu0 0.0
    %2459 = vmatmul.mubr.f32.gmra.mrb[0].mxu0 %v2338
    %v2460 = vpop.f32.mrb[0].mxu0
    %v2461 = vadd.f32 0.0, %v2460
    %v2462 = vpop.f32.mrb[0].mxu0
    %v2463 = vadd.f32 0.0, %v2462
    %2464 = vdwg.mxu0
    %2465 = vmatprep.subr.mxu0 0.0
    %2466 = vmatpush1.msra.mxu0 %v2342
    %2467 = vmatprep.subr.mxu0 0.0
    %2468 = vmatpush1.msra.mxu0 %v2345
    %2469 = vmatprep.subr.mxu0 0.0
    %2470 = vmatpush1.msra.mxu0 %v2348
    %2471 = vmatprep.subr.mxu0 0.0
    %2472 = vmatpush1.msra.mxu0 %v2351
    %2473 = vmatprep.subr.mxu0 0.0
    %2474 = vmatpush1.msra.mxu0 %v2354
    %2475 = vmatprep.subr.mxu0 0.0
    %2476 = vmatpush1.msra.mxu0 %v2357
    %2477 = vmatprep.subr.mxu0 0.0
    %2478 = vmatpush1.msra.mxu0 %v2360
    %2479 = vmatprep.subr.mxu0 0.0
    %2480 = vmatpush1.msra.mxu0 %v2363
    %2481 = vmatprep.subr.mxu0 0.0
    %2482 = vmatpush1.msra.mxu0 %v2366
    %2483 = vmatprep.subr.mxu0 0.0
    %2484 = vmatpush1.msra.mxu0 %v2369
    %2485 = vmatprep.subr.mxu0 0.0
    %2486 = vmatpush1.msra.mxu0 %v2372
    %2487 = vmatprep.subr.mxu0 0.0
    %2488 = vmatpush1.msra.mxu0 %v2375
    %2489 = vmatprep.subr.mxu0 0.0
    %2490 = vmatpush1.msra.mxu0 %v2378
    %2491 = vmatprep.subr.mxu0 0.0
    %2492 = vmatpush1.msra.mxu0 %v2381
    %2493 = vmatprep.subr.mxu0 0.0
    %2494 = vmatpush1.msra.mxu0 %v2384
    %2495 = vmatprep.subr.mxu0 0.0
    %2496 = vmatpush1.msra.mxu0 %v2387
    %2497 = vmatprep.subr.mxu0 0.0
    %2498 = vmatpush1.msra.mxu0 0.0
    %2499 = vmatprep.subr.mxu0 0.0
    %2500 = vmatpush1.msra.mxu0 0.0
    %2501 = vmatprep.subr.mxu0 0.0
    %2502 = vmatpush1.msra.mxu0 0.0
    %2503 = vmatprep.subr.mxu0 0.0
    %2504 = vmatpush1.msra.mxu0 0.0
    %2505 = vmatprep.subr.mxu0 0.0
    %2506 = vmatpush1.msra.mxu0 0.0
    %2507 = vmatprep.subr.mxu0 0.0
    %2508 = vmatpush1.msra.mxu0 0.0
    %2509 = vmatprep.subr.mxu0 0.0
    %2510 = vmatpush1.msra.mxu0 0.0
    %2511 = vmatprep.subr.mxu0 0.0
    %2512 = vmatpush1.msra.mxu0 0.0
    %2513 = vmatprep.subr.mxu0 0.0
    %2514 = vmatpush1.msra.mxu0 0.0
    %2515 = vmatprep.subr.mxu0 0.0
    %2516 = vmatpush1.msra.mxu0 0.0
    %2517 = vmatprep.subr.mxu0 0.0
    %2518 = vmatpush1.msra.mxu0 0.0
    %2519 = vmatprep.subr.mxu0 0.0
    %2520 = vmatpush1.msra.mxu0 0.0
    %2521 = vmatprep.subr.mxu0 0.0
    %2522 = vmatpush1.msra.mxu0 0.0
    %2523 = vmatprep.subr.mxu0 0.0
    %2524 = vmatpush1.msra.mxu0 0.0
    %2525 = vmatprep.subr.mxu0 0.0
    %2526 = vmatpush1.msra.mxu0 0.0
    %2527 = vmatprep.subr.mxu0 0.0
    %2528 = vmatpush1.msra.mxu0 0.0
    %2529 = vmatprep.mubr.f32.mxu0 0.0
    %2530 = vmatmul.mubr.f32.gmra.mrb[0].mxu0 %v2337
    %v2531 = vpop.f32.mrb[0].mxu0
    %v2532 = vadd.f32 0.0, %v2531
    %v2533 = vpop.f32.mrb[0].mxu0
    %2534 = vmatprep.mubr.f32.mxu0 0.0
    %2535 = vmatmul.mubr.f32.gmra.mrb[0].mxu0 %v2338
    %v2536 = vpop.f32.mrb[0].mxu0
    %v2537 = vadd.f32 0.0, %v2536
    %v2538 = vpop.f32.mrb[0].mxu0
    %2539 = vdwg.mxu0
    %s2540 = scalar_lea.vmem [#allocation10], 1
    %v2541 = vld [vmem:[%s2540] sm:$0x1]
    %v2543 = vlaneseq
    %v2544 = vshrl.u32 %v2543, 7
    %v2545 = vsub.s32 0, %v2544
    %v2546 = vrot.slane %v2541, %v2545
    %v2548 = vadd.f32 %v2455, %v2546
    %v2549 = vadd.f32 %v2461, %v2546
    %v2551 = vsel %vm518, %v2548, 0
    %v2554 = vsel %vm518, %v2457, 0
    %2556 = vmatprep.subr.mxu0 0.0
    %2557 = vmatpush1.xpose.msra.mxu0 %v2554
    %2558 = vmatprep.subr.mxu0 0.0
    %2559 = vmatpush1.xpose.msra.mxu0 0.0
    %2560 = vmatprep.subr.mxu0 0.0
    %2561 = vmatpush1.xpose.msra.mxu0 0.0
    %2562 = vmatprep.subr.mxu0 0.0
    %2563 = vmatpush1.xpose.msra.mxu0 0.0
    %2564 = vmatprep.subr.mxu0 0.0
    %2565 = vmatpush1.xpose.msra.mxu0 0.0
    %2566 = vmatprep.subr.mxu0 0.0
    %2567 = vmatpush1.xpose.msra.mxu0 0.0
    %2568 = vmatprep.subr.mxu0 0.0
    %2569 = vmatpush1.xpose.msra.mxu0 0.0
    %2570 = vmatprep.subr.mxu0 0.0
    %2571 = vmatpush1.xpose.msra.mxu0 0.0
    %2572 = vmatprep.subr.mxu0 0.0
    %2573 = vmatpush1.xpose.msra.mxu0 0.0
    %2574 = vmatprep.subr.mxu0 0.0
    %2575 = vmatpush1.xpose.msra.mxu0 0.0
    %2576 = vmatprep.subr.mxu0 0.0
    %2577 = vmatpush1.xpose.msra.mxu0 0.0
    %2578 = vmatprep.subr.mxu0 0.0
    %2579 = vmatpush1.xpose.msra.mxu0 0.0
    %2580 = vmatprep.subr.mxu0 0.0
    %2581 = vmatpush1.xpose.msra.mxu0 0.0
    %2582 = vmatprep.subr.mxu0 0.0
    %2583 = vmatpush1.xpose.msra.mxu0 0.0
    %2584 = vmatprep.subr.mxu0 0.0
    %2585 = vmatpush1.xpose.msra.mxu0 0.0
    %2586 = vmatprep.subr.mxu0 0.0
    %2587 = vmatpush1.xpose.msra.mxu0 0.0
    %2588 = vmatprep.subr.mxu0 0.0
    %2589 = vmatpush1.xpose.msra.mxu0 0.0
    %2590 = vmatprep.subr.mxu0 0.0
    %2591 = vmatpush1.xpose.msra.mxu0 0.0
    %2592 = vmatprep.subr.mxu0 0.0
    %2593 = vmatpush1.xpose.msra.mxu0 0.0
    %2594 = vmatprep.subr.mxu0 0.0
    %2595 = vmatpush1.xpose.msra.mxu0 0.0
    %2596 = vmatprep.subr.mxu0 0.0
    %2597 = vmatpush1.xpose.msra.mxu0 0.0
    %2598 = vmatprep.subr.mxu0 0.0
    %2599 = vmatpush1.xpose.msra.mxu0 0.0
    %2600 = vmatprep.subr.mxu0 0.0
    %2601 = vmatpush1.xpose.msra.mxu0 0.0
    %2602 = vmatprep.subr.mxu0 0.0
    %2603 = vmatpush1.xpose.msra.mxu0 0.0
    %2604 = vmatprep.subr.mxu0 0.0
    %2605 = vmatpush1.xpose.msra.mxu0 0.0
    %2606 = vmatprep.subr.mxu0 0.0
    %2607 = vmatpush1.xpose.msra.mxu0 0.0
    %2608 = vmatprep.subr.mxu0 0.0
    %2609 = vmatpush1.xpose.msra.mxu0 0.0
    %2610 = vmatprep.subr.mxu0 0.0
    %2611 = vmatpush1.xpose.msra.mxu0 0.0
    %2612 = vmatprep.subr.mxu0 0.0
    %2613 = vmatpush1.xpose.msra.mxu0 0.0
    %2614 = vmatprep.subr.mxu0 0.0
    %2615 = vmatpush1.xpose.msra.mxu0 0.0
    %2616 = vmatprep.subr.mxu0 0.0
    %2617 = vmatpush1.xpose.msra.mxu0 0.0
    %2618 = vmatprep.subr.mxu0 0.0
    %2619 = vmatpush1.xpose.msra.mxu0 0.0
    %2620 = vmatprep.mubr.f32.mxu0 0.0
    %2621 = vmatmul.mubr.f32.gmra.mrb[0].mxu0 %v2551
    %v2622 = vpop.f32.mrb[0].mxu0
    %v2623 = vadd.f32 0.0, %v2622
    %v2624 = vpop.f32.mrb[0].mxu0
    %2625 = vdwg.mxu0
    %v2627 = vsel %vm518, %v2549, 0
    %v2630 = vsel %vm518, %v2463, 0
    %2632 = vmatprep.subr.mxu0 0.0
    %2633 = vmatpush1.xpose.msra.mxu0 %v2630
    %2634 = vmatprep.subr.mxu0 0.0
    %2635 = vmatpush1.xpose.msra.mxu0 0.0
    %2636 = vmatprep.subr.mxu0 0.0
    %2637 = vmatpush1.xpose.msra.mxu0 0.0
    %2638 = vmatprep.subr.mxu0 0.0
    %2639 = vmatpush1.xpose.msra.mxu0 0.0
    %2640 = vmatprep.subr.mxu0 0.0
    %2641 = vmatpush1.xpose.msra.mxu0 0.0
    %2642 = vmatprep.subr.mxu0 0.0
    %2643 = vmatpush1.xpose.msra.mxu0 0.0
    %2644 = vmatprep.subr.mxu0 0.0
    %2645 = vmatpush1.xpose.msra.mxu0 0.0
    %2646 = vmatprep.subr.mxu0 0.0
    %2647 = vmatpush1.xpose.msra.mxu0 0.0
    %2648 = vmatprep.subr.mxu0 0.0
    %2649 = vmatpush1.xpose.msra.mxu0 0.0
    %2650 = vmatprep.subr.mxu0 0.0
    %2651 = vmatpush1.xpose.msra.mxu0 0.0
    %2652 = vmatprep.subr.mxu0 0.0
    %2653 = vmatpush1.xpose.msra.mxu0 0.0
    %2654 = vmatprep.subr.mxu0 0.0
    %2655 = vmatpush1.xpose.msra.mxu0 0.0
    %2656 = vmatprep.subr.mxu0 0.0
    %2657 = vmatpush1.xpose.msra.mxu0 0.0
    %2658 = vmatprep.subr.mxu0 0.0
    %2659 = vmatpush1.xpose.msra.mxu0 0.0
    %2660 = vmatprep.subr.mxu0 0.0
    %2661 = vmatpush1.xpose.msra.mxu0 0.0
    %2662 = vmatprep.subr.mxu0 0.0
    %2663 = vmatpush1.xpose.msra.mxu0 0.0
    %2664 = vmatprep.subr.mxu0 0.0
    %2665 = vmatpush1.xpose.msra.mxu0 0.0
    %2666 = vmatprep.subr.mxu0 0.0
    %2667 = vmatpush1.xpose.msra.mxu0 0.0
    %2668 = vmatprep.subr.mxu0 0.0
    %2669 = vmatpush1.xpose.msra.mxu0 0.0
    %2670 = vmatprep.subr.mxu0 0.0
    %2671 = vmatpush1.xpose.msra.mxu0 0.0
    %2672 = vmatprep.subr.mxu0 0.0
    %2673 = vmatpush1.xpose.msra.mxu0 0.0
    %2674 = vmatprep.subr.mxu0 0.0
    %2675 = vmatpush1.xpose.msra.mxu0 0.0
    %2676 = vmatprep.subr.mxu0 0.0
    %2677 = vmatpush1.xpose.msra.mxu0 0.0
    %2678 = vmatprep.subr.mxu0 0.0
    %2679 = vmatpush1.xpose.msra.mxu0 0.0
    %2680 = vmatprep.subr.mxu0 0.0
    %2681 = vmatpush1.xpose.msra.mxu0 0.0
    %2682 = vmatprep.subr.mxu0 0.0
    %2683 = vmatpush1.xpose.msra.mxu0 0.0
    %2684 = vmatprep.subr.mxu0 0.0
    %2685 = vmatpush1.xpose.msra.mxu0 0.0
    %2686 = vmatprep.subr.mxu0 0.0
    %2687 = vmatpush1.xpose.msra.mxu0 0.0
    %2688 = vmatprep.subr.mxu0 0.0
    %2689 = vmatpush1.xpose.msra.mxu0 0.0
    %2690 = vmatprep.subr.mxu0 0.0
    %2691 = vmatpush1.xpose.msra.mxu0 0.0
    %2692 = vmatprep.subr.mxu0 0.0
    %2693 = vmatpush1.xpose.msra.mxu0 0.0
    %2694 = vmatprep.subr.mxu0 0.0
    %2695 = vmatpush1.xpose.msra.mxu0 0.0
    %2696 = vmatprep.mubr.f32.mxu0 0.0
    %2697 = vmatmul.mubr.f32.gmra.mrb[0].mxu0 %v2627
    %v2698 = vpop.f32.mrb[0].mxu0
    %v2699 = vadd.f32 0.0, %v2698
    %v2700 = vpop.f32.mrb[0].mxu0
    %2701 = vdwg.mxu0
    %v2702 = vmul.f32 %v2623, 0.17677669
    %v2703 = vmul.f32 %v2699, 0.17677669
    %v2704 = vsel %vm673, %v2702, -inf
    %2705 = vmax.xlane.f32.xlu0 %v2704
    %v2706 = vpop.xlane.xlu0 %2705
    %v2707 = vsel %vm673, %v2703, -inf
    %2708 = vmax.xlane.f32.xlu0 %v2707
    %v2709 = vpop.xlane.xlu0 %2708
    %v2710 = vsub.f32 %v2702, %v2706
    %v2711 = vsub.f32 %v2703, %v2709
    %v2712 = vmul.f32 %v2710, 1.442695
    %v2713 = vpow.pop %v2712
    %v2714 = vmul.f32 %v2711, 1.442695
    %v2715 = vpow.pop %v2714
    %v2716 = vsel %vm673, %v2713, 0.0
    %2717 = vadd.xlane.f32.xlu0 %v2716
    %v2718 = vpop.xlane.xlu0 %2717
    %v2719 = vsel %vm673, %v2715, 0.0
    %2720 = vadd.xlane.f32.xlu0 %v2719
    %v2721 = vpop.xlane.xlu0 %2720
    %v2722 = vrcp.pop %v2718
    %v2723 = vmul.f32 1.0, %v2722
    %v2724 = vrcp.pop %v2721
    %v2725 = vmul.f32 1.0, %v2724
    %v2726 = vmul.f32 %v2713, %v2723
    %v2727 = vmul.f32 %v2715, %v2725
    %v2729 = vsel %vm673, %v2726, 0
    %2731 = vmatprep.subr.mxu0 0.0
    %2732 = vmatpush1.msra.mxu0 %v2532
    %2733 = vmatprep.subr.mxu0 0.0
    %2734 = vmatpush1.msra.mxu0 0.0
    %2735 = vmatprep.subr.mxu0 0.0
    %2736 = vmatpush1.msra.mxu0 0.0
    %2737 = vmatprep.subr.mxu0 0.0
    %2738 = vmatpush1.msra.mxu0 0.0
    %2739 = vmatprep.subr.mxu0 0.0
    %2740 = vmatpush1.msra.mxu0 0.0
    %2741 = vmatprep.subr.mxu0 0.0
    %2742 = vmatpush1.msra.mxu0 0.0
    %2743 = vmatprep.subr.mxu0 0.0
    %2744 = vmatpush1.msra.mxu0 0.0
    %2745 = vmatprep.subr.mxu0 0.0
    %2746 = vmatpush1.msra.mxu0 0.0
    %2747 = vmatprep.subr.mxu0 0.0
    %2748 = vmatpush1.msra.mxu0 0.0
    %2749 = vmatprep.subr.mxu0 0.0
    %2750 = vmatpush1.msra.mxu0 0.0
    %2751 = vmatprep.subr.mxu0 0.0
    %2752 = vmatpush1.msra.mxu0 0.0
    %2753 = vmatprep.subr.mxu0 0.0
    %2754 = vmatpush1.msra.mxu0 0.0
    %2755 = vmatprep.subr.mxu0 0.0
    %2756 = vmatpush1.msra.mxu0 0.0
    %2757 = vmatprep.subr.mxu0 0.0
    %2758 = vmatpush1.msra.mxu0 0.0
    %2759 = vmatprep.subr.mxu0 0.0
    %2760 = vmatpush1.msra.mxu0 0.0
    %2761 = vmatprep.subr.mxu0 0.0
    %2762 = vmatpush1.msra.mxu0 0.0
    %2763 = vmatprep.subr.mxu0 0.0
    %2764 = vmatpush1.msra.mxu0 0.0
    %2765 = vmatprep.subr.mxu0 0.0
    %2766 = vmatpush1.msra.mxu0 0.0
    %2767 = vmatprep.subr.mxu0 0.0
    %2768 = vmatpush1.msra.mxu0 0.0
    %2769 = vmatprep.subr.mxu0 0.0
    %2770 = vmatpush1.msra.mxu0 0.0
    %2771 = vmatprep.subr.mxu0 0.0
    %2772 = vmatpush1.msra.mxu0 0.0
    %2773 = vmatprep.subr.mxu0 0.0
    %2774 = vmatpush1.msra.mxu0 0.0
    %2775 = vmatprep.subr.mxu0 0.0
    %2776 = vmatpush1.msra.mxu0 0.0
    %2777 = vmatprep.subr.mxu0 0.0
    %2778 = vmatpush1.msra.mxu0 0.0
    %2779 = vmatprep.subr.mxu0 0.0
    %2780 = vmatpush1.msra.mxu0 0.0
    %2781 = vmatprep.subr.mxu0 0.0
    %2782 = vmatpush1.msra.mxu0 0.0
    %2783 = vmatprep.subr.mxu0 0.0
    %2784 = vmatpush1.msra.mxu0 0.0
    %2785 = vmatprep.subr.mxu0 0.0
    %2786 = vmatpush1.msra.mxu0 0.0
    %2787 = vmatprep.subr.mxu0 0.0
    %2788 = vmatpush1.msra.mxu0 0.0
    %2789 = vmatprep.subr.mxu0 0.0
    %2790 = vmatpush1.msra.mxu0 0.0
    %2791 = vmatprep.subr.mxu0 0.0
    %2792 = vmatpush1.msra.mxu0 0.0
    %2793 = vmatprep.subr.mxu0 0.0
    %2794 = vmatpush1.msra.mxu0 0.0
    %2795 = vmatprep.mubr.f32.mxu0 0.0
    %2796 = vmatmul.mubr.f32.gmra.mrb[0].mxu0 %v2729
    %v2797 = vpop.f32.mrb[0].mxu0
    %v2798 = vadd.f32 0.0, %v2797
    %v2799 = vpop.f32.mrb[0].mxu0
    %2800 = vdwg.mxu0
    %v2802 = vsel %vm673, %v2727, 0
    %2804 = vmatprep.subr.mxu0 0.0
    %2805 = vmatpush1.msra.mxu0 %v2537
    %2806 = vmatprep.subr.mxu0 0.0
    %2807 = vmatpush1.msra.mxu0 0.0
    %2808 = vmatprep.subr.mxu0 0.0
    %2809 = vmatpush1.msra.mxu0 0.0
    %2810 = vmatprep.subr.mxu0 0.0
    %2811 = vmatpush1.msra.mxu0 0.0
    %2812 = vmatprep.subr.mxu0 0.0
    %2813 = vmatpush1.msra.mxu0 0.0
    %2814 = vmatprep.subr.mxu0 0.0
    %2815 = vmatpush1.msra.mxu0 0.0
    %2816 = vmatprep.subr.mxu0 0.0
    %2817 = vmatpush1.msra.mxu0 0.0
    %2818 = vmatprep.subr.mxu0 0.0
    %2819 = vmatpush1.msra.mxu0 0.0
    %2820 = vmatprep.subr.mxu0 0.0
    %2821 = vmatpush1.msra.mxu0 0.0
    %2822 = vmatprep.subr.mxu0 0.0
    %2823 = vmatpush1.msra.mxu0 0.0
    %2824 = vmatprep.subr.mxu0 0.0
    %2825 = vmatpush1.msra.mxu0 0.0
    %2826 = vmatprep.subr.mxu0 0.0
    %2827 = vmatpush1.msra.mxu0 0.0
    %2828 = vmatprep.subr.mxu0 0.0
    %2829 = vmatpush1.msra.mxu0 0.0
    %2830 = vmatprep.subr.mxu0 0.0
    %2831 = vmatpush1.msra.mxu0 0.0
    %2832 = vmatprep.subr.mxu0 0.0
    %2833 = vmatpush1.msra.mxu0 0.0
    %2834 = vmatprep.subr.mxu0 0.0
    %2835 = vmatpush1.msra.mxu0 0.0
    %2836 = vmatprep.subr.mxu0 0.0
    %2837 = vmatpush1.msra.mxu0 0.0
    %2838 = vmatprep.subr.mxu0 0.0
    %2839 = vmatpush1.msra.mxu0 0.0
    %2840 = vmatprep.subr.mxu0 0.0
    %2841 = vmatpush1.msra.mxu0 0.0
    %2842 = vmatprep.subr.mxu0 0.0
    %2843 = vmatpush1.msra.mxu0 0.0
    %2844 = vmatprep.subr.mxu0 0.0
    %2845 = vmatpush1.msra.mxu0 0.0
    %2846 = vmatprep.subr.mxu0 0.0
    %2847 = vmatpush1.msra.mxu0 0.0
    %2848 = vmatprep.subr.mxu0 0.0
    %2849 = vmatpush1.msra.mxu0 0.0
    %2850 = vmatprep.subr.mxu0 0.0
    %2851 = vmatpush1.msra.mxu0 0.0
    %2852 = vmatprep.subr.mxu0 0.0
    %2853 = vmatpush1.msra.mxu0 0.0
    %2854 = vmatprep.subr.mxu0 0.0
    %2855 = vmatpush1.msra.mxu0 0.0
    %2856 = vmatprep.subr.mxu0 0.0
    %2857 = vmatpush1.msra.mxu0 0.0
    %2858 = vmatprep.subr.mxu0 0.0
    %2859 = vmatpush1.msra.mxu0 0.0
    %2860 = vmatprep.subr.mxu0 0.0
    %2861 = vmatpush1.msra.mxu0 0.0
    %2862 = vmatprep.subr.mxu0 0.0
    %2863 = vmatpush1.msra.mxu0 0.0
    %2864 = vmatprep.subr.mxu0 0.0
    %2865 = vmatpush1.msra.mxu0 0.0
    %2866 = vmatprep.subr.mxu0 0.0
    %2867 = vmatpush1.msra.mxu0 0.0
    %2868 = vmatprep.mubr.f32.mxu0 0.0
    %2869 = vmatmul.mubr.f32.gmra.mrb[0].mxu0 %v2802
    %v2870 = vpop.f32.mrb[0].mxu0
    %v2871 = vadd.f32 0.0, %v2870
    %v2872 = vpop.f32.mrb[0].mxu0
    %2873 = vdwg.mxu0
    %2874 = vrot.lane.b32.xlu0 %v2548, 96
    %v2875 = vpop.permute.xlu0 %2874
    %2876 = vrot.lane.b32.xlu0 %v2457, 96
    %v2877 = vpop.permute.xlu0 %2876
    %v2878 = vsel %vm518, %v2875, 0
    %v2880 = vsel %vm518, %v2877, 0
    %2882 = vmatprep.subr.mxu0 0.0
    %2883 = vmatpush1.xpose.msra.mxu0 %v2880
    %2884 = vmatprep.subr.mxu0 0.0
    %2885 = vmatpush1.xpose.msra.mxu0 0.0
    %2886 = vmatprep.subr.mxu0 0.0
    %2887 = vmatpush1.xpose.msra.mxu0 0.0
    %2888 = vmatprep.subr.mxu0 0.0
    %2889 = vmatpush1.xpose.msra.mxu0 0.0
    %2890 = vmatprep.subr.mxu0 0.0
    %2891 = vmatpush1.xpose.msra.mxu0 0.0
    %2892 = vmatprep.subr.mxu0 0.0
    %2893 = vmatpush1.xpose.msra.mxu0 0.0
    %2894 = vmatprep.subr.mxu0 0.0
    %2895 = vmatpush1.xpose.msra.mxu0 0.0
    %2896 = vmatprep.subr.mxu0 0.0
    %2897 = vmatpush1.xpose.msra.mxu0 0.0
    %2898 = vmatprep.subr.mxu0 0.0
    %2899 = vmatpush1.xpose.msra.mxu0 0.0
    %2900 = vmatprep.subr.mxu0 0.0
    %2901 = vmatpush1.xpose.msra.mxu0 0.0
    %2902 = vmatprep.subr.mxu0 0.0
    %2903 = vmatpush1.xpose.msra.mxu0 0.0
    %2904 = vmatprep.subr.mxu0 0.0
    %2905 = vmatpush1.xpose.msra.mxu0 0.0
    %2906 = vmatprep.subr.mxu0 0.0
    %2907 = vmatpush1.xpose.msra.mxu0 0.0
    %2908 = vmatprep.subr.mxu0 0.0
    %2909 = vmatpush1.xpose.msra.mxu0 0.0
    %2910 = vmatprep.subr.mxu0 0.0
    %2911 = vmatpush1.xpose.msra.mxu0 0.0
    %2912 = vmatprep.subr.mxu0 0.0
    %2913 = vmatpush1.xpose.msra.mxu0 0.0
    %2914 = vmatprep.subr.mxu0 0.0
    %2915 = vmatpush1.xpose.msra.mxu0 0.0
    %2916 = vmatprep.subr.mxu0 0.0
    %2917 = vmatpush1.xpose.msra.mxu0 0.0
    %2918 = vmatprep.subr.mxu0 0.0
    %2919 = vmatpush1.xpose.msra.mxu0 0.0
    %2920 = vmatprep.subr.mxu0 0.0
    %2921 = vmatpush1.xpose.msra.mxu0 0.0
    %2922 = vmatprep.subr.mxu0 0.0
    %2923 = vmatpush1.xpose.msra.mxu0 0.0
    %2924 = vmatprep.subr.mxu0 0.0
    %2925 = vmatpush1.xpose.msra.mxu0 0.0
    %2926 = vmatprep.subr.mxu0 0.0
    %2927 = vmatpush1.xpose.msra.mxu0 0.0
    %2928 = vmatprep.subr.mxu0 0.0
    %2929 = vmatpush1.xpose.msra.mxu0 0.0
    %2930 = vmatprep.subr.mxu0 0.0
    %2931 = vmatpush1.xpose.msra.mxu0 0.0
    %2932 = vmatprep.subr.mxu0 0.0
    %2933 = vmatpush1.xpose.msra.mxu0 0.0
    %2934 = vmatprep.subr.mxu0 0.0
    %2935 = vmatpush1.xpose.msra.mxu0 0.0
    %2936 = vmatprep.subr.mxu0 0.0
    %2937 = vmatpush1.xpose.msra.mxu0 0.0
    %2938 = vmatprep.subr.mxu0 0.0
    %2939 = vmatpush1.xpose.msra.mxu0 0.0
    %2940 = vmatprep.subr.mxu0 0.0
    %2941 = vmatpush1.xpose.msra.mxu0 0.0
    %2942 = vmatprep.subr.mxu0 0.0
    %2943 = vmatpush1.xpose.msra.mxu0 0.0
    %2944 = vmatprep.subr.mxu0 0.0
    %2945 = vmatpush1.xpose.msra.mxu0 0.0
    %2946 = vmatprep.mubr.f32.mxu0 0.0
    %2947 = vmatmul.mubr.f32.gmra.mrb[0].mxu0 %v2878
    %v2948 = vpop.f32.mrb[0].mxu0
    %v2949 = vadd.f32 0.0, %v2948
    %v2950 = vpop.f32.mrb[0].mxu0
    %2951 = vdwg.mxu0
    %2952 = vrot.lane.b32.xlu0 %v2549, 96
    %v2953 = vpop.permute.xlu0 %2952
    %2954 = vrot.lane.b32.xlu0 %v2463, 96
    %v2955 = vpop.permute.xlu0 %2954
    %v2956 = vsel %vm518, %v2953, 0
    %v2958 = vsel %vm518, %v2955, 0
    %2960 = vmatprep.subr.mxu0 0.0
    %2961 = vmatpush1.xpose.msra.mxu0 %v2958
    %2962 = vmatprep.subr.mxu0 0.0
    %2963 = vmatpush1.xpose.msra.mxu0 0.0
    %2964 = vmatprep.subr.mxu0 0.0
    %2965 = vmatpush1.xpose.msra.mxu0 0.0
    %2966 = vmatprep.subr.mxu0 0.0
    %2967 = vmatpush1.xpose.msra.mxu0 0.0
    %2968 = vmatprep.subr.mxu0 0.0
    %2969 = vmatpush1.xpose.msra.mxu0 0.0
    %2970 = vmatprep.subr.mxu0 0.0
    %2971 = vmatpush1.xpose.msra.mxu0 0.0
    %2972 = vmatprep.subr.mxu0 0.0
    %2973 = vmatpush1.xpose.msra.mxu0 0.0
    %2974 = vmatprep.subr.mxu0 0.0
    %2975 = vmatpush1.xpose.msra.mxu0 0.0
    %2976 = vmatprep.subr.mxu0 0.0
    %2977 = vmatpush1.xpose.msra.mxu0 0.0
    %2978 = vmatprep.subr.mxu0 0.0
    %2979 = vmatpush1.xpose.msra.mxu0 0.0
    %2980 = vmatprep.subr.mxu0 0.0
    %2981 = vmatpush1.xpose.msra.mxu0 0.0
    %2982 = vmatprep.subr.mxu0 0.0
    %2983 = vmatpush1.xpose.msra.mxu0 0.0
    %2984 = vmatprep.subr.mxu0 0.0
    %2985 = vmatpush1.xpose.msra.mxu0 0.0
    %2986 = vmatprep.subr.mxu0 0.0
    %2987 = vmatpush1.xpose.msra.mxu0 0.0
    %2988 = vmatprep.subr.mxu0 0.0
    %2989 = vmatpush1.xpose.msra.mxu0 0.0
    %2990 = vmatprep.subr.mxu0 0.0
    %2991 = vmatpush1.xpose.msra.mxu0 0.0
    %2992 = vmatprep.subr.mxu0 0.0
    %2993 = vmatpush1.xpose.msra.mxu0 0.0
    %2994 = vmatprep.subr.mxu0 0.0
    %2995 = vmatpush1.xpose.msra.mxu0 0.0
    %2996 = vmatprep.subr.mxu0 0.0
    %2997 = vmatpush1.xpose.msra.mxu0 0.0
    %2998 = vmatprep.subr.mxu0 0.0
    %2999 = vmatpush1.xpose.msra.mxu0 0.0
    %3000 = vmatprep.subr.mxu0 0.0
    %3001 = vmatpush1.xpose.msra.mxu0 0.0
    %3002 = vmatprep.subr.mxu0 0.0
    %3003 = vmatpush1.xpose.msra.mxu0 0.0
    %3004 = vmatprep.subr.mxu0 0.0
    %3005 = vmatpush1.xpose.msra.mxu0 0.0
    %3006 = vmatprep.subr.mxu0 0.0
    %3007 = vmatpush1.xpose.msra.mxu0 0.0
    %3008 = vmatprep.subr.mxu0 0.0
    %3009 = vmatpush1.xpose.msra.mxu0 0.0
    %3010 = vmatprep.subr.mxu0 0.0
    %3011 = vmatpush1.xpose.msra.mxu0 0.0
    %3012 = vmatprep.subr.mxu0 0.0
    %3013 = vmatpush1.xpose.msra.mxu0 0.0
    %3014 = vmatprep.subr.mxu0 0.0
    %3015 = vmatpush1.xpose.msra.mxu0 0.0
    %3016 = vmatprep.subr.mxu0 0.0
    %3017 = vmatpush1.xpose.msra.mxu0 0.0
    %3018 = vmatprep.subr.mxu0 0.0
    %3019 = vmatpush1.xpose.msra.mxu0 0.0
    %3020 = vmatprep.subr.mxu0 0.0
    %3021 = vmatpush1.xpose.msra.mxu0 0.0
    %3022 = vmatprep.subr.mxu0 0.0
    %3023 = vmatpush1.xpose.msra.mxu0 0.0
    %3024 = vmatprep.mubr.f32.mxu0 0.0
    %3025 = vmatmul.mubr.f32.gmra.mrb[0].mxu0 %v2956
    %v3026 = vpop.f32.mrb[0].mxu0
    %v3027 = vadd.f32 0.0, %v3026
    %v3028 = vpop.f32.mrb[0].mxu0
    %3029 = vdwg.mxu0
    %v3030 = vmul.f32 %v2949, 0.17677669
    %v3031 = vmul.f32 %v3027, 0.17677669
    %v3032 = vsel %vm673, %v3030, -inf
    %3033 = vmax.xlane.f32.xlu0 %v3032
    %v3034 = vpop.xlane.xlu0 %3033
    %v3035 = vsel %vm673, %v3031, -inf
    %3036 = vmax.xlane.f32.xlu0 %v3035
    %v3037 = vpop.xlane.xlu0 %3036
    %v3038 = vsub.f32 %v3030, %v3034
    %v3039 = vsub.f32 %v3031, %v3037
    %v3040 = vmul.f32 %v3038, 1.442695
    %v3041 = vpow.pop %v3040
    %v3042 = vmul.f32 %v3039, 1.442695
    %v3043 = vpow.pop %v3042
    %v3044 = vsel %vm673, %v3041, 0.0
    %3045 = vadd.xlane.f32.xlu0 %v3044
    %v3046 = vpop.xlane.xlu0 %3045
    %v3047 = vsel %vm673, %v3043, 0.0
    %3048 = vadd.xlane.f32.xlu0 %v3047
    %v3049 = vpop.xlane.xlu0 %3048
    %v3050 = vrcp.pop %v3046
    %v3051 = vmul.f32 1.0, %v3050
    %v3052 = vrcp.pop %v3049
    %v3053 = vmul.f32 1.0, %v3052
    %v3054 = vmul.f32 %v3041, %v3051
    %v3055 = vmul.f32 %v3043, %v3053
    %3057 = vrot.lane.b32.xlu0 %v2532, 96
    %v3058 = vpop.permute.xlu0 %3057
    %v3061 = vsel %vm673, %v3054, 0
    %3063 = vmatprep.subr.mxu0 0.0
    %3064 = vmatpush1.msra.mxu0 %v3058
    %3065 = vmatprep.subr.mxu0 0.0
    %3066 = vmatpush1.msra.mxu0 0.0
    %3067 = vmatprep.subr.mxu0 0.0
    %3068 = vmatpush1.msra.mxu0 0.0
    %3069 = vmatprep.subr.mxu0 0.0
    %3070 = vmatpush1.msra.mxu0 0.0
    %3071 = vmatprep.subr.mxu0 0.0
    %3072 = vmatpush1.msra.mxu0 0.0
    %3073 = vmatprep.subr.mxu0 0.0
    %3074 = vmatpush1.msra.mxu0 0.0
    %3075 = vmatprep.subr.mxu0 0.0
    %3076 = vmatpush1.msra.mxu0 0.0
    %3077 = vmatprep.subr.mxu0 0.0
    %3078 = vmatpush1.msra.mxu0 0.0
    %3079 = vmatprep.subr.mxu0 0.0
    %3080 = vmatpush1.msra.mxu0 0.0
    %3081 = vmatprep.subr.mxu0 0.0
    %3082 = vmatpush1.msra.mxu0 0.0
    %3083 = vmatprep.subr.mxu0 0.0
    %3084 = vmatpush1.msra.mxu0 0.0
    %3085 = vmatprep.subr.mxu0 0.0
    %3086 = vmatpush1.msra.mxu0 0.0
    %3087 = vmatprep.subr.mxu0 0.0
    %3088 = vmatpush1.msra.mxu0 0.0
    %3089 = vmatprep.subr.mxu0 0.0
    %3090 = vmatpush1.msra.mxu0 0.0
    %3091 = vmatprep.subr.mxu0 0.0
    %3092 = vmatpush1.msra.mxu0 0.0
    %3093 = vmatprep.subr.mxu0 0.0
    %3094 = vmatpush1.msra.mxu0 0.0
    %3095 = vmatprep.subr.mxu0 0.0
    %3096 = vmatpush1.msra.mxu0 0.0
    %3097 = vmatprep.subr.mxu0 0.0
    %3098 = vmatpush1.msra.mxu0 0.0
    %3099 = vmatprep.subr.mxu0 0.0
    %3100 = vmatpush1.msra.mxu0 0.0
    %3101 = vmatprep.subr.mxu0 0.0
    %3102 = vmatpush1.msra.mxu0 0.0
    %3103 = vmatprep.subr.mxu0 0.0
    %3104 = vmatpush1.msra.mxu0 0.0
    %3105 = vmatprep.subr.mxu0 0.0
    %3106 = vmatpush1.msra.mxu0 0.0
    %3107 = vmatprep.subr.mxu0 0.0
    %3108 = vmatpush1.msra.mxu0 0.0
    %3109 = vmatprep.subr.mxu0 0.0
    %3110 = vmatpush1.msra.mxu0 0.0
    %3111 = vmatprep.subr.mxu0 0.0
    %3112 = vmatpush1.msra.mxu0 0.0
    %3113 = vmatprep.subr.mxu0 0.0
    %3114 = vmatpush1.msra.mxu0 0.0
    %3115 = vmatprep.subr.mxu0 0.0
    %3116 = vmatpush1.msra.mxu0 0.0
    %3117 = vmatprep.subr.mxu0 0.0
    %3118 = vmatpush1.msra.mxu0 0.0
    %3119 = vmatprep.subr.mxu0 0.0
    %3120 = vmatpush1.msra.mxu0 0.0
    %3121 = vmatprep.subr.mxu0 0.0
    %3122 = vmatpush1.msra.mxu0 0.0
    %3123 = vmatprep.subr.mxu0 0.0
    %3124 = vmatpush1.msra.mxu0 0.0
    %3125 = vmatprep.subr.mxu0 0.0
    %3126 = vmatpush1.msra.mxu0 0.0
    %3127 = vmatprep.mubr.f32.mxu0 0.0
    %3128 = vmatmul.mubr.f32.gmra.mrb[0].mxu0 %v3061
    %v3129 = vpop.f32.mrb[0].mxu0
    %v3130 = vadd.f32 0.0, %v3129
    %v3131 = vpop.f32.mrb[0].mxu0
    %3132 = vdwg.mxu0
    %3134 = vrot.lane.b32.xlu0 %v2537, 96
    %v3135 = vpop.permute.xlu0 %3134
    %v3138 = vsel %vm673, %v3055, 0
    %3140 = vmatprep.subr.mxu0 0.0
    %3141 = vmatpush1.msra.mxu0 %v3135
    %3142 = vmatprep.subr.mxu0 0.0
    %3143 = vmatpush1.msra.mxu0 0.0
    %3144 = vmatprep.subr.mxu0 0.0
    %3145 = vmatpush1.msra.mxu0 0.0
    %3146 = vmatprep.subr.mxu0 0.0
    %3147 = vmatpush1.msra.mxu0 0.0
    %3148 = vmatprep.subr.mxu0 0.0
    %3149 = vmatpush1.msra.mxu0 0.0
    %3150 = vmatprep.subr.mxu0 0.0
    %3151 = vmatpush1.msra.mxu0 0.0
    %3152 = vmatprep.subr.mxu0 0.0
    %3153 = vmatpush1.msra.mxu0 0.0
    %3154 = vmatprep.subr.mxu0 0.0
    %3155 = vmatpush1.msra.mxu0 0.0
    %3156 = vmatprep.subr.mxu0 0.0
    %3157 = vmatpush1.msra.mxu0 0.0
    %3158 = vmatprep.subr.mxu0 0.0
    %3159 = vmatpush1.msra.mxu0 0.0
    %3160 = vmatprep.subr.mxu0 0.0
    %3161 = vmatpush1.msra.mxu0 0.0
    %3162 = vmatprep.subr.mxu0 0.0
    %3163 = vmatpush1.msra.mxu0 0.0
    %3164 = vmatprep.subr.mxu0 0.0
    %3165 = vmatpush1.msra.mxu0 0.0
    %3166 = vmatprep.subr.mxu0 0.0
    %3167 = vmatpush1.msra.mxu0 0.0
    %3168 = vmatprep.subr.mxu0 0.0
    %3169 = vmatpush1.msra.mxu0 0.0
    %3170 = vmatprep.subr.mxu0 0.0
    %3171 = vmatpush1.msra.mxu0 0.0
    %3172 = vmatprep.subr.mxu0 0.0
    %3173 = vmatpush1.msra.mxu0 0.0
    %3174 = vmatprep.subr.mxu0 0.0
    %3175 = vmatpush1.msra.mxu0 0.0
    %3176 = vmatprep.subr.mxu0 0.0
    %3177 = vmatpush1.msra.mxu0 0.0
    %3178 = vmatprep.subr.mxu0 0.0
    %3179 = vmatpush1.msra.mxu0 0.0
    %3180 = vmatprep.subr.mxu0 0.0
    %3181 = vmatpush1.msra.mxu0 0.0
    %3182 = vmatprep.subr.mxu0 0.0
    %3183 = vmatpush1.msra.mxu0 0.0
    %3184 = vmatprep.subr.mxu0 0.0
    %3185 = vmatpush1.msra.mxu0 0.0
    %3186 = vmatprep.subr.mxu0 0.0
    %3187 = vmatpush1.msra.mxu0 0.0
    %3188 = vmatprep.subr.mxu0 0.0
    %3189 = vmatpush1.msra.mxu0 0.0
    %3190 = vmatprep.subr.mxu0 0.0
    %3191 = vmatpush1.msra.mxu0 0.0
    %3192 = vmatprep.subr.mxu0 0.0
    %3193 = vmatpush1.msra.mxu0 0.0
    %3194 = vmatprep.subr.mxu0 0.0
    %3195 = vmatpush1.msra.mxu0 0.0
    %3196 = vmatprep.subr.mxu0 0.0
    %3197 = vmatpush1.msra.mxu0 0.0
    %3198 = vmatprep.subr.mxu0 0.0
    %3199 = vmatpush1.msra.mxu0 0.0
    %3200 = vmatprep.subr.mxu0 0.0
    %3201 = vmatpush1.msra.mxu0 0.0
    %3202 = vmatprep.subr.mxu0 0.0
    %3203 = vmatpush1.msra.mxu0 0.0
    %3204 = vmatprep.mubr.f32.mxu0 0.0
    %3205 = vmatmul.mubr.f32.gmra.mrb[0].mxu0 %v3138
    %v3206 = vpop.f32.mrb[0].mxu0
    %v3207 = vadd.f32 0.0, %v3206
    %v3208 = vpop.f32.mrb[0].mxu0
    %3209 = vdwg.mxu0
    %3210 = vrot.lane.b32.xlu0 %v2548, 64
    %v3211 = vpop.permute.xlu0 %3210
    %3212 = vrot.lane.b32.xlu0 %v2457, 64
    %v3213 = vpop.permute.xlu0 %3212
    %v3214 = vsel %vm518, %v3211, 0
    %v3216 = vsel %vm518, %v3213, 0
    %3218 = vmatprep.subr.mxu0 0.0
    %3219 = vmatpush1.xpose.msra.mxu0 %v3216
    %3220 = vmatprep.subr.mxu0 0.0
    %3221 = vmatpush1.xpose.msra.mxu0 0.0
    %3222 = vmatprep.subr.mxu0 0.0
    %3223 = vmatpush1.xpose.msra.mxu0 0.0
    %3224 = vmatprep.subr.mxu0 0.0
    %3225 = vmatpush1.xpose.msra.mxu0 0.0
    %3226 = vmatprep.subr.mxu0 0.0
    %3227 = vmatpush1.xpose.msra.mxu0 0.0
    %3228 = vmatprep.subr.mxu0 0.0
    %3229 = vmatpush1.xpose.msra.mxu0 0.0
    %3230 = vmatprep.subr.mxu0 0.0
    %3231 = vmatpush1.xpose.msra.mxu0 0.0
    %3232 = vmatprep.subr.mxu0 0.0
    %3233 = vmatpush1.xpose.msra.mxu0 0.0
    %3234 = vmatprep.subr.mxu0 0.0
    %3235 = vmatpush1.xpose.msra.mxu0 0.0
    %3236 = vmatprep.subr.mxu0 0.0
    %3237 = vmatpush1.xpose.msra.mxu0 0.0
    %3238 = vmatprep.subr.mxu0 0.0
    %3239 = vmatpush1.xpose.msra.mxu0 0.0
    %3240 = vmatprep.subr.mxu0 0.0
    %3241 = vmatpush1.xpose.msra.mxu0 0.0
    %3242 = vmatprep.subr.mxu0 0.0
    %3243 = vmatpush1.xpose.msra.mxu0 0.0
    %3244 = vmatprep.subr.mxu0 0.0
    %3245 = vmatpush1.xpose.msra.mxu0 0.0
    %3246 = vmatprep.subr.mxu0 0.0
    %3247 = vmatpush1.xpose.msra.mxu0 0.0
    %3248 = vmatprep.subr.mxu0 0.0
    %3249 = vmatpush1.xpose.msra.mxu0 0.0
    %3250 = vmatprep.subr.mxu0 0.0
    %3251 = vmatpush1.xpose.msra.mxu0 0.0
    %3252 = vmatprep.subr.mxu0 0.0
    %3253 = vmatpush1.xpose.msra.mxu0 0.0
    %3254 = vmatprep.subr.mxu0 0.0
    %3255 = vmatpush1.xpose.msra.mxu0 0.0
    %3256 = vmatprep.subr.mxu0 0.0
    %3257 = vmatpush1.xpose.msra.mxu0 0.0
    %3258 = vmatprep.subr.mxu0 0.0
    %3259 = vmatpush1.xpose.msra.mxu0 0.0
    %3260 = vmatprep.subr.mxu0 0.0
    %3261 = vmatpush1.xpose.msra.mxu0 0.0
    %3262 = vmatprep.subr.mxu0 0.0
    %3263 = vmatpush1.xpose.msra.mxu0 0.0
    %3264 = vmatprep.subr.mxu0 0.0
    %3265 = vmatpush1.xpose.msra.mxu0 0.0
    %3266 = vmatprep.subr.mxu0 0.0
    %3267 = vmatpush1.xpose.msra.mxu0 0.0
    %3268 = vmatprep.subr.mxu0 0.0
    %3269 = vmatpush1.xpose.msra.mxu0 0.0
    %3270 = vmatprep.subr.mxu0 0.0
    %3271 = vmatpush1.xpose.msra.mxu0 0.0
    %3272 = vmatprep.subr.mxu0 0.0
    %3273 = vmatpush1.xpose.msra.mxu0 0.0
    %3274 = vmatprep.subr.mxu0 0.0
    %3275 = vmatpush1.xpose.msra.mxu0 0.0
    %3276 = vmatprep.subr.mxu0 0.0
    %3277 = vmatpush1.xpose.msra.mxu0 0.0
    %3278 = vmatprep.subr.mxu0 0.0
    %3279 = vmatpush1.xpose.msra.mxu0 0.0
    %3280 = vmatprep.subr.mxu0 0.0
    %3281 = vmatpush1.xpose.msra.mxu0 0.0
    %3282 = vmatprep.mubr.f32.mxu0 0.0
    %3283 = vmatmul.mubr.f32.gmra.mrb[0].mxu0 %v3214
    %v3284 = vpop.f32.mrb[0].mxu0
    %v3285 = vadd.f32 0.0, %v3284
    %v3286 = vpop.f32.mrb[0].mxu0
    %3287 = vdwg.mxu0
    %3288 = vrot.lane.b32.xlu0 %v2549, 64
    %v3289 = vpop.permute.xlu0 %3288
    %3290 = vrot.lane.b32.xlu0 %v2463, 64
    %v3291 = vpop.permute.xlu0 %3290
    %v3292 = vsel %vm518, %v3289, 0
    %v3294 = vsel %vm518, %v3291, 0
    %3296 = vmatprep.subr.mxu0 0.0
    %3297 = vmatpush1.xpose.msra.mxu0 %v3294
    %3298 = vmatprep.subr.mxu0 0.0
    %3299 = vmatpush1.xpose.msra.mxu0 0.0
    %3300 = vmatprep.subr.mxu0 0.0
    %3301 = vmatpush1.xpose.msra.mxu0 0.0
    %3302 = vmatprep.subr.mxu0 0.0
    %3303 = vmatpush1.xpose.msra.mxu0 0.0
    %3304 = vmatprep.subr.mxu0 0.0
    %3305 = vmatpush1.xpose.msra.mxu0 0.0
    %3306 = vmatprep.subr.mxu0 0.0
    %3307 = vmatpush1.xpose.msra.mxu0 0.0
    %3308 = vmatprep.subr.mxu0 0.0
    %3309 = vmatpush1.xpose.msra.mxu0 0.0
    %3310 = vmatprep.subr.mxu0 0.0
    %3311 = vmatpush1.xpose.msra.mxu0 0.0
    %3312 = vmatprep.subr.mxu0 0.0
    %3313 = vmatpush1.xpose.msra.mxu0 0.0
    %3314 = vmatprep.subr.mxu0 0.0
    %3315 = vmatpush1.xpose.msra.mxu0 0.0
    %3316 = vmatprep.subr.mxu0 0.0
    %3317 = vmatpush1.xpose.msra.mxu0 0.0
    %3318 = vmatprep.subr.mxu0 0.0
    %3319 = vmatpush1.xpose.msra.mxu0 0.0
    %3320 = vmatprep.subr.mxu0 0.0
    %3321 = vmatpush1.xpose.msra.mxu0 0.0
    %3322 = vmatprep.subr.mxu0 0.0
    %3323 = vmatpush1.xpose.msra.mxu0 0.0
    %3324 = vmatprep.subr.mxu0 0.0
    %3325 = vmatpush1.xpose.msra.mxu0 0.0
    %3326 = vmatprep.subr.mxu0 0.0
    %3327 = vmatpush1.xpose.msra.mxu0 0.0
    %3328 = vmatprep.subr.mxu0 0.0
    %3329 = vmatpush1.xpose.msra.mxu0 0.0
    %3330 = vmatprep.subr.mxu0 0.0
    %3331 = vmatpush1.xpose.msra.mxu0 0.0
    %3332 = vmatprep.subr.mxu0 0.0
    %3333 = vmatpush1.xpose.msra.mxu0 0.0
    %3334 = vmatprep.subr.mxu0 0.0
    %3335 = vmatpush1.xpose.msra.mxu0 0.0
    %3336 = vmatprep.subr.mxu0 0.0
    %3337 = vmatpush1.xpose.msra.mxu0 0.0
    %3338 = vmatprep.subr.mxu0 0.0
    %3339 = vmatpush1.xpose.msra.mxu0 0.0
    %3340 = vmatprep.subr.mxu0 0.0
    %3341 = vmatpush1.xpose.msra.mxu0 0.0
    %3342 = vmatprep.subr.mxu0 0.0
    %3343 = vmatpush1.xpose.msra.mxu0 0.0
    %3344 = vmatprep.subr.mxu0 0.0
    %3345 = vmatpush1.xpose.msra.mxu0 0.0
    %3346 = vmatprep.subr.mxu0 0.0
    %3347 = vmatpush1.xpose.msra.mxu0 0.0
    %3348 = vmatprep.subr.mxu0 0.0
    %3349 = vmatpush1.xpose.msra.mxu0 0.0
    %3350 = vmatprep.subr.mxu0 0.0
    %3351 = vmatpush1.xpose.msra.mxu0 0.0
    %3352 = vmatprep.subr.mxu0 0.0
    %3353 = vmatpush1.xpose.msra.mxu0 0.0
    %3354 = vmatprep.subr.mxu0 0.0
    %3355 = vmatpush1.xpose.msra.mxu0 0.0
    %3356 = vmatprep.subr.mxu0 0.0
    %3357 = vmatpush1.xpose.msra.mxu0 0.0
    %3358 = vmatprep.subr.mxu0 0.0
    %3359 = vmatpush1.xpose.msra.mxu0 0.0
    %3360 = vmatprep.mubr.f32.mxu0 0.0
    %3361 = vmatmul.mubr.f32.gmra.mrb[0].mxu0 %v3292
    %v3362 = vpop.f32.mrb[0].mxu0
    %v3363 = vadd.f32 0.0, %v3362
    %v3364 = vpop.f32.mrb[0].mxu0
    %3365 = vdwg.mxu0
    %v3366 = vmul.f32 %v3285, 0.17677669
    %v3367 = vmul.f32 %v3363, 0.17677669
    %v3368 = vsel %vm673, %v3366, -inf
    %3369 = vmax.xlane.f32.xlu0 %v3368
    %v3370 = vpop.xlane.xlu0 %3369
    %v3371 = vsel %vm673, %v3367, -inf
    %3372 = vmax.xlane.f32.xlu0 %v3371
    %v3373 = vpop.xlane.xlu0 %3372
    %v3374 = vsub.f32 %v3366, %v3370
    %v3375 = vsub.f32 %v3367, %v3373
    %v3376 = vmul.f32 %v3374, 1.442695
    %v3377 = vpow.pop %v3376
    %v3378 = vmul.f32 %v3375, 1.442695
    %v3379 = vpow.pop %v3378
    %v3380 = vsel %vm673, %v3377, 0.0
    %3381 = vadd.xlane.f32.xlu0 %v3380
    %v3382 = vpop.xlane.xlu0 %3381
    %v3383 = vsel %vm673, %v3379, 0.0
    %3384 = vadd.xlane.f32.xlu0 %v3383
    %v3385 = vpop.xlane.xlu0 %3384
    %v3386 = vrcp.pop %v3382
    %v3387 = vmul.f32 1.0, %v3386
    %v3388 = vrcp.pop %v3385
    %v3389 = vmul.f32 1.0, %v3388
    %v3390 = vmul.f32 %v3377, %v3387
    %v3391 = vmul.f32 %v3379, %v3389
    %3392 = vrot.lane.b32.xlu0 %v2532, 64
    %v3393 = vpop.permute.xlu0 %3392
    %v3396 = vsel %vm673, %v3390, 0
    %3398 = vmatprep.subr.mxu0 0.0
    %3399 = vmatpush1.msra.mxu0 %v3393
    %3400 = vmatprep.subr.mxu0 0.0
    %3401 = vmatpush1.msra.mxu0 0.0
    %3402 = vmatprep.subr.mxu0 0.0
    %3403 = vmatpush1.msra.mxu0 0.0
    %3404 = vmatprep.subr.mxu0 0.0
    %3405 = vmatpush1.msra.mxu0 0.0
    %3406 = vmatprep.subr.mxu0 0.0
    %3407 = vmatpush1.msra.mxu0 0.0
    %3408 = vmatprep.subr.mxu0 0.0
    %3409 = vmatpush1.msra.mxu0 0.0
    %3410 = vmatprep.subr.mxu0 0.0
    %3411 = vmatpush1.msra.mxu0 0.0
    %3412 = vmatprep.subr.mxu0 0.0
    %3413 = vmatpush1.msra.mxu0 0.0
    %3414 = vmatprep.subr.mxu0 0.0
    %3415 = vmatpush1.msra.mxu0 0.0
    %3416 = vmatprep.subr.mxu0 0.0
    %3417 = vmatpush1.msra.mxu0 0.0
    %3418 = vmatprep.subr.mxu0 0.0
    %3419 = vmatpush1.msra.mxu0 0.0
    %3420 = vmatprep.subr.mxu0 0.0
    %3421 = vmatpush1.msra.mxu0 0.0
    %3422 = vmatprep.subr.mxu0 0.0
    %3423 = vmatpush1.msra.mxu0 0.0
    %3424 = vmatprep.subr.mxu0 0.0
    %3425 = vmatpush1.msra.mxu0 0.0
    %3426 = vmatprep.subr.mxu0 0.0
    %3427 = vmatpush1.msra.mxu0 0.0
    %3428 = vmatprep.subr.mxu0 0.0
    %3429 = vmatpush1.msra.mxu0 0.0
    %3430 = vmatprep.subr.mxu0 0.0
    %3431 = vmatpush1.msra.mxu0 0.0
    %3432 = vmatprep.subr.mxu0 0.0
    %3433 = vmatpush1.msra.mxu0 0.0
    %3434 = vmatprep.subr.mxu0 0.0
    %3435 = vmatpush1.msra.mxu0 0.0
    %3436 = vmatprep.subr.mxu0 0.0
    %3437 = vmatpush1.msra.mxu0 0.0
    %3438 = vmatprep.subr.mxu0 0.0
    %3439 = vmatpush1.msra.mxu0 0.0
    %3440 = vmatprep.subr.mxu0 0.0
    %3441 = vmatpush1.msra.mxu0 0.0
    %3442 = vmatprep.subr.mxu0 0.0
    %3443 = vmatpush1.msra.mxu0 0.0
    %3444 = vmatprep.subr.mxu0 0.0
    %3445 = vmatpush1.msra.mxu0 0.0
    %3446 = vmatprep.subr.mxu0 0.0
    %3447 = vmatpush1.msra.mxu0 0.0
    %3448 = vmatprep.subr.mxu0 0.0
    %3449 = vmatpush1.msra.mxu0 0.0
    %3450 = vmatprep.subr.mxu0 0.0
    %3451 = vmatpush1.msra.mxu0 0.0
    %3452 = vmatprep.subr.mxu0 0.0
    %3453 = vmatpush1.msra.mxu0 0.0
    %3454 = vmatprep.subr.mxu0 0.0
    %3455 = vmatpush1.msra.mxu0 0.0
    %3456 = vmatprep.subr.mxu0 0.0
    %3457 = vmatpush1.msra.mxu0 0.0
    %3458 = vmatprep.subr.mxu0 0.0
    %3459 = vmatpush1.msra.mxu0 0.0
    %3460 = vmatprep.subr.mxu0 0.0
    %3461 = vmatpush1.msra.mxu0 0.0
    %3462 = vmatprep.mubr.f32.mxu0 0.0
    %3463 = vmatmul.mubr.f32.gmra.mrb[0].mxu0 %v3396
    %v3464 = vpop.f32.mrb[0].mxu0
    %v3465 = vadd.f32 0.0, %v3464
    %v3466 = vpop.f32.mrb[0].mxu0
    %3467 = vdwg.mxu0
    %3468 = vrot.lane.b32.xlu0 %v2537, 64
    %v3469 = vpop.permute.xlu0 %3468
    %v3472 = vsel %vm673, %v3391, 0
    %3474 = vmatprep.subr.mxu0 0.0
    %3475 = vmatpush1.msra.mxu0 %v3469
    %3476 = vmatprep.subr.mxu0 0.0
    %3477 = vmatpush1.msra.mxu0 0.0
    %3478 = vmatprep.subr.mxu0 0.0
    %3479 = vmatpush1.msra.mxu0 0.0
    %3480 = vmatprep.subr.mxu0 0.0
    %3481 = vmatpush1.msra.mxu0 0.0
    %3482 = vmatprep.subr.mxu0 0.0
    %3483 = vmatpush1.msra.mxu0 0.0
    %3484 = vmatprep.subr.mxu0 0.0
    %3485 = vmatpush1.msra.mxu0 0.0
    %3486 = vmatprep.subr.mxu0 0.0
    %3487 = vmatpush1.msra.mxu0 0.0
    %3488 = vmatprep.subr.mxu0 0.0
    %3489 = vmatpush1.msra.mxu0 0.0
    %3490 = vmatprep.subr.mxu0 0.0
    %3491 = vmatpush1.msra.mxu0 0.0
    %3492 = vmatprep.subr.mxu0 0.0
    %3493 = vmatpush1.msra.mxu0 0.0
    %3494 = vmatprep.subr.mxu0 0.0
    %3495 = vmatpush1.msra.mxu0 0.0
    %3496 = vmatprep.subr.mxu0 0.0
    %3497 = vmatpush1.msra.mxu0 0.0
    %3498 = vmatprep.subr.mxu0 0.0
    %3499 = vmatpush1.msra.mxu0 0.0
    %3500 = vmatprep.subr.mxu0 0.0
    %3501 = vmatpush1.msra.mxu0 0.0
    %3502 = vmatprep.subr.mxu0 0.0
    %3503 = vmatpush1.msra.mxu0 0.0
    %3504 = vmatprep.subr.mxu0 0.0
    %3505 = vmatpush1.msra.mxu0 0.0
    %3506 = vmatprep.subr.mxu0 0.0
    %3507 = vmatpush1.msra.mxu0 0.0
    %3508 = vmatprep.subr.mxu0 0.0
    %3509 = vmatpush1.msra.mxu0 0.0
    %3510 = vmatprep.subr.mxu0 0.0
    %3511 = vmatpush1.msra.mxu0 0.0
    %3512 = vmatprep.subr.mxu0 0.0
    %3513 = vmatpush1.msra.mxu0 0.0
    %3514 = vmatprep.subr.mxu0 0.0
    %3515 = vmatpush1.msra.mxu0 0.0
    %3516 = vmatprep.subr.mxu0 0.0
    %3517 = vmatpush1.msra.mxu0 0.0
    %3518 = vmatprep.subr.mxu0 0.0
    %3519 = vmatpush1.msra.mxu0 0.0
    %3520 = vmatprep.subr.mxu0 0.0
    %3521 = vmatpush1.msra.mxu0 0.0
    %3522 = vmatprep.subr.mxu0 0.0
    %3523 = vmatpush1.msra.mxu0 0.0
    %3524 = vmatprep.subr.mxu0 0.0
    %3525 = vmatpush1.msra.mxu0 0.0
    %3526 = vmatprep.subr.mxu0 0.0
    %3527 = vmatpush1.msra.mxu0 0.0
    %3528 = vmatprep.subr.mxu0 0.0
    %3529 = vmatpush1.msra.mxu0 0.0
    %3530 = vmatprep.subr.mxu0 0.0
    %3531 = vmatpush1.msra.mxu0 0.0
    %3532 = vmatprep.subr.mxu0 0.0
    %3533 = vmatpush1.msra.mxu0 0.0
    %3534 = vmatprep.subr.mxu0 0.0
    %3535 = vmatpush1.msra.mxu0 0.0
    %3536 = vmatprep.subr.mxu0 0.0
    %3537 = vmatpush1.msra.mxu0 0.0
    %3538 = vmatprep.mubr.f32.mxu0 0.0
    %3539 = vmatmul.mubr.f32.gmra.mrb[0].mxu0 %v3472
    %v3540 = vpop.f32.mrb[0].mxu0
    %v3541 = vadd.f32 0.0, %v3540
    %v3542 = vpop.f32.mrb[0].mxu0
    %3543 = vdwg.mxu0
    %3544 = vrot.lane.b32.xlu0 %v2548, 32
    %v3545 = vpop.permute.xlu0 %3544
    %3546 = vrot.lane.b32.xlu0 %v2457, 32
    %v3547 = vpop.permute.xlu0 %3546
    %v3548 = vsel %vm518, %v3545, 0
    %v3550 = vsel %vm518, %v3547, 0
    %3552 = vmatprep.subr.mxu0 0.0
    %3553 = vmatpush1.xpose.msra.mxu0 %v3550
    %3554 = vmatprep.subr.mxu0 0.0
    %3555 = vmatpush1.xpose.msra.mxu0 0.0
    %3556 = vmatprep.subr.mxu0 0.0
    %3557 = vmatpush1.xpose.msra.mxu0 0.0
    %3558 = vmatprep.subr.mxu0 0.0
    %3559 = vmatpush1.xpose.msra.mxu0 0.0
    %3560 = vmatprep.subr.mxu0 0.0
    %3561 = vmatpush1.xpose.msra.mxu0 0.0
    %3562 = vmatprep.subr.mxu0 0.0
    %3563 = vmatpush1.xpose.msra.mxu0 0.0
    %3564 = vmatprep.subr.mxu0 0.0
    %3565 = vmatpush1.xpose.msra.mxu0 0.0
    %3566 = vmatprep.subr.mxu0 0.0
    %3567 = vmatpush1.xpose.msra.mxu0 0.0
    %3568 = vmatprep.subr.mxu0 0.0
    %3569 = vmatpush1.xpose.msra.mxu0 0.0
    %3570 = vmatprep.subr.mxu0 0.0
    %3571 = vmatpush1.xpose.msra.mxu0 0.0
    %3572 = vmatprep.subr.mxu0 0.0
    %3573 = vmatpush1.xpose.msra.mxu0 0.0
    %3574 = vmatprep.subr.mxu0 0.0
    %3575 = vmatpush1.xpose.msra.mxu0 0.0
    %3576 = vmatprep.subr.mxu0 0.0
    %3577 = vmatpush1.xpose.msra.mxu0 0.0
    %3578 = vmatprep.subr.mxu0 0.0
    %3579 = vmatpush1.xpose.msra.mxu0 0.0
    %3580 = vmatprep.subr.mxu0 0.0
    %3581 = vmatpush1.xpose.msra.mxu0 0.0
    %3582 = vmatprep.subr.mxu0 0.0
    %3583 = vmatpush1.xpose.msra.mxu0 0.0
    %3584 = vmatprep.subr.mxu0 0.0
    %3585 = vmatpush1.xpose.msra.mxu0 0.0
    %3586 = vmatprep.subr.mxu0 0.0
    %3587 = vmatpush1.xpose.msra.mxu0 0.0
    %3588 = vmatprep.subr.mxu0 0.0
    %3589 = vmatpush1.xpose.msra.mxu0 0.0
    %3590 = vmatprep.subr.mxu0 0.0
    %3591 = vmatpush1.xpose.msra.mxu0 0.0
    %3592 = vmatprep.subr.mxu0 0.0
    %3593 = vmatpush1.xpose.msra.mxu0 0.0
    %3594 = vmatprep.subr.mxu0 0.0
    %3595 = vmatpush1.xpose.msra.mxu0 0.0
    %3596 = vmatprep.subr.mxu0 0.0
    %3597 = vmatpush1.xpose.msra.mxu0 0.0
    %3598 = vmatprep.subr.mxu0 0.0
    %3599 = vmatpush1.xpose.msra.mxu0 0.0
    %3600 = vmatprep.subr.mxu0 0.0
    %3601 = vmatpush1.xpose.msra.mxu0 0.0
    %3602 = vmatprep.subr.mxu0 0.0
    %3603 = vmatpush1.xpose.msra.mxu0 0.0
    %3604 = vmatprep.subr.mxu0 0.0
    %3605 = vmatpush1.xpose.msra.mxu0 0.0
    %3606 = vmatprep.subr.mxu0 0.0
    %3607 = vmatpush1.xpose.msra.mxu0 0.0
    %3608 = vmatprep.subr.mxu0 0.0
    %3609 = vmatpush1.xpose.msra.mxu0 0.0
    %3610 = vmatprep.subr.mxu0 0.0
    %3611 = vmatpush1.xpose.msra.mxu0 0.0
    %3612 = vmatprep.subr.mxu0 0.0
    %3613 = vmatpush1.xpose.msra.mxu0 0.0
    %3614 = vmatprep.subr.mxu0 0.0
    %3615 = vmatpush1.xpose.msra.mxu0 0.0
    %3616 = vmatprep.mubr.f32.mxu0 0.0
    %3617 = vmatmul.mubr.f32.gmra.mrb[0].mxu0 %v3548
    %v3618 = vpop.f32.mrb[0].mxu0
    %v3619 = vadd.f32 0.0, %v3618
    %v3620 = vpop.f32.mrb[0].mxu0
    %3621 = vdwg.mxu0
    %3622 = vrot.lane.b32.xlu0 %v2549, 32
    %v3623 = vpop.permute.xlu0 %3622
    %3624 = vrot.lane.b32.xlu0 %v2463, 32
    %v3625 = vpop.permute.xlu0 %3624
    %v3626 = vsel %vm518, %v3623, 0
    %v3628 = vsel %vm518, %v3625, 0
    %3630 = vmatprep.subr.mxu0 0.0
    %3631 = vmatpush1.xpose.msra.mxu0 %v3628
    %3632 = vmatprep.subr.mxu0 0.0
    %3633 = vmatpush1.xpose.msra.mxu0 0.0
    %3634 = vmatprep.subr.mxu0 0.0
    %3635 = vmatpush1.xpose.msra.mxu0 0.0
    %3636 = vmatprep.subr.mxu0 0.0
    %3637 = vmatpush1.xpose.msra.mxu0 0.0
    %3638 = vmatprep.subr.mxu0 0.0
    %3639 = vmatpush1.xpose.msra.mxu0 0.0
    %3640 = vmatprep.subr.mxu0 0.0
    %3641 = vmatpush1.xpose.msra.mxu0 0.0
    %3642 = vmatprep.subr.mxu0 0.0
    %3643 = vmatpush1.xpose.msra.mxu0 0.0
    %3644 = vmatprep.subr.mxu0 0.0
    %3645 = vmatpush1.xpose.msra.mxu0 0.0
    %3646 = vmatprep.subr.mxu0 0.0
    %3647 = vmatpush1.xpose.msra.mxu0 0.0
    %3648 = vmatprep.subr.mxu0 0.0
    %3649 = vmatpush1.xpose.msra.mxu0 0.0
    %3650 = vmatprep.subr.mxu0 0.0
    %3651 = vmatpush1.xpose.msra.mxu0 0.0
    %3652 = vmatprep.subr.mxu0 0.0
    %3653 = vmatpush1.xpose.msra.mxu0 0.0
    %3654 = vmatprep.subr.mxu0 0.0
    %3655 = vmatpush1.xpose.msra.mxu0 0.0
    %3656 = vmatprep.subr.mxu0 0.0
    %3657 = vmatpush1.xpose.msra.mxu0 0.0
    %3658 = vmatprep.subr.mxu0 0.0
    %3659 = vmatpush1.xpose.msra.mxu0 0.0
    %3660 = vmatprep.subr.mxu0 0.0
    %3661 = vmatpush1.xpose.msra.mxu0 0.0
    %3662 = vmatprep.subr.mxu0 0.0
    %3663 = vmatpush1.xpose.msra.mxu0 0.0
    %3664 = vmatprep.subr.mxu0 0.0
    %3665 = vmatpush1.xpose.msra.mxu0 0.0
    %3666 = vmatprep.subr.mxu0 0.0
    %3667 = vmatpush1.xpose.msra.mxu0 0.0
    %3668 = vmatprep.subr.mxu0 0.0
    %3669 = vmatpush1.xpose.msra.mxu0 0.0
    %3670 = vmatprep.subr.mxu0 0.0
    %3671 = vmatpush1.xpose.msra.mxu0 0.0
    %3672 = vmatprep.subr.mxu0 0.0
    %3673 = vmatpush1.xpose.msra.mxu0 0.0
    %3674 = vmatprep.subr.mxu0 0.0
    %3675 = vmatpush1.xpose.msra.mxu0 0.0
    %3676 = vmatprep.subr.mxu0 0.0
    %3677 = vmatpush1.xpose.msra.mxu0 0.0
    %3678 = vmatprep.subr.mxu0 0.0
    %3679 = vmatpush1.xpose.msra.mxu0 0.0
    %3680 = vmatprep.subr.mxu0 0.0
    %3681 = vmatpush1.xpose.msra.mxu0 0.0
    %3682 = vmatprep.subr.mxu0 0.0
    %3683 = vmatpush1.xpose.msra.mxu0 0.0
    %3684 = vmatprep.subr.mxu0 0.0
    %3685 = vmatpush1.xpose.msra.mxu0 0.0
    %3686 = vmatprep.subr.mxu0 0.0
    %3687 = vmatpush1.xpose.msra.mxu0 0.0
    %3688 = vmatprep.subr.mxu0 0.0
    %3689 = vmatpush1.xpose.msra.mxu0 0.0
    %3690 = vmatprep.subr.mxu0 0.0
    %3691 = vmatpush1.xpose.msra.mxu0 0.0
    %3692 = vmatprep.subr.mxu0 0.0
    %3693 = vmatpush1.xpose.msra.mxu0 0.0
    %3694 = vmatprep.mubr.f32.mxu0 0.0
    %3695 = vmatmul.mubr.f32.gmra.mrb[0].mxu0 %v3626
    %v3696 = vpop.f32.mrb[0].mxu0
    %v3697 = vadd.f32 0.0, %v3696
    %v3698 = vpop.f32.mrb[0].mxu0
    %3699 = vdwg.mxu0
    %v3700 = vmul.f32 %v3619, 0.17677669
    %v3701 = vmul.f32 %v3697, 0.17677669
    %v3702 = vsel %vm673, %v3700, -inf
    %3703 = vmax.xlane.f32.xlu0 %v3702
    %v3704 = vpop.xlane.xlu0 %3703
    %v3705 = vsel %vm673, %v3701, -inf
    %3706 = vmax.xlane.f32.xlu0 %v3705
    %v3707 = vpop.xlane.xlu0 %3706
    %v3708 = vsub.f32 %v3700, %v3704
    %v3709 = vsub.f32 %v3701, %v3707
    %v3710 = vmul.f32 %v3708, 1.442695
    %v3711 = vpow.pop %v3710
    %v3712 = vmul.f32 %v3709, 1.442695
    %v3713 = vpow.pop %v3712
    %v3714 = vsel %vm673, %v3711, 0.0
    %3715 = vadd.xlane.f32.xlu0 %v3714
    %v3716 = vpop.xlane.xlu0 %3715
    %v3717 = vsel %vm673, %v3713, 0.0
    %3718 = vadd.xlane.f32.xlu0 %v3717
    %v3719 = vpop.xlane.xlu0 %3718
    %v3720 = vrcp.pop %v3716
    %v3721 = vmul.f32 1.0, %v3720
    %v3722 = vrcp.pop %v3719
    %v3723 = vmul.f32 1.0, %v3722
    %v3724 = vmul.f32 %v3711, %v3721
    %v3725 = vmul.f32 %v3713, %v3723
    %3726 = vrot.lane.b32.xlu0 %v2532, 32
    %v3727 = vpop.permute.xlu0 %3726
    %v3730 = vsel %vm673, %v3724, 0
    %3732 = vmatprep.subr.mxu0 0.0
    %3733 = vmatpush1.msra.mxu0 %v3727
    %3734 = vmatprep.subr.mxu0 0.0
    %3735 = vmatpush1.msra.mxu0 0.0
    %3736 = vmatprep.subr.mxu0 0.0
    %3737 = vmatpush1.msra.mxu0 0.0
    %3738 = vmatprep.subr.mxu0 0.0
    %3739 = vmatpush1.msra.mxu0 0.0
    %3740 = vmatprep.subr.mxu0 0.0
    %3741 = vmatpush1.msra.mxu0 0.0
    %3742 = vmatprep.subr.mxu0 0.0
    %3743 = vmatpush1.msra.mxu0 0.0
    %3744 = vmatprep.subr.mxu0 0.0
    %3745 = vmatpush1.msra.mxu0 0.0
    %3746 = vmatprep.subr.mxu0 0.0
    %3747 = vmatpush1.msra.mxu0 0.0
    %3748 = vmatprep.subr.mxu0 0.0
    %3749 = vmatpush1.msra.mxu0 0.0
    %3750 = vmatprep.subr.mxu0 0.0
    %3751 = vmatpush1.msra.mxu0 0.0
    %3752 = vmatprep.subr.mxu0 0.0
    %3753 = vmatpush1.msra.mxu0 0.0
    %3754 = vmatprep.subr.mxu0 0.0
    %3755 = vmatpush1.msra.mxu0 0.0
    %3756 = vmatprep.subr.mxu0 0.0
    %3757 = vmatpush1.msra.mxu0 0.0
    %3758 = vmatprep.subr.mxu0 0.0
    %3759 = vmatpush1.msra.mxu0 0.0
    %3760 = vmatprep.subr.mxu0 0.0
    %3761 = vmatpush1.msra.mxu0 0.0
    %3762 = vmatprep.subr.mxu0 0.0
    %3763 = vmatpush1.msra.mxu0 0.0
    %3764 = vmatprep.subr.mxu0 0.0
    %3765 = vmatpush1.msra.mxu0 0.0
    %3766 = vmatprep.subr.mxu0 0.0
    %3767 = vmatpush1.msra.mxu0 0.0
    %3768 = vmatprep.subr.mxu0 0.0
    %3769 = vmatpush1.msra.mxu0 0.0
    %3770 = vmatprep.subr.mxu0 0.0
    %3771 = vmatpush1.msra.mxu0 0.0
    %3772 = vmatprep.subr.mxu0 0.0
    %3773 = vmatpush1.msra.mxu0 0.0
    %3774 = vmatprep.subr.mxu0 0.0
    %3775 = vmatpush1.msra.mxu0 0.0
    %3776 = vmatprep.subr.mxu0 0.0
    %3777 = vmatpush1.msra.mxu0 0.0
    %3778 = vmatprep.subr.mxu0 0.0
    %3779 = vmatpush1.msra.mxu0 0.0
    %3780 = vmatprep.subr.mxu0 0.0
    %3781 = vmatpush1.msra.mxu0 0.0
    %3782 = vmatprep.subr.mxu0 0.0
    %3783 = vmatpush1.msra.mxu0 0.0
    %3784 = vmatprep.subr.mxu0 0.0
    %3785 = vmatpush1.msra.mxu0 0.0
    %3786 = vmatprep.subr.mxu0 0.0
    %3787 = vmatpush1.msra.mxu0 0.0
    %3788 = vmatprep.subr.mxu0 0.0
    %3789 = vmatpush1.msra.mxu0 0.0
    %3790 = vmatprep.subr.mxu0 0.0
    %3791 = vmatpush1.msra.mxu0 0.0
    %3792 = vmatprep.subr.mxu0 0.0
    %3793 = vmatpush1.msra.mxu0 0.0
    %3794 = vmatprep.subr.mxu0 0.0
    %3795 = vmatpush1.msra.mxu0 0.0
    %3796 = vmatprep.mubr.f32.mxu0 0.0
    %3797 = vmatmul.mubr.f32.gmra.mrb[0].mxu0 %v3730
    %v3798 = vpop.f32.mrb[0].mxu0
    %v3799 = vadd.f32 0.0, %v3798
    %v3800 = vpop.f32.mrb[0].mxu0
    %3801 = vdwg.mxu0
    %3802 = vrot.lane.b32.xlu0 %v2537, 32
    %v3803 = vpop.permute.xlu0 %3802
    %v3806 = vsel %vm673, %v3725, 0
    %3808 = vmatprep.subr.mxu0 0.0
    %3809 = vmatpush1.msra.mxu0 %v3803
    %3810 = vmatprep.subr.mxu0 0.0
    %3811 = vmatpush1.msra.mxu0 0.0
    %3812 = vmatprep.subr.mxu0 0.0
    %3813 = vmatpush1.msra.mxu0 0.0
    %3814 = vmatprep.subr.mxu0 0.0
    %3815 = vmatpush1.msra.mxu0 0.0
    %3816 = vmatprep.subr.mxu0 0.0
    %3817 = vmatpush1.msra.mxu0 0.0
    %3818 = vmatprep.subr.mxu0 0.0
    %3819 = vmatpush1.msra.mxu0 0.0
    %3820 = vmatprep.subr.mxu0 0.0
    %3821 = vmatpush1.msra.mxu0 0.0
    %3822 = vmatprep.subr.mxu0 0.0
    %3823 = vmatpush1.msra.mxu0 0.0
    %3824 = vmatprep.subr.mxu0 0.0
    %3825 = vmatpush1.msra.mxu0 0.0
    %3826 = vmatprep.subr.mxu0 0.0
    %3827 = vmatpush1.msra.mxu0 0.0
    %3828 = vmatprep.subr.mxu0 0.0
    %3829 = vmatpush1.msra.mxu0 0.0
    %3830 = vmatprep.subr.mxu0 0.0
    %3831 = vmatpush1.msra.mxu0 0.0
    %3832 = vmatprep.subr.mxu0 0.0
    %3833 = vmatpush1.msra.mxu0 0.0
    %3834 = vmatprep.subr.mxu0 0.0
    %3835 = vmatpush1.msra.mxu0 0.0
    %3836 = vmatprep.subr.mxu0 0.0
    %3837 = vmatpush1.msra.mxu0 0.0
    %3838 = vmatprep.subr.mxu0 0.0
    %3839 = vmatpush1.msra.mxu0 0.0
    %3840 = vmatprep.subr.mxu0 0.0
    %3841 = vmatpush1.msra.mxu0 0.0
    %3842 = vmatprep.subr.mxu0 0.0
    %3843 = vmatpush1.msra.mxu0 0.0
    %3844 = vmatprep.subr.mxu0 0.0
    %3845 = vmatpush1.msra.mxu0 0.0
    %3846 = vmatprep.subr.mxu0 0.0
    %3847 = vmatpush1.msra.mxu0 0.0
    %3848 = vmatprep.subr.mxu0 0.0
    %3849 = vmatpush1.msra.mxu0 0.0
    %3850 = vmatprep.subr.mxu0 0.0
    %3851 = vmatpush1.msra.mxu0 0.0
    %3852 = vmatprep.subr.mxu0 0.0
    %3853 = vmatpush1.msra.mxu0 0.0
    %3854 = vmatprep.subr.mxu0 0.0
    %3855 = vmatpush1.msra.mxu0 0.0
    %3856 = vmatprep.subr.mxu0 0.0
    %3857 = vmatpush1.msra.mxu0 0.0
    %3858 = vmatprep.subr.mxu0 0.0
    %3859 = vmatpush1.msra.mxu0 0.0
    %3860 = vmatprep.subr.mxu0 0.0
    %3861 = vmatpush1.msra.mxu0 0.0
    %3862 = vmatprep.subr.mxu0 0.0
    %3863 = vmatpush1.msra.mxu0 0.0
    %3864 = vmatprep.subr.mxu0 0.0
    %3865 = vmatpush1.msra.mxu0 0.0
    %3866 = vmatprep.subr.mxu0 0.0
    %3867 = vmatpush1.msra.mxu0 0.0
    %3868 = vmatprep.subr.mxu0 0.0
    %3869 = vmatpush1.msra.mxu0 0.0
    %3870 = vmatprep.subr.mxu0 0.0
    %3871 = vmatpush1.msra.mxu0 0.0
    %3872 = vmatprep.mubr.f32.mxu0 0.0
    %3873 = vmatmul.mubr.f32.gmra.mrb[0].mxu0 %v3806
    %v3874 = vpop.f32.mrb[0].mxu0
    %v3875 = vadd.f32 0.0, %v3874
    %v3876 = vpop.f32.mrb[0].mxu0
    %3877 = vdwg.mxu0
    %3880 = vrot.lane.b32.xlu0 %v3130, 32
    %v3881 = vpop.permute.xlu0 %3880
    %3882 = vrot.lane.b32.xlu0 %v3207, 32
    %v3883 = vpop.permute.xlu0 %3882
    %3888 = vrot.lane.b32.xlu0 %v3465, 64
    %v3889 = vpop.permute.xlu0 %3888
    %3890 = vrot.lane.b32.xlu0 %v3541, 64
    %v3891 = vpop.permute.xlu0 %3890
    %3896 = vrot.lane.b32.xlu0 %v3799, 96
    %v3897 = vpop.permute.xlu0 %3896
    %3898 = vrot.lane.b32.xlu0 %v3875, 96
    %v3899 = vpop.permute.xlu0 %3898
    %v3902 = vsel %vm518, %v2798, %v3881
    %v3903 = vsel %vm518, %v2871, %v3883
    %v3904 = vsel %vm1874, %v3902, %v3889
    %v3905 = vsel %vm1874, %v3903, %v3891
    %v3906 = vsel %vm1877, %v3904, %v3897
    %v3907 = vsel %vm1877, %v3905, %v3899
    %s3908 = scalar_lea.vmem [#allocation11], 128
    %v3909 = vld [vmem:[%s3908] sm:$0xff]
    %v3910 = vld [vmem:[%s3908 + $0x8] sm:$0xff]
    %v3911 = vld [vmem:[%s3908 + $0x10] sm:$0xff]
    %v3912 = vld [vmem:[%s3908 + $0x18] sm:$0xff]
    %v3913 = vld [vmem:[%s3908 + $0x20] sm:$0xff]
    %v3914 = vld [vmem:[%s3908 + $0x28] sm:$0xff]
    %v3915 = vld [vmem:[%s3908 + $0x30] sm:$0xff]
    %v3916 = vld [vmem:[%s3908 + $0x38] sm:$0xff]
    %v3917 = vld [vmem:[%s3908 + $0x40] sm:$0xff]
    %v3918 = vld [vmem:[%s3908 + $0x48] sm:$0xff]
    %v3919 = vld [vmem:[%s3908 + $0x50] sm:$0xff]
    %v3920 = vld [vmem:[%s3908 + $0x58] sm:$0xff]
    %v3921 = vld [vmem:[%s3908 + $0x60] sm:$0xff]
    %v3922 = vld [vmem:[%s3908 + $0x68] sm:$0xff]
    %v3923 = vld [vmem:[%s3908 + $0x70] sm:$0xff]
    %v3924 = vld [vmem:[%s3908 + $0x78] sm:$0xff]
    %3925 = vmatprep.subr.mxu0 0.0
    %3926 = vmatpush1.msra.mxu0 %v3909
    %3927 = vmatprep.subr.mxu0 0.0
    %3928 = vmatpush1.msra.mxu0 %v3910
    %3929 = vmatprep.subr.mxu0 0.0
    %3930 = vmatpush1.msra.mxu0 %v3911
    %3931 = vmatprep.subr.mxu0 0.0
    %3932 = vmatpush1.msra.mxu0 %v3912
    %3933 = vmatprep.subr.mxu0 0.0
    %3934 = vmatpush1.msra.mxu0 %v3913
    %3935 = vmatprep.subr.mxu0 0.0
    %3936 = vmatpush1.msra.mxu0 %v3914
    %3937 = vmatprep.subr.mxu0 0.0
    %3938 = vmatpush1.msra.mxu0 %v3915
    %3939 = vmatprep.subr.mxu0 0.0
    %3940 = vmatpush1.msra.mxu0 %v3916
    %3941 = vmatprep.subr.mxu0 0.0
    %3942 = vmatpush1.msra.mxu0 %v3917
    %3943 = vmatprep.subr.mxu0 0.0
    %3944 = vmatpush1.msra.mxu0 %v3918
    %3945 = vmatprep.subr.mxu0 0.0
    %3946 = vmatpush1.msra.mxu0 %v3919
    %3947 = vmatprep.subr.mxu0 0.0
    %3948 = vmatpush1.msra.mxu0 %v3920
    %3949 = vmatprep.subr.mxu0 0.0
    %3950 = vmatpush1.msra.mxu0 %v3921
    %3951 = vmatprep.subr.mxu0 0.0
    %3952 = vmatpush1.msra.mxu0 %v3922
    %3953 = vmatprep.subr.mxu0 0.0
    %3954 = vmatpush1.msra.mxu0 %v3923
    %3955 = vmatprep.subr.mxu0 0.0
    %3956 = vmatpush1.msra.mxu0 %v3924
    %3957 = vmatprep.subr.mxu0 0.0
    %3958 = vmatpush1.msra.mxu0 0.0
    %3959 = vmatprep.subr.mxu0 0.0
    %3960 = vmatpush1.msra.mxu0 0.0
    %3961 = vmatprep.subr.mxu0 0.0
    %3962 = vmatpush1.msra.mxu0 0.0
    %3963 = vmatprep.subr.mxu0 0.0
    %3964 = vmatpush1.msra.mxu0 0.0
    %3965 = vmatprep.subr.mxu0 0.0
    %3966 = vmatpush1.msra.mxu0 0.0
    %3967 = vmatprep.subr.mxu0 0.0
    %3968 = vmatpush1.msra.mxu0 0.0
    %3969 = vmatprep.subr.mxu0 0.0
    %3970 = vmatpush1.msra.mxu0 0.0
    %3971 = vmatprep.subr.mxu0 0.0
    %3972 = vmatpush1.msra.mxu0 0.0
    %3973 = vmatprep.subr.mxu0 0.0
    %3974 = vmatpush1.msra.mxu0 0.0
    %3975 = vmatprep.subr.mxu0 0.0
    %3976 = vmatpush1.msra.mxu0 0.0
    %3977 = vmatprep.subr.mxu0 0.0
    %3978 = vmatpush1.msra.mxu0 0.0
    %3979 = vmatprep.subr.mxu0 0.0
    %3980 = vmatpush1.msra.mxu0 0.0
    %3981 = vmatprep.subr.mxu0 0.0
    %3982 = vmatpush1.msra.mxu0 0.0
    %3983 = vmatprep.subr.mxu0 0.0
    %3984 = vmatpush1.msra.mxu0 0.0
    %3985 = vmatprep.subr.mxu0 0.0
    %3986 = vmatpush1.msra.mxu0 0.0
    %3987 = vmatprep.subr.mxu0 0.0
    %3988 = vmatpush1.msra.mxu0 0.0
    %3989 = vmatprep.mubr.f32.mxu0 0.0
    %3990 = vmatmul.mubr.f32.gmra.mrb[0].mxu0 %v3906
    %v3991 = vpop.f32.mrb[0].mxu0
    %v3992 = vadd.f32 0.0, %v3991
    %v3993 = vpop.f32.mrb[0].mxu0
    %3994 = vmatprep.mubr.f32.mxu0 0.0
    %3995 = vmatmul.mubr.f32.gmra.mrb[0].mxu0 %v3907
    %v3996 = vpop.f32.mrb[0].mxu0
    %v3997 = vadd.f32 0.0, %v3996
    %v3998 = vpop.f32.mrb[0].mxu0
    %3999 = vdwg.mxu0
    %v4000 = vadd.f32 %v2279, %v3992
    %v4001 = vadd.f32 %v2280, %v3997
    %s4002 = scalar_lea.vmem [#allocation13], 1
    %v4003 = vld [vmem:[%s4002] sm:$0x1]
    %v4005 = vlaneseq
    %v4006 = vshrl.u32 %v4005, 7
    %v4007 = vsub.s32 0, %v4006
    %v4008 = vrot.slane %v4003, %v4007
    %v4010 = vadd.f32 %v4000, %v4008
    %v4011 = vadd.f32 %v4001, %v4008
    %s4012 = scalar_lea.vmem [#allocation14], 1
    %v4013 = vld [vmem:[%s4012] sm:$0x1]
    %s4014 = scalar_lea.vmem [#allocation16], 1
    %v4015 = vld [vmem:[%s4014] sm:$0x1]
    %4016 = vadd.xlane.f32.xlu0 %v4010
    %v4017 = vpop.xlane.xlu0 %4016
    %4018 = vadd.xlane.f32.xlu0 %v4011
    %v4019 = vpop.xlane.xlu0 %4018
    %v4020 = vmul.f32 %v4017, %v258
    %v4021 = vmul.f32 %v4019, %v258
    %v4022 = vsub.f32 %v4010, %v4020
    %v4023 = vsub.f32 %v4011, %v4021
    %v4024 = vmul.f32 %v4022, %v4022
    %v4025 = vmul.f32 %v4023, %v4023
    %4026 = vadd.xlane.f32.xlu0 %v4024
    %v4027 = vpop.xlane.xlu0 %4026
    %4028 = vadd.xlane.f32.xlu0 %v4025
    %v4029 = vpop.xlane.xlu0 %4028
    %v4030 = vmul.f32 %v4027, 0.007874016
    %v4031 = vmul.f32 %v4029, 0.007874016
    %v4032 = vrsqrt.pop %v4030
    %v4033 = vmul.f32 %v4030, %v4032
    %vm4034 = vcmp.eq.f32.partialorder %v4030, inf
    %v4035 = vsel %vm4034, %v4030, %v4033
    %vm4036 = vcmp.eq.f32.partialorder %v4030, 0.0
    %v4037 = vand.u32 %v4030, 2147483648
    %v4038 = vsel %vm4036, %v4037, %v4035
    %v4039 = vrsqrt.pop %v4031
    %v4040 = vmul.f32 %v4031, %v4039
    %vm4041 = vcmp.eq.f32.partialorder %v4031, inf
    %v4042 = vsel %vm4041, %v4031, %v4040
    %vm4043 = vcmp.eq.f32.partialorder %v4031, 0.0
    %v4044 = vand.u32 %v4031, 2147483648
    %v4045 = vsel %vm4043, %v4044, %v4042
    %v4046 = vadd.f32 %v4038, 1e-06
    %v4047 = vadd.f32 %v4045, 1e-06
    %v4048 = vrcp.pop %v4046
    %v4049 = vmul.f32 1.0, %v4048
    %v4050 = vrcp.pop %v4047
    %v4051 = vmul.f32 1.0, %v4050
    %v4052 = vmul.f32 %v4022, %v4049
    %v4053 = vmul.f32 %v4023, %v4051
    %v4055 = vlaneseq
    %v4056 = vshrl.u32 %v4055, 7
    %v4057 = vsub.s32 0, %v4056
    %v4058 = vrot.slane %v4013, %v4057
    %v4060 = vmul.f32 %v4058, %v4052
    %v4061 = vmul.f32 %v4058, %v4053
    %v4063 = vlaneseq
    %v4064 = vshrl.u32 %v4063, 7
    %v4065 = vsub.s32 0, %v4064
    %v4066 = vrot.slane %v4015, %v4065
    %v4068 = vadd.f32 %v4060, %v4066
    %v4069 = vadd.f32 %v4061, %v4066
    %s4070 = scalar_lea.vmem [#allocation17], 256
    %v4071 = vld [vmem:[%s4070] sm:$0xff]
    %v4072 = vld [vmem:[%s4070 + $0x8] sm:$0xff]
    %v4073 = vld [vmem:[%s4070 + $0x10] sm:$0xff]
    %v4074 = vld [vmem:[%s4070 + $0x18] sm:$0xff]
    %v4075 = vld [vmem:[%s4070 + $0x20] sm:$0xff]
    %v4076 = vld [vmem:[%s4070 + $0x28] sm:$0xff]
    %v4077 = vld [vmem:[%s4070 + $0x30] sm:$0xff]
    %v4078 = vld [vmem:[%s4070 + $0x38] sm:$0xff]
    %v4079 = vld [vmem:[%s4070 + $0x40] sm:$0xff]
    %v4080 = vld [vmem:[%s4070 + $0x48] sm:$0xff]
    %v4081 = vld [vmem:[%s4070 + $0x50] sm:$0xff]
    %v4082 = vld [vmem:[%s4070 + $0x58] sm:$0xff]
    %v4083 = vld [vmem:[%s4070 + $0x60] sm:$0xff]
    %v4084 = vld [vmem:[%s4070 + $0x68] sm:$0xff]
    %v4085 = vld [vmem:[%s4070 + $0x70] sm:$0xff]
    %v4086 = vld [vmem:[%s4070 + $0x78] sm:$0xff]
    %v4087 = vld [vmem:[%s4070 + $0x80] sm:$0xff]
    %v4088 = vld [vmem:[%s4070 + $0x88] sm:$0xff]
    %v4089 = vld [vmem:[%s4070 + $0x90] sm:$0xff]
    %v4090 = vld [vmem:[%s4070 + $0x98] sm:$0xff]
    %v4091 = vld [vmem:[%s4070 + $0xa0] sm:$0xff]
    %v4092 = vld [vmem:[%s4070 + $0xa8] sm:$0xff]
    %v4093 = vld [vmem:[%s4070 + $0xb0] sm:$0xff]
    %v4094 = vld [vmem:[%s4070 + $0xb8] sm:$0xff]
    %v4095 = vld [vmem:[%s4070 + $0xc0] sm:$0xff]
    %v4096 = vld [vmem:[%s4070 + $0xc8] sm:$0xff]
    %v4097 = vld [vmem:[%s4070 + $0xd0] sm:$0xff]
    %v4098 = vld [vmem:[%s4070 + $0xd8] sm:$0xff]
    %v4099 = vld [vmem:[%s4070 + $0xe0] sm:$0xff]
    %v4100 = vld [vmem:[%s4070 + $0xe8] sm:$0xff]
    %v4101 = vld [vmem:[%s4070 + $0xf0] sm:$0xff]
    %v4102 = vld [vmem:[%s4070 + $0xf8] sm:$0xff]
    %s4103 = scalar_lea.vmem [#allocation19], 2
    %v4104 = vld [vmem:[%s4103] sm:$0x3]
    %v4106 = vlaneseq
    %v4107 = vshrl.u32 %v4106, 7
    %v4108 = vsub.s32 0, %v4107
    %v4109 = vrot.slane %v4104, %v4108
    %v4110 = vlaneseq
    %v4111 = vshrl.u32 %v4110, 7
    %v4112 = vsub.s32 1, %v4111
    %v4113 = vrot.slane %v4104, %v4112
    %4116 = vmatprep.subr.mxu0 %v4072
    %4117 = vmatpush1.msra.mxu0 %v4071
    %4118 = vmatprep.subr.mxu0 %v4074
    %4119 = vmatpush1.msra.mxu0 %v4073
    %4120 = vmatprep.subr.mxu0 %v4076
    %4121 = vmatpush1.msra.mxu0 %v4075
    %4122 = vmatprep.subr.mxu0 %v4078
    %4123 = vmatpush1.msra.mxu0 %v4077
    %4124 = vmatprep.subr.mxu0 %v4080
    %4125 = vmatpush1.msra.mxu0 %v4079
    %4126 = vmatprep.subr.mxu0 %v4082
    %4127 = vmatpush1.msra.mxu0 %v4081
    %4128 = vmatprep.subr.mxu0 %v4084
    %4129 = vmatpush1.msra.mxu0 %v4083
    %4130 = vmatprep.subr.mxu0 %v4086
    %4131 = vmatpush1.msra.mxu0 %v4085
    %4132 = vmatprep.subr.mxu0 %v4088
    %4133 = vmatpush1.msra.mxu0 %v4087
    %4134 = vmatprep.subr.mxu0 %v4090
    %4135 = vmatpush1.msra.mxu0 %v4089
    %4136 = vmatprep.subr.mxu0 %v4092
    %4137 = vmatpush1.msra.mxu0 %v4091
    %4138 = vmatprep.subr.mxu0 %v4094
    %4139 = vmatpush1.msra.mxu0 %v4093
    %4140 = vmatprep.subr.mxu0 %v4096
    %4141 = vmatpush1.msra.mxu0 %v4095
    %4142 = vmatprep.subr.mxu0 %v4098
    %4143 = vmatpush1.msra.mxu0 %v4097
    %4144 = vmatprep.subr.mxu0 %v4100
    %4145 = vmatpush1.msra.mxu0 %v4099
    %4146 = vmatprep.subr.mxu0 %v4102
    %4147 = vmatpush1.msra.mxu0 %v4101
    %4148 = vmatprep.subr.mxu0 0.0
    %4149 = vmatpush1.msra.mxu0 0.0
    %4150 = vmatprep.subr.mxu0 0.0
    %4151 = vmatpush1.msra.mxu0 0.0
    %4152 = vmatprep.subr.mxu0 0.0
    %4153 = vmatpush1.msra.mxu0 0.0
    %4154 = vmatprep.subr.mxu0 0.0
    %4155 = vmatpush1.msra.mxu0 0.0
    %4156 = vmatprep.subr.mxu0 0.0
    %4157 = vmatpush1.msra.mxu0 0.0
    %4158 = vmatprep.subr.mxu0 0.0
    %4159 = vmatpush1.msra.mxu0 0.0
    %4160 = vmatprep.subr.mxu0 0.0
    %4161 = vmatpush1.msra.mxu0 0.0
    %4162 = vmatprep.subr.mxu0 0.0
    %4163 = vmatpush1.msra.mxu0 0.0
    %4164 = vmatprep.subr.mxu0 0.0
    %4165 = vmatpush1.msra.mxu0 0.0
    %4166 = vmatprep.subr.mxu0 0.0
    %4167 = vmatpush1.msra.mxu0 0.0
    %4168 = vmatprep.subr.mxu0 0.0
    %4169 = vmatpush1.msra.mxu0 0.0
    %4170 = vmatprep.subr.mxu0 0.0
    %4171 = vmatpush1.msra.mxu0 0.0
    %4172 = vmatprep.subr.mxu0 0.0
    %4173 = vmatpush1.msra.mxu0 0.0
    %4174 = vmatprep.subr.mxu0 0.0
    %4175 = vmatpush1.msra.mxu0 0.0
    %4176 = vmatprep.subr.mxu0 0.0
    %4177 = vmatpush1.msra.mxu0 0.0
    %4178 = vmatprep.subr.mxu0 0.0
    %4179 = vmatpush1.msra.mxu0 0.0
    %4180 = vmatprep.mubr.f32.mxu0 0.0
    %4181 = vmatmul.mubr.f32.gmra.mrb[0].mxu0 %v4068
    %v4182 = vpop.f32.mrb[0].mxu0
    %v4183 = vadd.f32 %v4109, %v4182
    %v4184 = vpop.f32.mrb[0].mxu0
    %v4185 = vadd.f32 %v4113, %v4184
    %4186 = vmatprep.mubr.f32.mxu0 0.0
    %4187 = vmatmul.mubr.f32.gmra.mrb[0].mxu0 %v4069
    %v4188 = vpop.f32.mrb[0].mxu0
    %v4189 = vadd.f32 %v4109, %v4188
    %v4190 = vpop.f32.mrb[0].mxu0
    %v4191 = vadd.f32 %v4113, %v4190
    %4192 = vdwg.mxu0
    %v4193 = vmax.f32 %v4183, 0.0
    %v4194 = vmax.f32 %v4185, 0.0
    %v4195 = vmax.f32 %v4189, 0.0
    %v4196 = vmax.f32 %v4191, 0.0
    %s4197 = scalar_lea.vmem [#allocation20], 256
    %v4198 = vld [vmem:[%s4197] sm:$0xff]
    %v4199 = vld [vmem:[%s4197 + $0x8] sm:$0xff]
    %v4200 = vld [vmem:[%s4197 + $0x10] sm:$0xff]
    %v4201 = vld [vmem:[%s4197 + $0x18] sm:$0xff]
    %v4202 = vld [vmem:[%s4197 + $0x20] sm:$0xff]
    %v4203 = vld [vmem:[%s4197 + $0x28] sm:$0xff]
    %v4204 = vld [vmem:[%s4197 + $0x30] sm:$0xff]
    %v4205 = vld [vmem:[%s4197 + $0x38] sm:$0xff]
    %v4206 = vld [vmem:[%s4197 + $0x40] sm:$0xff]
    %v4207 = vld [vmem:[%s4197 + $0x48] sm:$0xff]
    %v4208 = vld [vmem:[%s4197 + $0x50] sm:$0xff]
    %v4209 = vld [vmem:[%s4197 + $0x58] sm:$0xff]
    %v4210 = vld [vmem:[%s4197 + $0x60] sm:$0xff]
    %v4211 = vld [vmem:[%s4197 + $0x68] sm:$0xff]
    %v4212 = vld [vmem:[%s4197 + $0x70] sm:$0xff]
    %v4213 = vld [vmem:[%s4197 + $0x78] sm:$0xff]
    %v4214 = vld [vmem:[%s4197 + $0x80] sm:$0xff]
    %v4215 = vld [vmem:[%s4197 + $0x88] sm:$0xff]
    %v4216 = vld [vmem:[%s4197 + $0x90] sm:$0xff]
    %v4217 = vld [vmem:[%s4197 + $0x98] sm:$0xff]
    %v4218 = vld [vmem:[%s4197 + $0xa0] sm:$0xff]
    %v4219 = vld [vmem:[%s4197 + $0xa8] sm:$0xff]
    %v4220 = vld [vmem:[%s4197 + $0xb0] sm:$0xff]
    %v4221 = vld [vmem:[%s4197 + $0xb8] sm:$0xff]
    %v4222 = vld [vmem:[%s4197 + $0xc0] sm:$0xff]
    %v4223 = vld [vmem:[%s4197 + $0xc8] sm:$0xff]
    %v4224 = vld [vmem:[%s4197 + $0xd0] sm:$0xff]
    %v4225 = vld [vmem:[%s4197 + $0xd8] sm:$0xff]
    %v4226 = vld [vmem:[%s4197 + $0xe0] sm:$0xff]
    %v4227 = vld [vmem:[%s4197 + $0xe8] sm:$0xff]
    %v4228 = vld [vmem:[%s4197 + $0xf0] sm:$0xff]
    %v4229 = vld [vmem:[%s4197 + $0xf8] sm:$0xff]
    %4230 = vmatprep.subr.mxu0 0.0
    %4231 = vmatpush1.msra.mxu0 %v4198
    %4232 = vmatprep.subr.mxu0 0.0
    %4233 = vmatpush1.msra.mxu0 %v4199
    %4234 = vmatprep.subr.mxu0 0.0
    %4235 = vmatpush1.msra.mxu0 %v4200
    %4236 = vmatprep.subr.mxu0 0.0
    %4237 = vmatpush1.msra.mxu0 %v4201
    %4238 = vmatprep.subr.mxu0 0.0
    %4239 = vmatpush1.msra.mxu0 %v4202
    %4240 = vmatprep.subr.mxu0 0.0
    %4241 = vmatpush1.msra.mxu0 %v4203
    %4242 = vmatprep.subr.mxu0 0.0
    %4243 = vmatpush1.msra.mxu0 %v4204
    %4244 = vmatprep.subr.mxu0 0.0
    %4245 = vmatpush1.msra.mxu0 %v4205
    %4246 = vmatprep.subr.mxu0 0.0
    %4247 = vmatpush1.msra.mxu0 %v4206
    %4248 = vmatprep.subr.mxu0 0.0
    %4249 = vmatpush1.msra.mxu0 %v4207
    %4250 = vmatprep.subr.mxu0 0.0
    %4251 = vmatpush1.msra.mxu0 %v4208
    %4252 = vmatprep.subr.mxu0 0.0
    %4253 = vmatpush1.msra.mxu0 %v4209
    %4254 = vmatprep.subr.mxu0 0.0
    %4255 = vmatpush1.msra.mxu0 %v4210
    %4256 = vmatprep.subr.mxu0 0.0
    %4257 = vmatpush1.msra.mxu0 %v4211
    %4258 = vmatprep.subr.mxu0 0.0
    %4259 = vmatpush1.msra.mxu0 %v4212
    %4260 = vmatprep.subr.mxu0 0.0
    %4261 = vmatpush1.msra.mxu0 %v4213
    %4262 = vmatprep.subr.mxu0 0.0
    %4263 = vmatpush1.msra.mxu0 %v4214
    %4264 = vmatprep.subr.mxu0 0.0
    %4265 = vmatpush1.msra.mxu0 %v4215
    %4266 = vmatprep.subr.mxu0 0.0
    %4267 = vmatpush1.msra.mxu0 %v4216
    %4268 = vmatprep.subr.mxu0 0.0
    %4269 = vmatpush1.msra.mxu0 %v4217
    %4270 = vmatprep.subr.mxu0 0.0
    %4271 = vmatpush1.msra.mxu0 %v4218
    %4272 = vmatprep.subr.mxu0 0.0
    %4273 = vmatpush1.msra.mxu0 %v4219
    %4274 = vmatprep.subr.mxu0 0.0
    %4275 = vmatpush1.msra.mxu0 %v4220
    %4276 = vmatprep.subr.mxu0 0.0
    %4277 = vmatpush1.msra.mxu0 %v4221
    %4278 = vmatprep.subr.mxu0 0.0
    %4279 = vmatpush1.msra.mxu0 %v4222
    %4280 = vmatprep.subr.mxu0 0.0
    %4281 = vmatpush1.msra.mxu0 %v4223
    %4282 = vmatprep.subr.mxu0 0.0
    %4283 = vmatpush1.msra.mxu0 %v4224
    %4284 = vmatprep.subr.mxu0 0.0
    %4285 = vmatpush1.msra.mxu0 %v4225
    %4286 = vmatprep.subr.mxu0 0.0
    %4287 = vmatpush1.msra.mxu0 %v4226
    %4288 = vmatprep.subr.mxu0 0.0
    %4289 = vmatpush1.msra.mxu0 %v4227
    %4290 = vmatprep.subr.mxu0 0.0
    %4291 = vmatpush1.msra.mxu0 %v4228
    %4292 = vmatprep.subr.mxu0 0.0
    %4293 = vmatpush1.msra.mxu0 %v4229
    %4294 = vmatprep.mubr.f32.mxu0 %v4194
    %4295 = vmatmul.mubr.f32.gmra.mrb[0].mxu0 %v4193
    %v4296 = vpop.f32.mrb[0].mxu0
    %v4297 = vadd.f32 0.0, %v4296
    %v4298 = vpop.f32.mrb[0].mxu0
    %4299 = vmatprep.mubr.f32.mxu0 %v4196
    %4300 = vmatmul.mubr.f32.gmra.mrb[0].mxu0 %v4195
    %v4301 = vpop.f32.mrb[0].mxu0
    %v4302 = vadd.f32 0.0, %v4301
    %v4303 = vpop.f32.mrb[0].mxu0
    %4304 = vdwg.mxu0
    %v4305 = vadd.f32 %v4010, %v4297
    %v4306 = vadd.f32 %v4011, %v4302
    %s4307 = scalar_lea.vmem [#allocation22], 1
    %v4308 = vld [vmem:[%s4307] sm:$0x1]
    %v4310 = vlaneseq
    %v4311 = vshrl.u32 %v4310, 7
    %v4312 = vsub.s32 0, %v4311
    %v4313 = vrot.slane %v4308, %v4312
    %v4315 = vadd.f32 %v4305, %v4313
    %v4316 = vadd.f32 %v4306, %v4313
    %v4317 = vld [vmem:[#allocation23] sm:$0x1]
    %v4318 = vld [vmem:[#allocation25] sm:$0x1]
    %4319 = vadd.xlane.f32.xlu0 %v4315
    %v4320 = vpop.xlane.xlu0 %4319
    %4321 = vadd.xlane.f32.xlu0 %v4316
    %v4322 = vpop.xlane.xlu0 %4321
    %v4323 = vmul.f32 %v4320, %v258
    %v4324 = vmul.f32 %v4322, %v258
    %v4325 = vsub.f32 %v4315, %v4323
    %v4326 = vsub.f32 %v4316, %v4324
    %v4327 = vmul.f32 %v4325, %v4325
    %v4328 = vmul.f32 %v4326, %v4326
    %4329 = vadd.xlane.f32.xlu0 %v4327
    %v4330 = vpop.xlane.xlu0 %4329
    %4331 = vadd.xlane.f32.xlu0 %v4328
    %v4332 = vpop.xlane.xlu0 %4331
    %v4333 = vmul.f32 %v4330, 0.007874016
    %v4334 = vmul.f32 %v4332, 0.007874016
    %v4335 = vrsqrt.pop %v4333
    %v4336 = vmul.f32 %v4333, %v4335
    %vm4337 = vcmp.eq.f32.partialorder %v4333, inf
    %v4338 = vsel %vm4337, %v4333, %v4336
    %vm4339 = vcmp.eq.f32.partialorder %v4333, 0.0
    %v4340 = vand.u32 %v4333, 2147483648
    %v4341 = vsel %vm4339, %v4340, %v4338
    %v4342 = vrsqrt.pop %v4334
    %v4343 = vmul.f32 %v4334, %v4342
    %vm4344 = vcmp.eq.f32.partialorder %v4334, inf
    %v4345 = vsel %vm4344, %v4334, %v4343
    %vm4346 = vcmp.eq.f32.partialorder %v4334, 0.0
    %v4347 = vand.u32 %v4334, 2147483648
    %v4348 = vsel %vm4346, %v4347, %v4345
    %v4349 = vadd.f32 %v4341, 1e-06
    %v4350 = vadd.f32 %v4348, 1e-06
    %v4351 = vrcp.pop %v4349
    %v4352 = vmul.f32 1.0, %v4351
    %v4353 = vrcp.pop %v4350
    %v4354 = vmul.f32 1.0, %v4353
    %v4355 = vmul.f32 %v4325, %v4352
    %v4356 = vmul.f32 %v4326, %v4354
    %v4358 = vlaneseq
    %v4359 = vshrl.u32 %v4358, 7
    %v4360 = vsub.s32 0, %v4359
    %v4361 = vrot.slane %v4317, %v4360
    %v4363 = vmul.f32 %v4361, %v4355
    %v4364 = vmul.f32 %v4361, %v4356
    %v4366 = vlaneseq
    %v4367 = vshrl.u32 %v4366, 7
    %v4368 = vsub.s32 0, %v4367
    %v4369 = vrot.slane %v4318, %v4368
    %v4371 = vadd.f32 %v4363, %v4369
    %v4372 = vadd.f32 %v4364, %v4369
    %4373 = vst [vmem:[#allocation26] sm:$0xff] %v4371
    %4374 = vst [vmem:[#allocation26 + $0x8] sm:$0xff] %v4372
    // Predicated region
    $region122: #{tpu_custom_call.1} parent=1 // pred_check
      _
    $region123: #{tpu_custom_call.1} parent=1 // pred_check_branch
      %4376 = sbr.rel (0) target = $region125
    $region124: #{tpu_custom_call.1} parent=1 // pred_region
      %s4378 = ssub.s32 256, 256
      %4379 = vsyncadd [#allocation4], %s4378
      %s4380 = sshll.u32 [#allocation26], 4
      %s4381 = int_to_ptr.vmem [resolvable:$true] %s4380
      %4386 = dma.vmem_to_hbm [thread:$0]  %s4381, 256, %s15, [#allocation4], 128, 128, 8
    $region125: #{tpu_custom_call.1} parent=1 // pred_fallthru
      _
    // Predicated region
    $region126: #{tpu_custom_call.1} parent=1 // pred_check
      _
    $region127: #{tpu_custom_call.1} parent=1 // pred_check_branch
      %4388 = sbr.rel (0) target = $region129
    $region128: #{tpu_custom_call.1} parent=1 // pred_region
      %4389 = dma.done [#allocation4], 256
    $region129: #{tpu_custom_call.1} parent=1 // pred_fallthru
      _
    %4390 = vsyncpa [#allocation3], 1
    %4391 = vsyncpa [#allocation6], 1
    %4392 = vsyncpa [#allocation9], 1
    %4393 = vsyncpa [#allocation12], 1
    %4394 = vsyncpa [#allocation15], 1
    %4395 = vsyncpa [#allocation18], 1
    %4396 = vsyncpa [#allocation21], 1
    %4397 = vsyncpa [#allocation24], 1
    %4398 = vsyncpa [#allocation4], 1

</llo_original>
